<compile_context>
chip_gen: v7x
topology: tpu7x:2x2x1
jax: 0.10.0
libtpu: 0.0.40
codegen_flags: <defaults>
</compile_context>

<pallas_src>
import math

import jax
import jax.numpy as jnp
from jax.experimental import pallas as pl
from jax.experimental.pallas import tpu as pltpu

# ---------------- model dims ----------------
B = 2            # batch
T = 8            # sequence length
D = 32           # hidden size
F = 64           # feed-forward size
H = 4            # attention heads
DH = D // H      # head dim
NUM_LAYERS = 2
EPS = 1e-6
NEG_INF = -1e9
SCALE = 1.0 / math.sqrt(DH)   # folded into Wq at init

# ---------------- packed-parameter layout (all offsets are static) ----------
PW = 3 * D                       # packed buffer width (max param width = 3D)
R_LN1G = 0                       # 1 row,  cols 0:D
R_LN1B = 1                       # 1 row,  cols 0:D
R_BQKV = 2                       # 1 row,  cols 0:3D
R_WQKV = 3                       # D rows, cols 0:3D
R_WO = R_WQKV + D                # D rows, cols 0:D
R_BO = R_WO + D                  # 1 row,  cols 0:D
R_LN2G = R_BO + 1                # 1 row,  cols 0:D
R_LN2B = R_LN2G + 1              # 1 row,  cols 0:D
R_W1 = R_LN2B + 1                # D rows, cols 0:F
R_B1 = R_W1 + D                  # 1 row,  cols 0:F
R_W2 = R_B1 + 1                  # F rows, cols 0:D
R_B2 = R_W2 + F                  # 1 row,  cols 0:D
LAYER_ROWS = R_B2 + 1            # = 168
R_FING = NUM_LAYERS * LAYER_ROWS  # final LN gamma
R_FINB = R_FING + 1               # final LN beta
R_PE = R_FINB + 1                 # T rows, cols 0:D  (positional encoding)
TOTAL_ROWS = R_PE + T             # = 346


# ---------------- kernel helpers ----------------
def _layer_norm(v, g, b):
    # v: [N, D] f32, g/b: [1, D]  (matches nn.LayerNorm(eps=1e-6))
    mu = jnp.mean(v, axis=-1, keepdims=True)
    var = jnp.mean(jnp.square(v - mu), axis=-1, keepdims=True)
    return (v - mu) * jax.lax.rsqrt(var + EPS) * g + b


# ---------------- fused forward kernel ----------------
def fused_encoder_kernel(x_ref, bias_ref, p_ref, o_ref, ctx_ref):
    """PE add -> NUM_LAYERS x (pre-LN MHA + residual, pre-LN FFN + residual)
    -> final LayerNorm.  Whole batch, whole model, one invocation."""
    pe = p_ref[R_PE:R_PE + T, 0:D]                               # [T, D]
    x = x_ref[...].astype(jnp.float32) + pe[None, :, :]          # emb_dropout == id
    bias = bias_ref[...].astype(jnp.float32)                     # [B, T, T]
    bias_bh = jnp.tile(bias, (H, 1, 1))                          # [H*B, T, T]

    x2 = x.reshape(B * T, D)                                     # tokens flattened

    for l in range(NUM_LAYERS):                                  # static unroll
        base = l * LAYER_ROWS
        ln1g = p_ref[base + R_LN1G:base + R_LN1G + 1, 0:D]
        ln1b = p_ref[base + R_LN1B:base + R_LN1B + 1, 0:D]
        wqkv = p_ref[base + R_WQKV:base + R_WQKV + D, 0:3 * D]
        bqkv = p_ref[base + R_BQKV:base + R_BQKV + 1, 0:3 * D]
        wo = p_ref[base + R_WO:base + R_WO + D, 0:D]
        bo = p_ref[base + R_BO:base + R_BO + 1, 0:D]
        ln2g = p_ref[base + R_LN2G:base + R_LN2G + 1, 0:D]
        ln2b = p_ref[base + R_LN2B:base + R_LN2B + 1, 0:D]
        w1 = p_ref[base + R_W1:base + R_W1 + D, 0:F]
        b1 = p_ref[base + R_B1:base + R_B1 + 1, 0:F]
        w2 = p_ref[base + R_W2:base + R_W2 + F, 0:D]
        b2 = p_ref[base + R_B2:base + R_B2 + 1, 0:D]

        # ---- attention block: h = MHA(LN(x)) + x ----
        xn = _layer_norm(x2, ln1g, ln1b)                         # [B*T, D]
        qkv = jnp.dot(xn, wqkv,
                      preferred_element_type=jnp.float32) + bqkv  # [B*T, 3D]

        # gather heads onto a leading batch dim: [H, B*T, DH] -> [H*B, T, DH]
        q_bh = jnp.stack([qkv[:, h * DH:(h + 1) * DH] for h in range(H)],
                         axis=0).reshape(H * B, T, DH)
        k_bh = jnp.stack([qkv[:, D + h * DH:D + (h + 1) * DH] for h in range(H)],
                         axis=0).reshape(H * B, T, DH)
        v_bh = jnp.stack([qkv[:, 2 * D + h * DH:2 * D + (h + 1) * DH]
                          for h in range(H)], axis=0).reshape(H * B, T, DH)

        # one batched score matmul + ONE softmax pass (scale folded into Wq)
        s = jnp.einsum('bqd,bkd->bqk', q_bh, k_bh,
                       preferred_element_type=jnp.float32) + bias_bh
        s = s - jnp.max(s, axis=-1, keepdims=True)
        p = jnp.exp(s)
        p = p * pl.reciprocal(jnp.sum(p, axis=-1, keepdims=True), approx=True)
        ctx_bh = jnp.einsum('bqk,bkd->bqd', p, v_bh,
                            preferred_element_type=jnp.float32)  # [H*B, T, DH]

        # scatter heads back into a [B*T, D] slab (no lane-dim concatenate)
        ctx_hbt = ctx_bh.reshape(H, B * T, DH)
        for h in range(H):
            ctx_ref[:, h * DH:(h + 1) * DH] = ctx_hbt[h]

        attn_out = jnp.dot(ctx_ref[...], wo,
                           preferred_element_type=jnp.float32) + bo
        h1 = attn_out + x2                                       # dropout == id

        # ---- position-wise feed-forward: LN -> Linear -> ReLU -> Linear -> +res
        hn = _layer_norm(h1, ln2g, ln2b)
        f = jnp.dot(hn, w1, preferred_element_type=jnp.float32) + b1
        f = jnp.maximum(f, 0.0)
        f = jnp.dot(f, w2, preferred_element_type=jnp.float32) + b2
        x2 = f + h1

    # ---- final LayerNorm, stored reshape-free as [B*T, D] ----
    fg = p_ref[R_FING:R_FING + 1, 0:D]
    fb = p_ref[R_FINB:R_FINB + 1, 0:D]
    o_ref[...] = _layer_norm(x2, fg, fb).astype(o_ref.dtype)


# ---------------- wrapper ----------------
def _vmem_spec():
    return pl.BlockSpec(memory_space=pltpu.MemorySpace.VMEM)


@jax.jit
def transformer_encoder_forward(embed_src, mask, packed_params):
    # get_attention_mask: [B, T] -> outer product -> additive bias (tiny, f32)
    m2d = mask[:, :, None] * mask[:, None, :]                    # [B, T, T]
    attn_bias = (1.0 - m2d) * NEG_INF                            # 0 valid / -1e9 pad
    out = pl.pallas_call(
        fused_encoder_kernel,
        out_shape=jax.ShapeDtypeStruct((B * T, D), embed_src.dtype),
        in_specs=[_vmem_spec(), _vmem_spec(), _vmem_spec()],
        out_specs=_vmem_spec(),
        scratch_shapes=[pltpu.VMEM((B * T, D), jnp.float32)],    # head-context slab
    )(embed_src, attn_bias, packed_params)
    return out.reshape(B, T, D)


# ---------------- parameter construction (deterministic, synthetic) ----------
def sinusoidal_pe(length, dim):
    pos = jnp.arange(length, dtype=jnp.float32)[:, None]
    div = jnp.exp(jnp.arange(0, dim, 2, dtype=jnp.float32)
                  * (-math.log(10000.0) / dim))
    pe = jnp.zeros((length, dim), jnp.float32)
    pe = pe.at[:, 0::2].set(jnp.sin(pos * div))
    pe = pe.at[:, 1::2].set(jnp.cos(pos * div))
    return pe


def pack_params(layers, final_g, final_b, pe):
    """One-time (eager) packing of every parameter into a single [346, 96] f32
    buffer so the kernel has a single VMEM entry DMA for all weights."""
    buf = jnp.zeros((TOTAL_ROWS, PW), jnp.float32)
    for l, p in enumerate(layers):
        base = l * LAYER_ROWS
        buf = buf.at[base + R_LN1G, 0:D].set(p["ln1_g"])
        buf = buf.at[base + R_LN1B, 0:D].set(p["ln1_b"])
        buf = buf.at[base + R_BQKV, 0:3 * D].set(p["b_qkv"])
        buf = buf.at[base + R_WQKV:base + R_WQKV + D, 0:3 * D].set(p["w_qkv"])
        buf = buf.at[base + R_WO:base + R_WO + D, 0:D].set(p["w_o"])
        buf = buf.at[base + R_BO, 0:D].set(p["b_o"])
        buf = buf.at[base + R_LN2G, 0:D].set(p["ln2_g"])
        buf = buf.at[base + R_LN2B, 0:D].set(p["ln2_b"])
        buf = buf.at[base + R_W1:base + R_W1 + D, 0:F].set(p["w_1"])
        buf = buf.at[base + R_B1, 0:F].set(p["b_1"])
        buf = buf.at[base + R_W2:base + R_W2 + F, 0:D].set(p["w_2"])
        buf = buf.at[base + R_B2, 0:D].set(p["b_2"])
    buf = buf.at[R_FING, 0:D].set(final_g)
    buf = buf.at[R_FINB, 0:D].set(final_b)
    buf = buf.at[R_PE:R_PE + T, 0:D].set(pe)
    return buf


def init_params(key):
    layers = []
    for _ in range(NUM_LAYERS):
        keys = jax.random.split(key, 7)
        key = keys[0]
        wq = jax.random.normal(keys[1], (D, D), jnp.float32) * 0.02
        wk = jax.random.normal(keys[2], (D, D), jnp.float32) * 0.02
        wv = jax.random.normal(keys[3], (D, D), jnp.float32) * 0.02
        wo = jax.random.normal(keys[4], (D, D), jnp.float32) * 0.02
        w1 = jax.random.normal(keys[5], (D, F), jnp.float32) * 0.02
        w2 = jax.random.normal(keys[6], (F, D), jnp.float32) * 0.02
        # Fold the 1/sqrt(DH) attention scale into Wq (and its bias, zeros here).
        w_qkv = jnp.concatenate([wq * SCALE, wk, wv], axis=-1)     # [D, 3D]
        layers.append(dict(
            ln1_g=jnp.ones((D,), jnp.float32), ln1_b=jnp.zeros((D,), jnp.float32),
            w_qkv=w_qkv, b_qkv=jnp.zeros((3 * D,), jnp.float32),
            w_o=wo, b_o=jnp.zeros((D,), jnp.float32),
            ln2_g=jnp.ones((D,), jnp.float32), ln2_b=jnp.zeros((D,), jnp.float32),
            w_1=w1, b_1=jnp.zeros((F,), jnp.float32),
            w_2=w2, b_2=jnp.zeros((D,), jnp.float32)))
    final_g = jnp.ones((D,), jnp.float32)
    final_b = jnp.zeros((D,), jnp.float32)
    return pack_params(layers, final_g, final_b, sinusoidal_pe(T, D))


# ---------------- main ----------------
if __name__ == "__main__":
    key = jax.random.PRNGKey(0)
    k_emb, k_par = jax.random.split(key)

    embed_src = jax.random.normal(k_emb, (B, T, D), jnp.float32)
    src_length = jnp.array([T, T - 3], jnp.int32)
    mask = (jnp.arange(T)[None, :] < src_length[:, None]).astype(jnp.float32)  # [B, T]

    packed_params = init_params(k_par)

    out = transformer_encoder_forward(embed_src, mask, packed_params)
    out = jax.block_until_ready(out)

    assert out.shape == (B, T, D)
    assert bool(jnp.all(jnp.isfinite(out)))
    print("KERNEL_OK")
</pallas_src>

<mosaic_0001>
module attributes {stable_mosaic.version = 11 : i64} {
  func.func @fused_encoder_kernel(%arg0: memref<2x8x32xf32, #tpu.memory_space<vmem>>, %arg1: memref<2x8x8xf32, #tpu.memory_space<vmem>>, %arg2: memref<346x96xf32, #tpu.memory_space<vmem>>, %arg3: memref<16x32xf32, #tpu.memory_space<vmem>>, %arg4: memref<16x32xf32, #tpu.memory_space<vmem>>) attributes {dimension_semantics = [], scalar_prefetch = 0 : i64, scratch_operands = 1 : i64, tpu.core_type = #tpu.core_type<tc>} {
    %c338 = arith.constant 338 : index
    %c0 = arith.constant 0 : index
    %0 = vector.load %arg2[%c338, %c0] : memref<346x96xf32, #tpu.memory_space<vmem>>, vector<8x32xf32>
    %c0_0 = arith.constant 0 : index
    %c0_1 = arith.constant 0 : index
    %c0_2 = arith.constant 0 : index
    %1 = vector.load %arg0[%c0_0, %c0_1, %c0_2] : memref<2x8x32xf32, #tpu.memory_space<vmem>>, vector<2x8x32xf32>
    %2 = vector.shape_cast %0 : vector<8x32xf32> to vector<1x8x32xf32>
    %3 = vector.broadcast %2 : vector<1x8x32xf32> to vector<2x8x32xf32>
    %4 = arith.addf %1, %3 : vector<2x8x32xf32>
    %c0_3 = arith.constant 0 : index
    %c0_4 = arith.constant 0 : index
    %c0_5 = arith.constant 0 : index
    %5 = vector.load %arg1[%c0_3, %c0_4, %c0_5] : memref<2x8x8xf32, #tpu.memory_space<vmem>>, vector<2x8x8xf32>
    %6 = tpu.concatenate %5, %5, %5, %5 in 0 : vector<2x8x8xf32>, vector<2x8x8xf32>, vector<2x8x8xf32>, vector<2x8x8xf32> -> vector<8x8x8xf32>
    %7 = vector.shape_cast %4 : vector<2x8x32xf32> to vector<16x32xf32>
    %c0_6 = arith.constant 0 : index
    %c0_7 = arith.constant 0 : index
    %8 = vector.load %arg2[%c0_6, %c0_7] : memref<346x96xf32, #tpu.memory_space<vmem>>, vector<1x32xf32>
    %c1 = arith.constant 1 : index
    %c0_8 = arith.constant 0 : index
    %9 = vector.load %arg2[%c1, %c0_8] : memref<346x96xf32, #tpu.memory_space<vmem>>, vector<1x32xf32>
    %c3 = arith.constant 3 : index
    %c0_9 = arith.constant 0 : index
    %10 = vector.load %arg2[%c3, %c0_9] : memref<346x96xf32, #tpu.memory_space<vmem>>, vector<32x96xf32>
    %c2 = arith.constant 2 : index
    %c0_10 = arith.constant 0 : index
    %11 = vector.load %arg2[%c2, %c0_10] : memref<346x96xf32, #tpu.memory_space<vmem>>, vector<1x96xf32>
    %c35 = arith.constant 35 : index
    %c0_11 = arith.constant 0 : index
    %12 = vector.load %arg2[%c35, %c0_11] : memref<346x96xf32, #tpu.memory_space<vmem>>, vector<32x32xf32>
    %c67 = arith.constant 67 : index
    %c0_12 = arith.constant 0 : index
    %13 = vector.load %arg2[%c67, %c0_12] : memref<346x96xf32, #tpu.memory_space<vmem>>, vector<1x32xf32>
    %c68 = arith.constant 68 : index
    %c0_13 = arith.constant 0 : index
    %14 = vector.load %arg2[%c68, %c0_13] : memref<346x96xf32, #tpu.memory_space<vmem>>, vector<1x32xf32>
    %c69 = arith.constant 69 : index
    %c0_14 = arith.constant 0 : index
    %15 = vector.load %arg2[%c69, %c0_14] : memref<346x96xf32, #tpu.memory_space<vmem>>, vector<1x32xf32>
    %c70 = arith.constant 70 : index
    %c0_15 = arith.constant 0 : index
    %16 = vector.load %arg2[%c70, %c0_15] : memref<346x96xf32, #tpu.memory_space<vmem>>, vector<32x64xf32>
    %c102 = arith.constant 102 : index
    %c0_16 = arith.constant 0 : index
    %17 = vector.load %arg2[%c102, %c0_16] : memref<346x96xf32, #tpu.memory_space<vmem>>, vector<1x64xf32>
    %c103 = arith.constant 103 : index
    %c0_17 = arith.constant 0 : index
    %18 = vector.load %arg2[%c103, %c0_17] : memref<346x96xf32, #tpu.memory_space<vmem>>, vector<64x32xf32>
    %c167 = arith.constant 167 : index
    %c0_18 = arith.constant 0 : index
    %19 = vector.load %arg2[%c167, %c0_18] : memref<346x96xf32, #tpu.memory_space<vmem>>, vector<1x32xf32>
    %cst = arith.constant dense<0.000000e+00> : vector<16xf32>
    %20 = vector.multi_reduction <add>, %7, %cst [1] : vector<16x32xf32> to vector<16xf32>
    %21 = vector.shape_cast %20 : vector<16xf32> to vector<16x1xf32>
    %cst_19 = arith.constant 3.200000e+01 : f32
    %22 = vector.broadcast %cst_19 : f32 to vector<16x1xf32>
    %23 = arith.divf %21, %22 : vector<16x1xf32>
    %24 = vector.broadcast %23 : vector<16x1xf32> to vector<16x32xf32>
    %25 = arith.subf %7, %24 : vector<16x32xf32>
    %26 = arith.mulf %25, %25 : vector<16x32xf32>
    %cst_20 = arith.constant dense<0.000000e+00> : vector<16xf32>
    %27 = vector.multi_reduction <add>, %26, %cst_20 [1] : vector<16x32xf32> to vector<16xf32>
    %28 = vector.shape_cast %27 : vector<16xf32> to vector<16x1xf32>
    %cst_21 = arith.constant 3.200000e+01 : f32
    %29 = vector.broadcast %cst_21 : f32 to vector<16x1xf32>
    %30 = arith.divf %28, %29 : vector<16x1xf32>
    %31 = vector.broadcast %23 : vector<16x1xf32> to vector<16x32xf32>
    %32 = arith.subf %7, %31 : vector<16x32xf32>
    %cst_22 = arith.constant 9.99999997E-7 : f32
    %33 = vector.broadcast %cst_22 : f32 to vector<16x1xf32>
    %34 = arith.addf %30, %33 : vector<16x1xf32>
    %35 = math.rsqrt %34 : vector<16x1xf32>
    %36 = vector.broadcast %35 : vector<16x1xf32> to vector<16x32xf32>
    %37 = arith.mulf %32, %36 : vector<16x32xf32>
    %38 = vector.broadcast %8 : vector<1x32xf32> to vector<16x32xf32>
    %39 = arith.mulf %37, %38 : vector<16x32xf32>
    %40 = vector.broadcast %9 : vector<1x32xf32> to vector<16x32xf32>
    %41 = arith.addf %39, %40 : vector<16x32xf32>
    %cst_23 = arith.constant dense<0.000000e+00> : vector<16x96xf32>
    %42 = tpu.matmul %41, %10, %cst_23 {dimension_numbers = #tpu.dot_dimension_numbers<[1], [0], [0], [1], [0, 0, 1, 1], [], []>} : vector<16x32xf32>, vector<32x96xf32>, vector<16x96xf32> -> vector<16x96xf32>
    %43 = vector.broadcast %11 : vector<1x96xf32> to vector<16x96xf32>
    %44 = arith.addf %42, %43 : vector<16x96xf32>
    %45 = vector.extract_strided_slice %44 {offsets = [0, 0], sizes = [16, 8], strides = [1, 1]} : vector<16x96xf32> to vector<16x8xf32>
    %46 = vector.extract_strided_slice %44 {offsets = [0, 8], sizes = [16, 8], strides = [1, 1]} : vector<16x96xf32> to vector<16x8xf32>
    %47 = vector.extract_strided_slice %44 {offsets = [0, 16], sizes = [16, 8], strides = [1, 1]} : vector<16x96xf32> to vector<16x8xf32>
    %48 = vector.extract_strided_slice %44 {offsets = [0, 24], sizes = [16, 8], strides = [1, 1]} : vector<16x96xf32> to vector<16x8xf32>
    %49 = vector.shape_cast %45 : vector<16x8xf32> to vector<1x16x8xf32>
    %50 = vector.shape_cast %46 : vector<16x8xf32> to vector<1x16x8xf32>
    %51 = vector.shape_cast %47 : vector<16x8xf32> to vector<1x16x8xf32>
    %52 = vector.shape_cast %48 : vector<16x8xf32> to vector<1x16x8xf32>
    %53 = tpu.concatenate %49, %50, %51, %52 in 0 : vector<1x16x8xf32>, vector<1x16x8xf32>, vector<1x16x8xf32>, vector<1x16x8xf32> -> vector<4x16x8xf32>
    %54 = vector.shape_cast %53 : vector<4x16x8xf32> to vector<8x8x8xf32>
    %55 = vector.extract_strided_slice %44 {offsets = [0, 32], sizes = [16, 8], strides = [1, 1]} : vector<16x96xf32> to vector<16x8xf32>
    %56 = vector.extract_strided_slice %44 {offsets = [0, 40], sizes = [16, 8], strides = [1, 1]} : vector<16x96xf32> to vector<16x8xf32>
    %57 = vector.extract_strided_slice %44 {offsets = [0, 48], sizes = [16, 8], strides = [1, 1]} : vector<16x96xf32> to vector<16x8xf32>
    %58 = vector.extract_strided_slice %44 {offsets = [0, 56], sizes = [16, 8], strides = [1, 1]} : vector<16x96xf32> to vector<16x8xf32>
    %59 = vector.shape_cast %55 : vector<16x8xf32> to vector<1x16x8xf32>
    %60 = vector.shape_cast %56 : vector<16x8xf32> to vector<1x16x8xf32>
    %61 = vector.shape_cast %57 : vector<16x8xf32> to vector<1x16x8xf32>
    %62 = vector.shape_cast %58 : vector<16x8xf32> to vector<1x16x8xf32>
    %63 = tpu.concatenate %59, %60, %61, %62 in 0 : vector<1x16x8xf32>, vector<1x16x8xf32>, vector<1x16x8xf32>, vector<1x16x8xf32> -> vector<4x16x8xf32>
    %64 = vector.shape_cast %63 : vector<4x16x8xf32> to vector<8x8x8xf32>
    %65 = vector.extract_strided_slice %44 {offsets = [0, 64], sizes = [16, 8], strides = [1, 1]} : vector<16x96xf32> to vector<16x8xf32>
    %66 = vector.extract_strided_slice %44 {offsets = [0, 72], sizes = [16, 8], strides = [1, 1]} : vector<16x96xf32> to vector<16x8xf32>
    %67 = vector.extract_strided_slice %44 {offsets = [0, 80], sizes = [16, 8], strides = [1, 1]} : vector<16x96xf32> to vector<16x8xf32>
    %68 = vector.extract_strided_slice %44 {offsets = [0, 88], sizes = [16, 8], strides = [1, 1]} : vector<16x96xf32> to vector<16x8xf32>
    %69 = vector.shape_cast %65 : vector<16x8xf32> to vector<1x16x8xf32>
    %70 = vector.shape_cast %66 : vector<16x8xf32> to vector<1x16x8xf32>
    %71 = vector.shape_cast %67 : vector<16x8xf32> to vector<1x16x8xf32>
    %72 = vector.shape_cast %68 : vector<16x8xf32> to vector<1x16x8xf32>
    %73 = tpu.concatenate %69, %70, %71, %72 in 0 : vector<1x16x8xf32>, vector<1x16x8xf32>, vector<1x16x8xf32>, vector<1x16x8xf32> -> vector<4x16x8xf32>
    %74 = vector.shape_cast %73 : vector<4x16x8xf32> to vector<8x8x8xf32>
    "tpu.trace_start"() <{level = 10 : i32, message = "bqd,bkd->bqk"}> : () -> ()
    %cst_24 = arith.constant dense<0.000000e+00> : vector<8x8x8xf32>
    %75 = tpu.matmul %54, %64, %cst_24 {dimension_numbers = #tpu.dot_dimension_numbers<[2], [2], [1], [1], [0, 0, 0, 1, 1, 1], [0], [0]>} : vector<8x8x8xf32>, vector<8x8x8xf32>, vector<8x8x8xf32> -> vector<8x8x8xf32>
    "tpu.trace_stop"() : () -> ()
    %76 = arith.addf %75, %6 : vector<8x8x8xf32>
    %cst_25 = arith.constant dense<0xFF800000> : vector<8x8xf32>
    %77 = vector.multi_reduction <maximumf>, %76, %cst_25 [2] : vector<8x8x8xf32> to vector<8x8xf32>
    %78 = vector.shape_cast %77 : vector<8x8xf32> to vector<8x8x1xf32>
    %79 = vector.broadcast %78 : vector<8x8x1xf32> to vector<8x8x8xf32>
    %80 = arith.subf %76, %79 : vector<8x8x8xf32>
    %81 = math.exp %80 : vector<8x8x8xf32>
    %cst_26 = arith.constant dense<0.000000e+00> : vector<8x8xf32>
    %82 = vector.multi_reduction <add>, %81, %cst_26 [2] : vector<8x8x8xf32> to vector<8x8xf32>
    %83 = vector.shape_cast %82 : vector<8x8xf32> to vector<8x8x1xf32>
    %84 = tpu.reciprocal %83 {approx = true} : vector<8x8x1xf32> -> vector<8x8x1xf32>
    %85 = vector.broadcast %84 : vector<8x8x1xf32> to vector<8x8x8xf32>
    %86 = arith.mulf %81, %85 : vector<8x8x8xf32>
    "tpu.trace_start"() <{level = 10 : i32, message = "bqk,bkd->bqd"}> : () -> ()
    %cst_27 = arith.constant dense<0.000000e+00> : vector<8x8x8xf32>
    %87 = tpu.matmul %86, %74, %cst_27 {dimension_numbers = #tpu.dot_dimension_numbers<[2], [1], [1], [2], [0, 0, 0, 1, 1, 2], [0], [0]>} : vector<8x8x8xf32>, vector<8x8x8xf32>, vector<8x8x8xf32> -> vector<8x8x8xf32>
    "tpu.trace_stop"() : () -> ()
    %88 = vector.shape_cast %87 : vector<8x8x8xf32> to vector<4x16x8xf32>
    %89 = vector.extract_strided_slice %88 {offsets = [0, 0, 0], sizes = [1, 16, 8], strides = [1, 1, 1]} : vector<4x16x8xf32> to vector<1x16x8xf32>
    %90 = vector.shape_cast %89 : vector<1x16x8xf32> to vector<16x8xf32>
    %c0_28 = arith.constant 0 : index
    %c0_29 = arith.constant 0 : index
    %91 = vector.load %arg4[%c0_28, %c0_29] : memref<16x32xf32, #tpu.memory_space<vmem>>, vector<16x8xf32>
    tpu.vector_store %arg4[%c0_28, %c0_29], %90 {strides = array<i32>} : memref<16x32xf32, #tpu.memory_space<vmem>>, vector<16x8xf32>,
    %92 = vector.extract_strided_slice %88 {offsets = [1, 0, 0], sizes = [1, 16, 8], strides = [1, 1, 1]} : vector<4x16x8xf32> to vector<1x16x8xf32>
    %93 = vector.shape_cast %92 : vector<1x16x8xf32> to vector<16x8xf32>
    %c0_30 = arith.constant 0 : index
    %c8 = arith.constant 8 : index
    %94 = vector.load %arg4[%c0_30, %c8] : memref<16x32xf32, #tpu.memory_space<vmem>>, vector<16x8xf32>
    tpu.vector_store %arg4[%c0_30, %c8], %93 {strides = array<i32>} : memref<16x32xf32, #tpu.memory_space<vmem>>, vector<16x8xf32>,
    %95 = vector.extract_strided_slice %88 {offsets = [2, 0, 0], sizes = [1, 16, 8], strides = [1, 1, 1]} : vector<4x16x8xf32> to vector<1x16x8xf32>
    %96 = vector.shape_cast %95 : vector<1x16x8xf32> to vector<16x8xf32>
    %c0_31 = arith.constant 0 : index
    %c16 = arith.constant 16 : index
    %97 = vector.load %arg4[%c0_31, %c16] : memref<16x32xf32, #tpu.memory_space<vmem>>, vector<16x8xf32>
    tpu.vector_store %arg4[%c0_31, %c16], %96 {strides = array<i32>} : memref<16x32xf32, #tpu.memory_space<vmem>>, vector<16x8xf32>,
    %98 = vector.extract_strided_slice %88 {offsets = [3, 0, 0], sizes = [1, 16, 8], strides = [1, 1, 1]} : vector<4x16x8xf32> to vector<1x16x8xf32>
    %99 = vector.shape_cast %98 : vector<1x16x8xf32> to vector<16x8xf32>
    %c0_32 = arith.constant 0 : index
    %c24 = arith.constant 24 : index
    %100 = vector.load %arg4[%c0_32, %c24] : memref<16x32xf32, #tpu.memory_space<vmem>>, vector<16x8xf32>
    tpu.vector_store %arg4[%c0_32, %c24], %99 {strides = array<i32>} : memref<16x32xf32, #tpu.memory_space<vmem>>, vector<16x8xf32>,
    %c0_33 = arith.constant 0 : index
    %c0_34 = arith.constant 0 : index
    %101 = vector.load %arg4[%c0_33, %c0_34] : memref<16x32xf32, #tpu.memory_space<vmem>>, vector<16x32xf32>
    %cst_35 = arith.constant dense<0.000000e+00> : vector<16x32xf32>
    %102 = tpu.matmul %101, %12, %cst_35 {dimension_numbers = #tpu.dot_dimension_numbers<[1], [0], [0], [1], [0, 0, 1, 1], [], []>} : vector<16x32xf32>, vector<32x32xf32>, vector<16x32xf32> -> vector<16x32xf32>
    %103 = vector.broadcast %13 : vector<1x32xf32> to vector<16x32xf32>
    %104 = arith.addf %102, %103 : vector<16x32xf32>
    %105 = arith.addf %104, %7 : vector<16x32xf32>
    %cst_36 = arith.constant dense<0.000000e+00> : vector<16xf32>
    %106 = vector.multi_reduction <add>, %105, %cst_36 [1] : vector<16x32xf32> to vector<16xf32>
    %107 = vector.shape_cast %106 : vector<16xf32> to vector<16x1xf32>
    %cst_37 = arith.constant 3.200000e+01 : f32
    %108 = vector.broadcast %cst_37 : f32 to vector<16x1xf32>
    %109 = arith.divf %107, %108 : vector<16x1xf32>
    %110 = vector.broadcast %109 : vector<16x1xf32> to vector<16x32xf32>
    %111 = arith.subf %105, %110 : vector<16x32xf32>
    %112 = arith.mulf %111, %111 : vector<16x32xf32>
    %cst_38 = arith.constant dense<0.000000e+00> : vector<16xf32>
    %113 = vector.multi_reduction <add>, %112, %cst_38 [1] : vector<16x32xf32> to vector<16xf32>
    %114 = vector.shape_cast %113 : vector<16xf32> to vector<16x1xf32>
    %cst_39 = arith.constant 3.200000e+01 : f32
    %115 = vector.broadcast %cst_39 : f32 to vector<16x1xf32>
    %116 = arith.divf %114, %115 : vector<16x1xf32>
    %117 = vector.broadcast %109 : vector<16x1xf32> to vector<16x32xf32>
    %118 = arith.subf %105, %117 : vector<16x32xf32>
    %cst_40 = arith.constant 9.99999997E-7 : f32
    %119 = vector.broadcast %cst_40 : f32 to vector<16x1xf32>
    %120 = arith.addf %116, %119 : vector<16x1xf32>
    %121 = math.rsqrt %120 : vector<16x1xf32>
    %122 = vector.broadcast %121 : vector<16x1xf32> to vector<16x32xf32>
    %123 = arith.mulf %118, %122 : vector<16x32xf32>
    %124 = vector.broadcast %14 : vector<1x32xf32> to vector<16x32xf32>
    %125 = arith.mulf %123, %124 : vector<16x32xf32>
    %126 = vector.broadcast %15 : vector<1x32xf32> to vector<16x32xf32>
    %127 = arith.addf %125, %126 : vector<16x32xf32>
    %cst_41 = arith.constant dense<0.000000e+00> : vector<16x64xf32>
    %128 = tpu.matmul %127, %16, %cst_41 {dimension_numbers = #tpu.dot_dimension_numbers<[1], [0], [0], [1], [0, 0, 1, 1], [], []>} : vector<16x32xf32>, vector<32x64xf32>, vector<16x64xf32> -> vector<16x64xf32>
    %129 = vector.broadcast %17 : vector<1x64xf32> to vector<16x64xf32>
    %130 = arith.addf %128, %129 : vector<16x64xf32>
    %cst_42 = arith.constant 0.000000e+00 : f32
    %131 = vector.broadcast %cst_42 : f32 to vector<16x64xf32>
    %132 = arith.maximumf %130, %131 : vector<16x64xf32>
    %cst_43 = arith.constant dense<0.000000e+00> : vector<16x32xf32>
    %133 = tpu.matmul %132, %18, %cst_43 {dimension_numbers = #tpu.dot_dimension_numbers<[1], [0], [0], [1], [0, 0, 1, 1], [], []>} : vector<16x64xf32>, vector<64x32xf32>, vector<16x32xf32> -> vector<16x32xf32>
    %134 = vector.broadcast %19 : vector<1x32xf32> to vector<16x32xf32>
    %135 = arith.addf %133, %134 : vector<16x32xf32>
    %136 = arith.addf %135, %105 : vector<16x32xf32>
    %c168 = arith.constant 168 : index
    %c0_44 = arith.constant 0 : index
    %137 = vector.load %arg2[%c168, %c0_44] : memref<346x96xf32, #tpu.memory_space<vmem>>, vector<1x32xf32>
    %c169 = arith.constant 169 : index
    %c0_45 = arith.constant 0 : index
    %138 = vector.load %arg2[%c169, %c0_45] : memref<346x96xf32, #tpu.memory_space<vmem>>, vector<1x32xf32>
    %c171 = arith.constant 171 : index
    %c0_46 = arith.constant 0 : index
    %139 = vector.load %arg2[%c171, %c0_46] : memref<346x96xf32, #tpu.memory_space<vmem>>, vector<32x96xf32>
    %c170 = arith.constant 170 : index
    %c0_47 = arith.constant 0 : index
    %140 = vector.load %arg2[%c170, %c0_47] : memref<346x96xf32, #tpu.memory_space<vmem>>, vector<1x96xf32>
    %c203 = arith.constant 203 : index
    %c0_48 = arith.constant 0 : index
    %141 = vector.load %arg2[%c203, %c0_48] : memref<346x96xf32, #tpu.memory_space<vmem>>, vector<32x32xf32>
    %c235 = arith.constant 235 : index
    %c0_49 = arith.constant 0 : index
    %142 = vector.load %arg2[%c235, %c0_49] : memref<346x96xf32, #tpu.memory_space<vmem>>, vector<1x32xf32>
    %c236 = arith.constant 236 : index
    %c0_50 = arith.constant 0 : index
    %143 = vector.load %arg2[%c236, %c0_50] : memref<346x96xf32, #tpu.memory_space<vmem>>, vector<1x32xf32>
    %c237 = arith.constant 237 : index
    %c0_51 = arith.constant 0 : index
    %144 = vector.load %arg2[%c237, %c0_51] : memref<346x96xf32, #tpu.memory_space<vmem>>, vector<1x32xf32>
    %c238 = arith.constant 238 : index
    %c0_52 = arith.constant 0 : index
    %145 = vector.load %arg2[%c238, %c0_52] : memref<346x96xf32, #tpu.memory_space<vmem>>, vector<32x64xf32>
    %c270 = arith.constant 270 : index
    %c0_53 = arith.constant 0 : index
    %146 = vector.load %arg2[%c270, %c0_53] : memref<346x96xf32, #tpu.memory_space<vmem>>, vector<1x64xf32>
    %c271 = arith.constant 271 : index
    %c0_54 = arith.constant 0 : index
    %147 = vector.load %arg2[%c271, %c0_54] : memref<346x96xf32, #tpu.memory_space<vmem>>, vector<64x32xf32>
    %c335 = arith.constant 335 : index
    %c0_55 = arith.constant 0 : index
    %148 = vector.load %arg2[%c335, %c0_55] : memref<346x96xf32, #tpu.memory_space<vmem>>, vector<1x32xf32>
    %cst_56 = arith.constant dense<0.000000e+00> : vector<16xf32>
    %149 = vector.multi_reduction <add>, %136, %cst_56 [1] : vector<16x32xf32> to vector<16xf32>
    %150 = vector.shape_cast %149 : vector<16xf32> to vector<16x1xf32>
    %cst_57 = arith.constant 3.200000e+01 : f32
    %151 = vector.broadcast %cst_57 : f32 to vector<16x1xf32>
    %152 = arith.divf %150, %151 : vector<16x1xf32>
    %153 = vector.broadcast %152 : vector<16x1xf32> to vector<16x32xf32>
    %154 = arith.subf %136, %153 : vector<16x32xf32>
    %155 = arith.mulf %154, %154 : vector<16x32xf32>
    %cst_58 = arith.constant dense<0.000000e+00> : vector<16xf32>
    %156 = vector.multi_reduction <add>, %155, %cst_58 [1] : vector<16x32xf32> to vector<16xf32>
    %157 = vector.shape_cast %156 : vector<16xf32> to vector<16x1xf32>
    %cst_59 = arith.constant 3.200000e+01 : f32
    %158 = vector.broadcast %cst_59 : f32 to vector<16x1xf32>
    %159 = arith.divf %157, %158 : vector<16x1xf32>
    %160 = vector.broadcast %152 : vector<16x1xf32> to vector<16x32xf32>
    %161 = arith.subf %136, %160 : vector<16x32xf32>
    %cst_60 = arith.constant 9.99999997E-7 : f32
    %162 = vector.broadcast %cst_60 : f32 to vector<16x1xf32>
    %163 = arith.addf %159, %162 : vector<16x1xf32>
    %164 = math.rsqrt %163 : vector<16x1xf32>
    %165 = vector.broadcast %164 : vector<16x1xf32> to vector<16x32xf32>
    %166 = arith.mulf %161, %165 : vector<16x32xf32>
    %167 = vector.broadcast %137 : vector<1x32xf32> to vector<16x32xf32>
    %168 = arith.mulf %166, %167 : vector<16x32xf32>
    %169 = vector.broadcast %138 : vector<1x32xf32> to vector<16x32xf32>
    %170 = arith.addf %168, %169 : vector<16x32xf32>
    %cst_61 = arith.constant dense<0.000000e+00> : vector<16x96xf32>
    %171 = tpu.matmul %170, %139, %cst_61 {dimension_numbers = #tpu.dot_dimension_numbers<[1], [0], [0], [1], [0, 0, 1, 1], [], []>} : vector<16x32xf32>, vector<32x96xf32>, vector<16x96xf32> -> vector<16x96xf32>
    %172 = vector.broadcast %140 : vector<1x96xf32> to vector<16x96xf32>
    %173 = arith.addf %171, %172 : vector<16x96xf32>
    %174 = vector.extract_strided_slice %173 {offsets = [0, 0], sizes = [16, 8], strides = [1, 1]} : vector<16x96xf32> to vector<16x8xf32>
    %175 = vector.extract_strided_slice %173 {offsets = [0, 8], sizes = [16, 8], strides = [1, 1]} : vector<16x96xf32> to vector<16x8xf32>
    %176 = vector.extract_strided_slice %173 {offsets = [0, 16], sizes = [16, 8], strides = [1, 1]} : vector<16x96xf32> to vector<16x8xf32>
    %177 = vector.extract_strided_slice %173 {offsets = [0, 24], sizes = [16, 8], strides = [1, 1]} : vector<16x96xf32> to vector<16x8xf32>
    %178 = vector.shape_cast %174 : vector<16x8xf32> to vector<1x16x8xf32>
    %179 = vector.shape_cast %175 : vector<16x8xf32> to vector<1x16x8xf32>
    %180 = vector.shape_cast %176 : vector<16x8xf32> to vector<1x16x8xf32>
    %181 = vector.shape_cast %177 : vector<16x8xf32> to vector<1x16x8xf32>
    %182 = tpu.concatenate %178, %179, %180, %181 in 0 : vector<1x16x8xf32>, vector<1x16x8xf32>, vector<1x16x8xf32>, vector<1x16x8xf32> -> vector<4x16x8xf32>
    %183 = vector.shape_cast %182 : vector<4x16x8xf32> to vector<8x8x8xf32>
    %184 = vector.extract_strided_slice %173 {offsets = [0, 32], sizes = [16, 8], strides = [1, 1]} : vector<16x96xf32> to vector<16x8xf32>
    %185 = vector.extract_strided_slice %173 {offsets = [0, 40], sizes = [16, 8], strides = [1, 1]} : vector<16x96xf32> to vector<16x8xf32>
    %186 = vector.extract_strided_slice %173 {offsets = [0, 48], sizes = [16, 8], strides = [1, 1]} : vector<16x96xf32> to vector<16x8xf32>
    %187 = vector.extract_strided_slice %173 {offsets = [0, 56], sizes = [16, 8], strides = [1, 1]} : vector<16x96xf32> to vector<16x8xf32>
    %188 = vector.shape_cast %184 : vector<16x8xf32> to vector<1x16x8xf32>
    %189 = vector.shape_cast %185 : vector<16x8xf32> to vector<1x16x8xf32>
    %190 = vector.shape_cast %186 : vector<16x8xf32> to vector<1x16x8xf32>
    %191 = vector.shape_cast %187 : vector<16x8xf32> to vector<1x16x8xf32>
    %192 = tpu.concatenate %188, %189, %190, %191 in 0 : vector<1x16x8xf32>, vector<1x16x8xf32>, vector<1x16x8xf32>, vector<1x16x8xf32> -> vector<4x16x8xf32>
    %193 = vector.shape_cast %192 : vector<4x16x8xf32> to vector<8x8x8xf32>
    %194 = vector.extract_strided_slice %173 {offsets = [0, 64], sizes = [16, 8], strides = [1, 1]} : vector<16x96xf32> to vector<16x8xf32>
    %195 = vector.extract_strided_slice %173 {offsets = [0, 72], sizes = [16, 8], strides = [1, 1]} : vector<16x96xf32> to vector<16x8xf32>
    %196 = vector.extract_strided_slice %173 {offsets = [0, 80], sizes = [16, 8], strides = [1, 1]} : vector<16x96xf32> to vector<16x8xf32>
    %197 = vector.extract_strided_slice %173 {offsets = [0, 88], sizes = [16, 8], strides = [1, 1]} : vector<16x96xf32> to vector<16x8xf32>
    %198 = vector.shape_cast %194 : vector<16x8xf32> to vector<1x16x8xf32>
    %199 = vector.shape_cast %195 : vector<16x8xf32> to vector<1x16x8xf32>
    %200 = vector.shape_cast %196 : vector<16x8xf32> to vector<1x16x8xf32>
    %201 = vector.shape_cast %197 : vector<16x8xf32> to vector<1x16x8xf32>
    %202 = tpu.concatenate %198, %199, %200, %201 in 0 : vector<1x16x8xf32>, vector<1x16x8xf32>, vector<1x16x8xf32>, vector<1x16x8xf32> -> vector<4x16x8xf32>
    %203 = vector.shape_cast %202 : vector<4x16x8xf32> to vector<8x8x8xf32>
    "tpu.trace_start"() <{level = 10 : i32, message = "bqd,bkd->bqk"}> : () -> ()
    %cst_62 = arith.constant dense<0.000000e+00> : vector<8x8x8xf32>
    %204 = tpu.matmul %183, %193, %cst_62 {dimension_numbers = #tpu.dot_dimension_numbers<[2], [2], [1], [1], [0, 0, 0, 1, 1, 1], [0], [0]>} : vector<8x8x8xf32>, vector<8x8x8xf32>, vector<8x8x8xf32> -> vector<8x8x8xf32>
    "tpu.trace_stop"() : () -> ()
    %205 = arith.addf %204, %6 : vector<8x8x8xf32>
    %cst_63 = arith.constant dense<0xFF800000> : vector<8x8xf32>
    %206 = vector.multi_reduction <maximumf>, %205, %cst_63 [2] : vector<8x8x8xf32> to vector<8x8xf32>
    %207 = vector.shape_cast %206 : vector<8x8xf32> to vector<8x8x1xf32>
    %208 = vector.broadcast %207 : vector<8x8x1xf32> to vector<8x8x8xf32>
    %209 = arith.subf %205, %208 : vector<8x8x8xf32>
    %210 = math.exp %209 : vector<8x8x8xf32>
    %cst_64 = arith.constant dense<0.000000e+00> : vector<8x8xf32>
    %211 = vector.multi_reduction <add>, %210, %cst_64 [2] : vector<8x8x8xf32> to vector<8x8xf32>
    %212 = vector.shape_cast %211 : vector<8x8xf32> to vector<8x8x1xf32>
    %213 = tpu.reciprocal %212 {approx = true} : vector<8x8x1xf32> -> vector<8x8x1xf32>
    %214 = vector.broadcast %213 : vector<8x8x1xf32> to vector<8x8x8xf32>
    %215 = arith.mulf %210, %214 : vector<8x8x8xf32>
    "tpu.trace_start"() <{level = 10 : i32, message = "bqk,bkd->bqd"}> : () -> ()
    %cst_65 = arith.constant dense<0.000000e+00> : vector<8x8x8xf32>
    %216 = tpu.matmul %215, %203, %cst_65 {dimension_numbers = #tpu.dot_dimension_numbers<[2], [1], [1], [2], [0, 0, 0, 1, 1, 2], [0], [0]>} : vector<8x8x8xf32>, vector<8x8x8xf32>, vector<8x8x8xf32> -> vector<8x8x8xf32>
    "tpu.trace_stop"() : () -> ()
    %217 = vector.shape_cast %216 : vector<8x8x8xf32> to vector<4x16x8xf32>
    %218 = vector.extract_strided_slice %217 {offsets = [0, 0, 0], sizes = [1, 16, 8], strides = [1, 1, 1]} : vector<4x16x8xf32> to vector<1x16x8xf32>
    %219 = vector.shape_cast %218 : vector<1x16x8xf32> to vector<16x8xf32>
    %c0_66 = arith.constant 0 : index
    %c0_67 = arith.constant 0 : index
    %220 = vector.load %arg4[%c0_66, %c0_67] : memref<16x32xf32, #tpu.memory_space<vmem>>, vector<16x8xf32>
    tpu.vector_store %arg4[%c0_66, %c0_67], %219 {strides = array<i32>} : memref<16x32xf32, #tpu.memory_space<vmem>>, vector<16x8xf32>,
    %221 = vector.extract_strided_slice %217 {offsets = [1, 0, 0], sizes = [1, 16, 8], strides = [1, 1, 1]} : vector<4x16x8xf32> to vector<1x16x8xf32>
    %222 = vector.shape_cast %221 : vector<1x16x8xf32> to vector<16x8xf32>
    %c0_68 = arith.constant 0 : index
    %c8_69 = arith.constant 8 : index
    %223 = vector.load %arg4[%c0_68, %c8_69] : memref<16x32xf32, #tpu.memory_space<vmem>>, vector<16x8xf32>
    tpu.vector_store %arg4[%c0_68, %c8_69], %222 {strides = array<i32>} : memref<16x32xf32, #tpu.memory_space<vmem>>, vector<16x8xf32>,
    %224 = vector.extract_strided_slice %217 {offsets = [2, 0, 0], sizes = [1, 16, 8], strides = [1, 1, 1]} : vector<4x16x8xf32> to vector<1x16x8xf32>
    %225 = vector.shape_cast %224 : vector<1x16x8xf32> to vector<16x8xf32>
    %c0_70 = arith.constant 0 : index
    %c16_71 = arith.constant 16 : index
    %226 = vector.load %arg4[%c0_70, %c16_71] : memref<16x32xf32, #tpu.memory_space<vmem>>, vector<16x8xf32>
    tpu.vector_store %arg4[%c0_70, %c16_71], %225 {strides = array<i32>} : memref<16x32xf32, #tpu.memory_space<vmem>>, vector<16x8xf32>,
    %227 = vector.extract_strided_slice %217 {offsets = [3, 0, 0], sizes = [1, 16, 8], strides = [1, 1, 1]} : vector<4x16x8xf32> to vector<1x16x8xf32>
    %228 = vector.shape_cast %227 : vector<1x16x8xf32> to vector<16x8xf32>
    %c0_72 = arith.constant 0 : index
    %c24_73 = arith.constant 24 : index
    %229 = vector.load %arg4[%c0_72, %c24_73] : memref<16x32xf32, #tpu.memory_space<vmem>>, vector<16x8xf32>
    tpu.vector_store %arg4[%c0_72, %c24_73], %228 {strides = array<i32>} : memref<16x32xf32, #tpu.memory_space<vmem>>, vector<16x8xf32>,
    %c0_74 = arith.constant 0 : index
    %c0_75 = arith.constant 0 : index
    %230 = vector.load %arg4[%c0_74, %c0_75] : memref<16x32xf32, #tpu.memory_space<vmem>>, vector<16x32xf32>
    %cst_76 = arith.constant dense<0.000000e+00> : vector<16x32xf32>
    %231 = tpu.matmul %230, %141, %cst_76 {dimension_numbers = #tpu.dot_dimension_numbers<[1], [0], [0], [1], [0, 0, 1, 1], [], []>} : vector<16x32xf32>, vector<32x32xf32>, vector<16x32xf32> -> vector<16x32xf32>
    %232 = vector.broadcast %142 : vector<1x32xf32> to vector<16x32xf32>
    %233 = arith.addf %231, %232 : vector<16x32xf32>
    %234 = arith.addf %233, %136 : vector<16x32xf32>
    %cst_77 = arith.constant dense<0.000000e+00> : vector<16xf32>
    %235 = vector.multi_reduction <add>, %234, %cst_77 [1] : vector<16x32xf32> to vector<16xf32>
    %236 = vector.shape_cast %235 : vector<16xf32> to vector<16x1xf32>
    %cst_78 = arith.constant 3.200000e+01 : f32
    %237 = vector.broadcast %cst_78 : f32 to vector<16x1xf32>
    %238 = arith.divf %236, %237 : vector<16x1xf32>
    %239 = vector.broadcast %238 : vector<16x1xf32> to vector<16x32xf32>
    %240 = arith.subf %234, %239 : vector<16x32xf32>
    %241 = arith.mulf %240, %240 : vector<16x32xf32>
    %cst_79 = arith.constant dense<0.000000e+00> : vector<16xf32>
    %242 = vector.multi_reduction <add>, %241, %cst_79 [1] : vector<16x32xf32> to vector<16xf32>
    %243 = vector.shape_cast %242 : vector<16xf32> to vector<16x1xf32>
    %cst_80 = arith.constant 3.200000e+01 : f32
    %244 = vector.broadcast %cst_80 : f32 to vector<16x1xf32>
    %245 = arith.divf %243, %244 : vector<16x1xf32>
    %246 = vector.broadcast %238 : vector<16x1xf32> to vector<16x32xf32>
    %247 = arith.subf %234, %246 : vector<16x32xf32>
    %cst_81 = arith.constant 9.99999997E-7 : f32
    %248 = vector.broadcast %cst_81 : f32 to vector<16x1xf32>
    %249 = arith.addf %245, %248 : vector<16x1xf32>
    %250 = math.rsqrt %249 : vector<16x1xf32>
    %251 = vector.broadcast %250 : vector<16x1xf32> to vector<16x32xf32>
    %252 = arith.mulf %247, %251 : vector<16x32xf32>
    %253 = vector.broadcast %143 : vector<1x32xf32> to vector<16x32xf32>
    %254 = arith.mulf %252, %253 : vector<16x32xf32>
    %255 = vector.broadcast %144 : vector<1x32xf32> to vector<16x32xf32>
    %256 = arith.addf %254, %255 : vector<16x32xf32>
    %cst_82 = arith.constant dense<0.000000e+00> : vector<16x64xf32>
    %257 = tpu.matmul %256, %145, %cst_82 {dimension_numbers = #tpu.dot_dimension_numbers<[1], [0], [0], [1], [0, 0, 1, 1], [], []>} : vector<16x32xf32>, vector<32x64xf32>, vector<16x64xf32> -> vector<16x64xf32>
    %258 = vector.broadcast %146 : vector<1x64xf32> to vector<16x64xf32>
    %259 = arith.addf %257, %258 : vector<16x64xf32>
    %cst_83 = arith.constant 0.000000e+00 : f32
    %260 = vector.broadcast %cst_83 : f32 to vector<16x64xf32>
    %261 = arith.maximumf %259, %260 : vector<16x64xf32>
    %cst_84 = arith.constant dense<0.000000e+00> : vector<16x32xf32>
    %262 = tpu.matmul %261, %147, %cst_84 {dimension_numbers = #tpu.dot_dimension_numbers<[1], [0], [0], [1], [0, 0, 1, 1], [], []>} : vector<16x64xf32>, vector<64x32xf32>, vector<16x32xf32> -> vector<16x32xf32>
    %263 = vector.broadcast %148 : vector<1x32xf32> to vector<16x32xf32>
    %264 = arith.addf %262, %263 : vector<16x32xf32>
    %265 = arith.addf %264, %234 : vector<16x32xf32>
    %c336 = arith.constant 336 : index
    %c0_85 = arith.constant 0 : index
    %266 = vector.load %arg2[%c336, %c0_85] : memref<346x96xf32, #tpu.memory_space<vmem>>, vector<1x32xf32>
    %c337 = arith.constant 337 : index
    %c0_86 = arith.constant 0 : index
    %267 = vector.load %arg2[%c337, %c0_86] : memref<346x96xf32, #tpu.memory_space<vmem>>, vector<1x32xf32>
    %cst_87 = arith.constant dense<0.000000e+00> : vector<16xf32>
    %268 = vector.multi_reduction <add>, %265, %cst_87 [1] : vector<16x32xf32> to vector<16xf32>
    %269 = vector.shape_cast %268 : vector<16xf32> to vector<16x1xf32>
    %cst_88 = arith.constant 3.200000e+01 : f32
    %270 = vector.broadcast %cst_88 : f32 to vector<16x1xf32>
    %271 = arith.divf %269, %270 : vector<16x1xf32>
    %272 = vector.broadcast %271 : vector<16x1xf32> to vector<16x32xf32>
    %273 = arith.subf %265, %272 : vector<16x32xf32>
    %274 = arith.mulf %273, %273 : vector<16x32xf32>
    %cst_89 = arith.constant dense<0.000000e+00> : vector<16xf32>
    %275 = vector.multi_reduction <add>, %274, %cst_89 [1] : vector<16x32xf32> to vector<16xf32>
    %276 = vector.shape_cast %275 : vector<16xf32> to vector<16x1xf32>
    %cst_90 = arith.constant 3.200000e+01 : f32
    %277 = vector.broadcast %cst_90 : f32 to vector<16x1xf32>
    %278 = arith.divf %276, %277 : vector<16x1xf32>
    %279 = vector.broadcast %271 : vector<16x1xf32> to vector<16x32xf32>
    %280 = arith.subf %265, %279 : vector<16x32xf32>
    %cst_91 = arith.constant 9.99999997E-7 : f32
    %281 = vector.broadcast %cst_91 : f32 to vector<16x1xf32>
    %282 = arith.addf %278, %281 : vector<16x1xf32>
    %283 = math.rsqrt %282 : vector<16x1xf32>
    %284 = vector.broadcast %283 : vector<16x1xf32> to vector<16x32xf32>
    %285 = arith.mulf %280, %284 : vector<16x32xf32>
    %286 = vector.broadcast %266 : vector<1x32xf32> to vector<16x32xf32>
    %287 = arith.mulf %285, %286 : vector<16x32xf32>
    %288 = vector.broadcast %267 : vector<1x32xf32> to vector<16x32xf32>
    %289 = arith.addf %287, %288 : vector<16x32xf32>
    %c0_92 = arith.constant 0 : index
    %c0_93 = arith.constant 0 : index
    %290 = vector.load %arg3[%c0_92, %c0_93] : memref<16x32xf32, #tpu.memory_space<vmem>>, vector<16x32xf32>
    tpu.vector_store %arg3[%c0_92, %c0_93], %289 {strides = array<i32>} : memref<16x32xf32, #tpu.memory_space<vmem>>, vector<16x32xf32>,
    return
  }
}

</mosaic_0001>

<llo_original>
// kernel: transformer_encoder_forward.1
$region0: #{transformer_encoder_forward.1}
  #allocation0 [shape = 'u32[]', space=smem, size = 0x4, offset = 0x4, fixed_abs, tag = 'smem constant byte address 0x4 - core index']
  #allocation1 [shape = 'u32[144,128]{1,0:T(1,128)}', space=vmem, size = 0x12000, scoped, tag = 'internal scratch']
  #allocation2 [shape = 'f32[16,32]{1,0:T(8,128)}', space=vmem, size = 0x2000, scoped, tag = 'scratch operand']
  %s0 = inlined_call_operand.vmem [shape: f32[2,8,32], index: 0, kind: input, shape index: {}]
  %s1 = inlined_call_operand.vmem [shape: f32[2,8,8], index: 1, kind: input, shape index: {}]
  %s2 = inlined_call_operand.vmem [shape: f32[346,96], index: 2, kind: input, shape index: {}]
  %s3 = inlined_call_operand.hbm [shape: f32[16,32], index: 3, kind: output, shape index: {}]
  %s4 = sld [smem:[#allocation0]]
  $region22: #{transformer_encoder_forward.1} parent=0
    _
  %s6 = ssub.s32 1, %s4
  %s7 = scalar_select 0, %s6, %s4
  $region1: #{transformer_encoder_forward.1} parent=0
    #allocation3 [shape = 'u8[8192]{0}', space=vmem, size = 0x2000, scoped, tag = 'output window, operand 0, single buffered']
    #allocation4 [shape = 's32[1]{0}', space=sflag, size = 0x4, scoped, tag = 'scoped memory for transformer_encoder_forward.1']
    %8 = vsyncpa [#allocation4], 0
    // Predicated region
    $region2: #{transformer_encoder_forward.1} parent=1 // pred_check
      _
    $region3: #{transformer_encoder_forward.1} parent=1 // pred_check_branch
      %10 = sbr.rel (0) target = $region5
    $region4: #{transformer_encoder_forward.1} parent=1 // pred_region
      _
    $region5: #{transformer_encoder_forward.1} parent=1 // pred_fallthru
      _
    // Predicated region
    $region6: #{transformer_encoder_forward.1} parent=1 // pred_check
      _
    $region7: #{transformer_encoder_forward.1} parent=1 // pred_check_branch
      %12 = sbr.rel (0) target = $region9
    $region8: #{transformer_encoder_forward.1} parent=1 // pred_region
      _
    $region9: #{transformer_encoder_forward.1} parent=1 // pred_fallthru
      _
    // Predicated region
    $region10: #{transformer_encoder_forward.1} parent=1 // pred_check
      _
    $region11: #{transformer_encoder_forward.1} parent=1 // pred_check_branch
      %14 = sbr.rel (0) target = $region13
    $region12: #{transformer_encoder_forward.1} parent=1 // pred_region
      _
    $region13: #{transformer_encoder_forward.1} parent=1 // pred_fallthru
      _
    %v15 = vld [vmem:[%s2 + $0x152] sm:$0xff]
    %v16 = vld [vmem:[%s0] sm:$0xff]
    %v17 = vld [vmem:[%s0 + $0x8] sm:$0xff]
    %v18 = vadd.f32 %v16, %v15
    %v19 = vadd.f32 %v17, %v15
    %v20 = vld [vmem:[%s1] sm:$0xff]
    %v21 = vld [vmem:[%s1 + $0x8] sm:$0xff]
    %v22 = vld [vmem:[%s2] sm:$0x1]
    %v23 = vld [vmem:[%s2 + $0x1] sm:$0x1]
    %v24 = vld [vmem:[%s2 + $0x3] sm:$0xff]
    %v25 = vld [vmem:[%s2 + $0xb] sm:$0xff]
    %v26 = vld [vmem:[%s2 + $0x13] sm:$0xff]
    %v27 = vld [vmem:[%s2 + $0x1b] sm:$0xff]
    %v28 = vld [vmem:[%s2 + $0x2] sm:$0x1]
    %v29 = vld [vmem:[%s2 + $0x23] sm:$0xff]
    %v30 = vld [vmem:[%s2 + $0x2b] sm:$0xff]
    %v31 = vld [vmem:[%s2 + $0x33] sm:$0xff]
    %v32 = vld [vmem:[%s2 + $0x3b] sm:$0xff]
    %v33 = vld [vmem:[%s2 + $0x43] sm:$0x1]
    %v34 = vld [vmem:[%s2 + $0x44] sm:$0x1]
    %v35 = vld [vmem:[%s2 + $0x45] sm:$0x1]
    %v36 = vld [vmem:[%s2 + $0x46] sm:$0xff]
    %v37 = vld [vmem:[%s2 + $0x4e] sm:$0xff]
    %v38 = vld [vmem:[%s2 + $0x56] sm:$0xff]
    %v39 = vld [vmem:[%s2 + $0x5e] sm:$0xff]
    %v40 = vld [vmem:[%s2 + $0x66] sm:$0x1]
    %v41 = vld [vmem:[%s2 + $0x67] sm:$0xff]
    %v42 = vld [vmem:[%s2 + $0x6f] sm:$0xff]
    %v43 = vld [vmem:[%s2 + $0x77] sm:$0xff]
    %v44 = vld [vmem:[%s2 + $0x7f] sm:$0xff]
    %v45 = vld [vmem:[%s2 + $0x87] sm:$0xff]
    %v46 = vld [vmem:[%s2 + $0x8f] sm:$0xff]
    %v47 = vld [vmem:[%s2 + $0x97] sm:$0xff]
    %v48 = vld [vmem:[%s2 + $0x9f] sm:$0xff]
    %v49 = vld [vmem:[%s2 + $0xa7] sm:$0x1]
    %vm50 = vcmask 261120
    %v51 = vsel %vm50, %v18, 0.0
    %52 = vadd.xlane.f32.xlu0 %v51
    %v53 = vpop.xlane.xlu0 %52
    %v54 = vsel %vm50, %v19, 0.0
    %55 = vadd.xlane.f32.xlu0 %v54
    %v56 = vpop.xlane.xlu0 %55
    %v57 = vrcp.pop 32.0
    %v58 = vmul.f32 %v53, %v57
    %v59 = vmul.f32 %v56, %v57
    %v60 = vsub.f32 %v18, %v58
    %v61 = vsub.f32 %v19, %v59
    %v62 = vmul.f32 %v60, %v60
    %v63 = vmul.f32 %v61, %v61
    %v64 = vsel %vm50, %v62, 0.0
    %65 = vadd.xlane.f32.xlu0 %v64
    %v66 = vpop.xlane.xlu0 %65
    %v67 = vsel %vm50, %v63, 0.0
    %68 = vadd.xlane.f32.xlu0 %v67
    %v69 = vpop.xlane.xlu0 %68
    %v70 = vmul.f32 %v66, %v57
    %v71 = vmul.f32 %v69, %v57
    %v72 = vadd.f32 %v70, 1e-06
    %v73 = vadd.f32 %v71, 1e-06
    %v74 = vrsqrt.pop %v72
    %v75 = vrsqrt.pop %v73
    %v76 = vmul.f32 %v60, %v74
    %v77 = vmul.f32 %v61, %v75
    %v78 = vlaneseq
    %v79 = vshrl.u32 %v78, 7
    %v80 = vsub.s32 0, %v79
    %v81 = vrot.slane %v22, %v80
    %v82 = vmul.f32 %v76, %v81
    %v83 = vmul.f32 %v77, %v81
    %v84 = vlaneseq
    %v85 = vshrl.u32 %v84, 7
    %v86 = vsub.s32 0, %v85
    %v87 = vrot.slane %v23, %v86
    %v88 = vadd.f32 %v82, %v87
    %v89 = vadd.f32 %v83, %v87
    %v90 = vlaneseq
    %v91 = vshrl.u32 %v90, 7
    %v92 = vsub.s32 0, %v91
    %v93 = vrot.slane %v28, %v92
    %v95 = vsel %vm50, %v88, 0
    %v98 = vsel %vm50, %v89, 0
    %100 = vmatprep.subr.mxu0 0.0
    %101 = vmatpush1.msra.mxu0 %v24
    %102 = vmatprep.subr.mxu0 0.0
    %103 = vmatpush1.msra.mxu0 %v25
    %104 = vmatprep.subr.mxu0 0.0
    %105 = vmatpush1.msra.mxu0 %v26
    %106 = vmatprep.subr.mxu0 0.0
    %107 = vmatpush1.msra.mxu0 %v27
    %108 = vmatprep.subr.mxu0 0.0
    %109 = vmatpush1.msra.mxu0 0.0
    %110 = vmatprep.subr.mxu0 0.0
    %111 = vmatpush1.msra.mxu0 0.0
    %112 = vmatprep.subr.mxu0 0.0
    %113 = vmatpush1.msra.mxu0 0.0
    %114 = vmatprep.subr.mxu0 0.0
    %115 = vmatpush1.msra.mxu0 0.0
    %116 = vmatprep.subr.mxu0 0.0
    %117 = vmatpush1.msra.mxu0 0.0
    %118 = vmatprep.subr.mxu0 0.0
    %119 = vmatpush1.msra.mxu0 0.0
    %120 = vmatprep.subr.mxu0 0.0
    %121 = vmatpush1.msra.mxu0 0.0
    %122 = vmatprep.subr.mxu0 0.0
    %123 = vmatpush1.msra.mxu0 0.0
    %124 = vmatprep.subr.mxu0 0.0
    %125 = vmatpush1.msra.mxu0 0.0
    %126 = vmatprep.subr.mxu0 0.0
    %127 = vmatpush1.msra.mxu0 0.0
    %128 = vmatprep.subr.mxu0 0.0
    %129 = vmatpush1.msra.mxu0 0.0
    %130 = vmatprep.subr.mxu0 0.0
    %131 = vmatpush1.msra.mxu0 0.0
    %132 = vmatprep.subr.mxu0 0.0
    %133 = vmatpush1.msra.mxu0 0.0
    %134 = vmatprep.subr.mxu0 0.0
    %135 = vmatpush1.msra.mxu0 0.0
    %136 = vmatprep.subr.mxu0 0.0
    %137 = vmatpush1.msra.mxu0 0.0
    %138 = vmatprep.subr.mxu0 0.0
    %139 = vmatpush1.msra.mxu0 0.0
    %140 = vmatprep.subr.mxu0 0.0
    %141 = vmatpush1.msra.mxu0 0.0
    %142 = vmatprep.subr.mxu0 0.0
    %143 = vmatpush1.msra.mxu0 0.0
    %144 = vmatprep.subr.mxu0 0.0
    %145 = vmatpush1.msra.mxu0 0.0
    %146 = vmatprep.subr.mxu0 0.0
    %147 = vmatpush1.msra.mxu0 0.0
    %148 = vmatprep.subr.mxu0 0.0
    %149 = vmatpush1.msra.mxu0 0.0
    %150 = vmatprep.subr.mxu0 0.0
    %151 = vmatpush1.msra.mxu0 0.0
    %152 = vmatprep.subr.mxu0 0.0
    %153 = vmatpush1.msra.mxu0 0.0
    %154 = vmatprep.subr.mxu0 0.0
    %155 = vmatpush1.msra.mxu0 0.0
    %156 = vmatprep.subr.mxu0 0.0
    %157 = vmatpush1.msra.mxu0 0.0
    %158 = vmatprep.subr.mxu0 0.0
    %159 = vmatpush1.msra.mxu0 0.0
    %160 = vmatprep.subr.mxu0 0.0
    %161 = vmatpush1.msra.mxu0 0.0
    %162 = vmatprep.subr.mxu0 0.0
    %163 = vmatpush1.msra.mxu0 0.0
    %164 = vmatprep.mubr.f32.mxu0 0.0
    %165 = vmatmul.mubr.f32.gmra.mrb[0].mxu0 %v95
    %v166 = vpop.f32.mrb[0].mxu0
    %v167 = vadd.f32 %v93, %v166
    %v168 = vpop.f32.mrb[0].mxu0
    %169 = vmatprep.mubr.f32.mxu0 0.0
    %170 = vmatmul.mubr.f32.gmra.mrb[0].mxu0 %v98
    %v171 = vpop.f32.mrb[0].mxu0
    %v172 = vadd.f32 %v93, %v171
    %v173 = vpop.f32.mrb[0].mxu0
    %174 = vdwg.mxu0
    %177 = vrot.lane.b32.xlu0 %v167, 120
    %v178 = vpop.permute.xlu0 %177
    %179 = vrot.lane.b32.xlu0 %v172, 120
    %v180 = vpop.permute.xlu0 %179
    %181 = vrot.lane.b32.xlu0 %v167, 112
    %v182 = vpop.permute.xlu0 %181
    %183 = vrot.lane.b32.xlu0 %v172, 112
    %v184 = vpop.permute.xlu0 %183
    %185 = vrot.lane.b32.xlu0 %v167, 104
    %v186 = vpop.permute.xlu0 %185
    %187 = vrot.lane.b32.xlu0 %v172, 104
    %v188 = vpop.permute.xlu0 %187
    %189 = vrot.lane.b32.xlu0 %v167, 96
    %v190 = vpop.permute.xlu0 %189
    %vm191 = vcmask 64512
    %v192 = vsel %vm191, %v167, 0
    %v194 = vsel %vm191, %v190, 0
    %196 = vmatprep.subr.mxu0 0.0
    %197 = vmatpush1.xpose.msra.mxu0 %v194
    %198 = vmatprep.subr.mxu0 0.0
    %199 = vmatpush1.xpose.msra.mxu0 0.0
    %200 = vmatprep.subr.mxu0 0.0
    %201 = vmatpush1.xpose.msra.mxu0 0.0
    %202 = vmatprep.subr.mxu0 0.0
    %203 = vmatpush1.xpose.msra.mxu0 0.0
    %204 = vmatprep.subr.mxu0 0.0
    %205 = vmatpush1.xpose.msra.mxu0 0.0
    %206 = vmatprep.subr.mxu0 0.0
    %207 = vmatpush1.xpose.msra.mxu0 0.0
    %208 = vmatprep.subr.mxu0 0.0
    %209 = vmatpush1.xpose.msra.mxu0 0.0
    %210 = vmatprep.subr.mxu0 0.0
    %211 = vmatpush1.xpose.msra.mxu0 0.0
    %212 = vmatprep.subr.mxu0 0.0
    %213 = vmatpush1.xpose.msra.mxu0 0.0
    %214 = vmatprep.subr.mxu0 0.0
    %215 = vmatpush1.xpose.msra.mxu0 0.0
    %216 = vmatprep.subr.mxu0 0.0
    %217 = vmatpush1.xpose.msra.mxu0 0.0
    %218 = vmatprep.subr.mxu0 0.0
    %219 = vmatpush1.xpose.msra.mxu0 0.0
    %220 = vmatprep.subr.mxu0 0.0
    %221 = vmatpush1.xpose.msra.mxu0 0.0
    %222 = vmatprep.subr.mxu0 0.0
    %223 = vmatpush1.xpose.msra.mxu0 0.0
    %224 = vmatprep.subr.mxu0 0.0
    %225 = vmatpush1.xpose.msra.mxu0 0.0
    %226 = vmatprep.subr.mxu0 0.0
    %227 = vmatpush1.xpose.msra.mxu0 0.0
    %228 = vmatprep.subr.mxu0 0.0
    %229 = vmatpush1.xpose.msra.mxu0 0.0
    %230 = vmatprep.subr.mxu0 0.0
    %231 = vmatpush1.xpose.msra.mxu0 0.0
    %232 = vmatprep.subr.mxu0 0.0
    %233 = vmatpush1.xpose.msra.mxu0 0.0
    %234 = vmatprep.subr.mxu0 0.0
    %235 = vmatpush1.xpose.msra.mxu0 0.0
    %236 = vmatprep.subr.mxu0 0.0
    %237 = vmatpush1.xpose.msra.mxu0 0.0
    %238 = vmatprep.subr.mxu0 0.0
    %239 = vmatpush1.xpose.msra.mxu0 0.0
    %240 = vmatprep.subr.mxu0 0.0
    %241 = vmatpush1.xpose.msra.mxu0 0.0
    %242 = vmatprep.subr.mxu0 0.0
    %243 = vmatpush1.xpose.msra.mxu0 0.0
    %244 = vmatprep.subr.mxu0 0.0
    %245 = vmatpush1.xpose.msra.mxu0 0.0
    %246 = vmatprep.subr.mxu0 0.0
    %247 = vmatpush1.xpose.msra.mxu0 0.0
    %248 = vmatprep.subr.mxu0 0.0
    %249 = vmatpush1.xpose.msra.mxu0 0.0
    %250 = vmatprep.subr.mxu0 0.0
    %251 = vmatpush1.xpose.msra.mxu0 0.0
    %252 = vmatprep.subr.mxu0 0.0
    %253 = vmatpush1.xpose.msra.mxu0 0.0
    %254 = vmatprep.subr.mxu0 0.0
    %255 = vmatpush1.xpose.msra.mxu0 0.0
    %256 = vmatprep.subr.mxu0 0.0
    %257 = vmatpush1.xpose.msra.mxu0 0.0
    %258 = vmatprep.subr.mxu0 0.0
    %259 = vmatpush1.xpose.msra.mxu0 0.0
    %260 = vmatprep.mubr.f32.mxu0 0.0
    %261 = vmatmul.mubr.f32.gmra.mrb[0].mxu0 %v192
    %v262 = vpop.f32.mrb[0].mxu0
    %v263 = vadd.f32 %v20, %v262
    %v264 = vpop.f32.mrb[0].mxu0
    %265 = vdwg.mxu0
    %266 = vrot.lane.b32.xlu0 %v172, 96
    %v267 = vpop.permute.xlu0 %266
    %v268 = vsel %vm191, %v172, 0
    %v270 = vsel %vm191, %v267, 0
    %272 = vmatprep.subr.mxu0 0.0
    %273 = vmatpush1.xpose.msra.mxu0 %v270
    %274 = vmatprep.subr.mxu0 0.0
    %275 = vmatpush1.xpose.msra.mxu0 0.0
    %276 = vmatprep.subr.mxu0 0.0
    %277 = vmatpush1.xpose.msra.mxu0 0.0
    %278 = vmatprep.subr.mxu0 0.0
    %279 = vmatpush1.xpose.msra.mxu0 0.0
    %280 = vmatprep.subr.mxu0 0.0
    %281 = vmatpush1.xpose.msra.mxu0 0.0
    %282 = vmatprep.subr.mxu0 0.0
    %283 = vmatpush1.xpose.msra.mxu0 0.0
    %284 = vmatprep.subr.mxu0 0.0
    %285 = vmatpush1.xpose.msra.mxu0 0.0
    %286 = vmatprep.subr.mxu0 0.0
    %287 = vmatpush1.xpose.msra.mxu0 0.0
    %288 = vmatprep.subr.mxu0 0.0
    %289 = vmatpush1.xpose.msra.mxu0 0.0
    %290 = vmatprep.subr.mxu0 0.0
    %291 = vmatpush1.xpose.msra.mxu0 0.0
    %292 = vmatprep.subr.mxu0 0.0
    %293 = vmatpush1.xpose.msra.mxu0 0.0
    %294 = vmatprep.subr.mxu0 0.0
    %295 = vmatpush1.xpose.msra.mxu0 0.0
    %296 = vmatprep.subr.mxu0 0.0
    %297 = vmatpush1.xpose.msra.mxu0 0.0
    %298 = vmatprep.subr.mxu0 0.0
    %299 = vmatpush1.xpose.msra.mxu0 0.0
    %300 = vmatprep.subr.mxu0 0.0
    %301 = vmatpush1.xpose.msra.mxu0 0.0
    %302 = vmatprep.subr.mxu0 0.0
    %303 = vmatpush1.xpose.msra.mxu0 0.0
    %304 = vmatprep.subr.mxu0 0.0
    %305 = vmatpush1.xpose.msra.mxu0 0.0
    %306 = vmatprep.subr.mxu0 0.0
    %307 = vmatpush1.xpose.msra.mxu0 0.0
    %308 = vmatprep.subr.mxu0 0.0
    %309 = vmatpush1.xpose.msra.mxu0 0.0
    %310 = vmatprep.subr.mxu0 0.0
    %311 = vmatpush1.xpose.msra.mxu0 0.0
    %312 = vmatprep.subr.mxu0 0.0
    %313 = vmatpush1.xpose.msra.mxu0 0.0
    %314 = vmatprep.subr.mxu0 0.0
    %315 = vmatpush1.xpose.msra.mxu0 0.0
    %316 = vmatprep.subr.mxu0 0.0
    %317 = vmatpush1.xpose.msra.mxu0 0.0
    %318 = vmatprep.subr.mxu0 0.0
    %319 = vmatpush1.xpose.msra.mxu0 0.0
    %320 = vmatprep.subr.mxu0 0.0
    %321 = vmatpush1.xpose.msra.mxu0 0.0
    %322 = vmatprep.subr.mxu0 0.0
    %323 = vmatpush1.xpose.msra.mxu0 0.0
    %324 = vmatprep.subr.mxu0 0.0
    %325 = vmatpush1.xpose.msra.mxu0 0.0
    %326 = vmatprep.subr.mxu0 0.0
    %327 = vmatpush1.xpose.msra.mxu0 0.0
    %328 = vmatprep.subr.mxu0 0.0
    %329 = vmatpush1.xpose.msra.mxu0 0.0
    %330 = vmatprep.subr.mxu0 0.0
    %331 = vmatpush1.xpose.msra.mxu0 0.0
    %332 = vmatprep.subr.mxu0 0.0
    %333 = vmatpush1.xpose.msra.mxu0 0.0
    %334 = vmatprep.subr.mxu0 0.0
    %335 = vmatpush1.xpose.msra.mxu0 0.0
    %336 = vmatprep.mubr.f32.mxu0 0.0
    %337 = vmatmul.mubr.f32.gmra.mrb[0].mxu0 %v268
    %v338 = vpop.f32.mrb[0].mxu0
    %v339 = vadd.f32 %v21, %v338
    %v340 = vpop.f32.mrb[0].mxu0
    %341 = vdwg.mxu0
    %342 = vrot.lane.b32.xlu0 %v178, 96
    %v343 = vpop.permute.xlu0 %342
    %v344 = vsel %vm191, %v178, 0
    %v346 = vsel %vm191, %v343, 0
    %348 = vmatprep.subr.mxu0 0.0
    %349 = vmatpush1.xpose.msra.mxu0 %v346
    %350 = vmatprep.subr.mxu0 0.0
    %351 = vmatpush1.xpose.msra.mxu0 0.0
    %352 = vmatprep.subr.mxu0 0.0
    %353 = vmatpush1.xpose.msra.mxu0 0.0
    %354 = vmatprep.subr.mxu0 0.0
    %355 = vmatpush1.xpose.msra.mxu0 0.0
    %356 = vmatprep.subr.mxu0 0.0
    %357 = vmatpush1.xpose.msra.mxu0 0.0
    %358 = vmatprep.subr.mxu0 0.0
    %359 = vmatpush1.xpose.msra.mxu0 0.0
    %360 = vmatprep.subr.mxu0 0.0
    %361 = vmatpush1.xpose.msra.mxu0 0.0
    %362 = vmatprep.subr.mxu0 0.0
    %363 = vmatpush1.xpose.msra.mxu0 0.0
    %364 = vmatprep.subr.mxu0 0.0
    %365 = vmatpush1.xpose.msra.mxu0 0.0
    %366 = vmatprep.subr.mxu0 0.0
    %367 = vmatpush1.xpose.msra.mxu0 0.0
    %368 = vmatprep.subr.mxu0 0.0
    %369 = vmatpush1.xpose.msra.mxu0 0.0
    %370 = vmatprep.subr.mxu0 0.0
    %371 = vmatpush1.xpose.msra.mxu0 0.0
    %372 = vmatprep.subr.mxu0 0.0
    %373 = vmatpush1.xpose.msra.mxu0 0.0
    %374 = vmatprep.subr.mxu0 0.0
    %375 = vmatpush1.xpose.msra.mxu0 0.0
    %376 = vmatprep.subr.mxu0 0.0
    %377 = vmatpush1.xpose.msra.mxu0 0.0
    %378 = vmatprep.subr.mxu0 0.0
    %379 = vmatpush1.xpose.msra.mxu0 0.0
    %380 = vmatprep.subr.mxu0 0.0
    %381 = vmatpush1.xpose.msra.mxu0 0.0
    %382 = vmatprep.subr.mxu0 0.0
    %383 = vmatpush1.xpose.msra.mxu0 0.0
    %384 = vmatprep.subr.mxu0 0.0
    %385 = vmatpush1.xpose.msra.mxu0 0.0
    %386 = vmatprep.subr.mxu0 0.0
    %387 = vmatpush1.xpose.msra.mxu0 0.0
    %388 = vmatprep.subr.mxu0 0.0
    %389 = vmatpush1.xpose.msra.mxu0 0.0
    %390 = vmatprep.subr.mxu0 0.0
    %391 = vmatpush1.xpose.msra.mxu0 0.0
    %392 = vmatprep.subr.mxu0 0.0
    %393 = vmatpush1.xpose.msra.mxu0 0.0
    %394 = vmatprep.subr.mxu0 0.0
    %395 = vmatpush1.xpose.msra.mxu0 0.0
    %396 = vmatprep.subr.mxu0 0.0
    %397 = vmatpush1.xpose.msra.mxu0 0.0
    %398 = vmatprep.subr.mxu0 0.0
    %399 = vmatpush1.xpose.msra.mxu0 0.0
    %400 = vmatprep.subr.mxu0 0.0
    %401 = vmatpush1.xpose.msra.mxu0 0.0
    %402 = vmatprep.subr.mxu0 0.0
    %403 = vmatpush1.xpose.msra.mxu0 0.0
    %404 = vmatprep.subr.mxu0 0.0
    %405 = vmatpush1.xpose.msra.mxu0 0.0
    %406 = vmatprep.subr.mxu0 0.0
    %407 = vmatpush1.xpose.msra.mxu0 0.0
    %408 = vmatprep.subr.mxu0 0.0
    %409 = vmatpush1.xpose.msra.mxu0 0.0
    %410 = vmatprep.subr.mxu0 0.0
    %411 = vmatpush1.xpose.msra.mxu0 0.0
    %412 = vmatprep.mubr.f32.mxu0 0.0
    %413 = vmatmul.mubr.f32.gmra.mrb[0].mxu0 %v344
    %v414 = vpop.f32.mrb[0].mxu0
    %v415 = vadd.f32 %v20, %v414
    %v416 = vpop.f32.mrb[0].mxu0
    %417 = vdwg.mxu0
    %418 = vrot.lane.b32.xlu0 %v180, 96
    %v419 = vpop.permute.xlu0 %418
    %v420 = vsel %vm191, %v180, 0
    %v422 = vsel %vm191, %v419, 0
    %424 = vmatprep.subr.mxu0 0.0
    %425 = vmatpush1.xpose.msra.mxu0 %v422
    %426 = vmatprep.subr.mxu0 0.0
    %427 = vmatpush1.xpose.msra.mxu0 0.0
    %428 = vmatprep.subr.mxu0 0.0
    %429 = vmatpush1.xpose.msra.mxu0 0.0
    %430 = vmatprep.subr.mxu0 0.0
    %431 = vmatpush1.xpose.msra.mxu0 0.0
    %432 = vmatprep.subr.mxu0 0.0
    %433 = vmatpush1.xpose.msra.mxu0 0.0
    %434 = vmatprep.subr.mxu0 0.0
    %435 = vmatpush1.xpose.msra.mxu0 0.0
    %436 = vmatprep.subr.mxu0 0.0
    %437 = vmatpush1.xpose.msra.mxu0 0.0
    %438 = vmatprep.subr.mxu0 0.0
    %439 = vmatpush1.xpose.msra.mxu0 0.0
    %440 = vmatprep.subr.mxu0 0.0
    %441 = vmatpush1.xpose.msra.mxu0 0.0
    %442 = vmatprep.subr.mxu0 0.0
    %443 = vmatpush1.xpose.msra.mxu0 0.0
    %444 = vmatprep.subr.mxu0 0.0
    %445 = vmatpush1.xpose.msra.mxu0 0.0
    %446 = vmatprep.subr.mxu0 0.0
    %447 = vmatpush1.xpose.msra.mxu0 0.0
    %448 = vmatprep.subr.mxu0 0.0
    %449 = vmatpush1.xpose.msra.mxu0 0.0
    %450 = vmatprep.subr.mxu0 0.0
    %451 = vmatpush1.xpose.msra.mxu0 0.0
    %452 = vmatprep.subr.mxu0 0.0
    %453 = vmatpush1.xpose.msra.mxu0 0.0
    %454 = vmatprep.subr.mxu0 0.0
    %455 = vmatpush1.xpose.msra.mxu0 0.0
    %456 = vmatprep.subr.mxu0 0.0
    %457 = vmatpush1.xpose.msra.mxu0 0.0
    %458 = vmatprep.subr.mxu0 0.0
    %459 = vmatpush1.xpose.msra.mxu0 0.0
    %460 = vmatprep.subr.mxu0 0.0
    %461 = vmatpush1.xpose.msra.mxu0 0.0
    %462 = vmatprep.subr.mxu0 0.0
    %463 = vmatpush1.xpose.msra.mxu0 0.0
    %464 = vmatprep.subr.mxu0 0.0
    %465 = vmatpush1.xpose.msra.mxu0 0.0
    %466 = vmatprep.subr.mxu0 0.0
    %467 = vmatpush1.xpose.msra.mxu0 0.0
    %468 = vmatprep.subr.mxu0 0.0
    %469 = vmatpush1.xpose.msra.mxu0 0.0
    %470 = vmatprep.subr.mxu0 0.0
    %471 = vmatpush1.xpose.msra.mxu0 0.0
    %472 = vmatprep.subr.mxu0 0.0
    %473 = vmatpush1.xpose.msra.mxu0 0.0
    %474 = vmatprep.subr.mxu0 0.0
    %475 = vmatpush1.xpose.msra.mxu0 0.0
    %476 = vmatprep.subr.mxu0 0.0
    %477 = vmatpush1.xpose.msra.mxu0 0.0
    %478 = vmatprep.subr.mxu0 0.0
    %479 = vmatpush1.xpose.msra.mxu0 0.0
    %480 = vmatprep.subr.mxu0 0.0
    %481 = vmatpush1.xpose.msra.mxu0 0.0
    %482 = vmatprep.subr.mxu0 0.0
    %483 = vmatpush1.xpose.msra.mxu0 0.0
    %484 = vmatprep.subr.mxu0 0.0
    %485 = vmatpush1.xpose.msra.mxu0 0.0
    %486 = vmatprep.subr.mxu0 0.0
    %487 = vmatpush1.xpose.msra.mxu0 0.0
    %488 = vmatprep.mubr.f32.mxu0 0.0
    %489 = vmatmul.mubr.f32.gmra.mrb[0].mxu0 %v420
    %v490 = vpop.f32.mrb[0].mxu0
    %v491 = vadd.f32 %v21, %v490
    %v492 = vpop.f32.mrb[0].mxu0
    %493 = vdwg.mxu0
    %494 = vrot.lane.b32.xlu0 %v182, 96
    %v495 = vpop.permute.xlu0 %494
    %v496 = vsel %vm191, %v182, 0
    %v498 = vsel %vm191, %v495, 0
    %500 = vmatprep.subr.mxu0 0.0
    %501 = vmatpush1.xpose.msra.mxu0 %v498
    %502 = vmatprep.subr.mxu0 0.0
    %503 = vmatpush1.xpose.msra.mxu0 0.0
    %504 = vmatprep.subr.mxu0 0.0
    %505 = vmatpush1.xpose.msra.mxu0 0.0
    %506 = vmatprep.subr.mxu0 0.0
    %507 = vmatpush1.xpose.msra.mxu0 0.0
    %508 = vmatprep.subr.mxu0 0.0
    %509 = vmatpush1.xpose.msra.mxu0 0.0
    %510 = vmatprep.subr.mxu0 0.0
    %511 = vmatpush1.xpose.msra.mxu0 0.0
    %512 = vmatprep.subr.mxu0 0.0
    %513 = vmatpush1.xpose.msra.mxu0 0.0
    %514 = vmatprep.subr.mxu0 0.0
    %515 = vmatpush1.xpose.msra.mxu0 0.0
    %516 = vmatprep.subr.mxu0 0.0
    %517 = vmatpush1.xpose.msra.mxu0 0.0
    %518 = vmatprep.subr.mxu0 0.0
    %519 = vmatpush1.xpose.msra.mxu0 0.0
    %520 = vmatprep.subr.mxu0 0.0
    %521 = vmatpush1.xpose.msra.mxu0 0.0
    %522 = vmatprep.subr.mxu0 0.0
    %523 = vmatpush1.xpose.msra.mxu0 0.0
    %524 = vmatprep.subr.mxu0 0.0
    %525 = vmatpush1.xpose.msra.mxu0 0.0
    %526 = vmatprep.subr.mxu0 0.0
    %527 = vmatpush1.xpose.msra.mxu0 0.0
    %528 = vmatprep.subr.mxu0 0.0
    %529 = vmatpush1.xpose.msra.mxu0 0.0
    %530 = vmatprep.subr.mxu0 0.0
    %531 = vmatpush1.xpose.msra.mxu0 0.0
    %532 = vmatprep.subr.mxu0 0.0
    %533 = vmatpush1.xpose.msra.mxu0 0.0
    %534 = vmatprep.subr.mxu0 0.0
    %535 = vmatpush1.xpose.msra.mxu0 0.0
    %536 = vmatprep.subr.mxu0 0.0
    %537 = vmatpush1.xpose.msra.mxu0 0.0
    %538 = vmatprep.subr.mxu0 0.0
    %539 = vmatpush1.xpose.msra.mxu0 0.0
    %540 = vmatprep.subr.mxu0 0.0
    %541 = vmatpush1.xpose.msra.mxu0 0.0
    %542 = vmatprep.subr.mxu0 0.0
    %543 = vmatpush1.xpose.msra.mxu0 0.0
    %544 = vmatprep.subr.mxu0 0.0
    %545 = vmatpush1.xpose.msra.mxu0 0.0
    %546 = vmatprep.subr.mxu0 0.0
    %547 = vmatpush1.xpose.msra.mxu0 0.0
    %548 = vmatprep.subr.mxu0 0.0
    %549 = vmatpush1.xpose.msra.mxu0 0.0
    %550 = vmatprep.subr.mxu0 0.0
    %551 = vmatpush1.xpose.msra.mxu0 0.0
    %552 = vmatprep.subr.mxu0 0.0
    %553 = vmatpush1.xpose.msra.mxu0 0.0
    %554 = vmatprep.subr.mxu0 0.0
    %555 = vmatpush1.xpose.msra.mxu0 0.0
    %556 = vmatprep.subr.mxu0 0.0
    %557 = vmatpush1.xpose.msra.mxu0 0.0
    %558 = vmatprep.subr.mxu0 0.0
    %559 = vmatpush1.xpose.msra.mxu0 0.0
    %560 = vmatprep.subr.mxu0 0.0
    %561 = vmatpush1.xpose.msra.mxu0 0.0
    %562 = vmatprep.subr.mxu0 0.0
    %563 = vmatpush1.xpose.msra.mxu0 0.0
    %564 = vmatprep.mubr.f32.mxu0 0.0
    %565 = vmatmul.mubr.f32.gmra.mrb[0].mxu0 %v496
    %v566 = vpop.f32.mrb[0].mxu0
    %v567 = vadd.f32 %v20, %v566
    %v568 = vpop.f32.mrb[0].mxu0
    %569 = vdwg.mxu0
    %570 = vrot.lane.b32.xlu0 %v184, 96
    %v571 = vpop.permute.xlu0 %570
    %v572 = vsel %vm191, %v184, 0
    %v574 = vsel %vm191, %v571, 0
    %576 = vmatprep.subr.mxu0 0.0
    %577 = vmatpush1.xpose.msra.mxu0 %v574
    %578 = vmatprep.subr.mxu0 0.0
    %579 = vmatpush1.xpose.msra.mxu0 0.0
    %580 = vmatprep.subr.mxu0 0.0
    %581 = vmatpush1.xpose.msra.mxu0 0.0
    %582 = vmatprep.subr.mxu0 0.0
    %583 = vmatpush1.xpose.msra.mxu0 0.0
    %584 = vmatprep.subr.mxu0 0.0
    %585 = vmatpush1.xpose.msra.mxu0 0.0
    %586 = vmatprep.subr.mxu0 0.0
    %587 = vmatpush1.xpose.msra.mxu0 0.0
    %588 = vmatprep.subr.mxu0 0.0
    %589 = vmatpush1.xpose.msra.mxu0 0.0
    %590 = vmatprep.subr.mxu0 0.0
    %591 = vmatpush1.xpose.msra.mxu0 0.0
    %592 = vmatprep.subr.mxu0 0.0
    %593 = vmatpush1.xpose.msra.mxu0 0.0
    %594 = vmatprep.subr.mxu0 0.0
    %595 = vmatpush1.xpose.msra.mxu0 0.0
    %596 = vmatprep.subr.mxu0 0.0
    %597 = vmatpush1.xpose.msra.mxu0 0.0
    %598 = vmatprep.subr.mxu0 0.0
    %599 = vmatpush1.xpose.msra.mxu0 0.0
    %600 = vmatprep.subr.mxu0 0.0
    %601 = vmatpush1.xpose.msra.mxu0 0.0
    %602 = vmatprep.subr.mxu0 0.0
    %603 = vmatpush1.xpose.msra.mxu0 0.0
    %604 = vmatprep.subr.mxu0 0.0
    %605 = vmatpush1.xpose.msra.mxu0 0.0
    %606 = vmatprep.subr.mxu0 0.0
    %607 = vmatpush1.xpose.msra.mxu0 0.0
    %608 = vmatprep.subr.mxu0 0.0
    %609 = vmatpush1.xpose.msra.mxu0 0.0
    %610 = vmatprep.subr.mxu0 0.0
    %611 = vmatpush1.xpose.msra.mxu0 0.0
    %612 = vmatprep.subr.mxu0 0.0
    %613 = vmatpush1.xpose.msra.mxu0 0.0
    %614 = vmatprep.subr.mxu0 0.0
    %615 = vmatpush1.xpose.msra.mxu0 0.0
    %616 = vmatprep.subr.mxu0 0.0
    %617 = vmatpush1.xpose.msra.mxu0 0.0
    %618 = vmatprep.subr.mxu0 0.0
    %619 = vmatpush1.xpose.msra.mxu0 0.0
    %620 = vmatprep.subr.mxu0 0.0
    %621 = vmatpush1.xpose.msra.mxu0 0.0
    %622 = vmatprep.subr.mxu0 0.0
    %623 = vmatpush1.xpose.msra.mxu0 0.0
    %624 = vmatprep.subr.mxu0 0.0
    %625 = vmatpush1.xpose.msra.mxu0 0.0
    %626 = vmatprep.subr.mxu0 0.0
    %627 = vmatpush1.xpose.msra.mxu0 0.0
    %628 = vmatprep.subr.mxu0 0.0
    %629 = vmatpush1.xpose.msra.mxu0 0.0
    %630 = vmatprep.subr.mxu0 0.0
    %631 = vmatpush1.xpose.msra.mxu0 0.0
    %632 = vmatprep.subr.mxu0 0.0
    %633 = vmatpush1.xpose.msra.mxu0 0.0
    %634 = vmatprep.subr.mxu0 0.0
    %635 = vmatpush1.xpose.msra.mxu0 0.0
    %636 = vmatprep.subr.mxu0 0.0
    %637 = vmatpush1.xpose.msra.mxu0 0.0
    %638 = vmatprep.subr.mxu0 0.0
    %639 = vmatpush1.xpose.msra.mxu0 0.0
    %640 = vmatprep.mubr.f32.mxu0 0.0
    %641 = vmatmul.mubr.f32.gmra.mrb[0].mxu0 %v572
    %v642 = vpop.f32.mrb[0].mxu0
    %v643 = vadd.f32 %v21, %v642
    %v644 = vpop.f32.mrb[0].mxu0
    %645 = vdwg.mxu0
    %646 = vrot.lane.b32.xlu0 %v186, 96
    %v647 = vpop.permute.xlu0 %646
    %v648 = vsel %vm191, %v186, 0
    %v650 = vsel %vm191, %v647, 0
    %652 = vmatprep.subr.mxu0 0.0
    %653 = vmatpush1.xpose.msra.mxu0 %v650
    %654 = vmatprep.subr.mxu0 0.0
    %655 = vmatpush1.xpose.msra.mxu0 0.0
    %656 = vmatprep.subr.mxu0 0.0
    %657 = vmatpush1.xpose.msra.mxu0 0.0
    %658 = vmatprep.subr.mxu0 0.0
    %659 = vmatpush1.xpose.msra.mxu0 0.0
    %660 = vmatprep.subr.mxu0 0.0
    %661 = vmatpush1.xpose.msra.mxu0 0.0
    %662 = vmatprep.subr.mxu0 0.0
    %663 = vmatpush1.xpose.msra.mxu0 0.0
    %664 = vmatprep.subr.mxu0 0.0
    %665 = vmatpush1.xpose.msra.mxu0 0.0
    %666 = vmatprep.subr.mxu0 0.0
    %667 = vmatpush1.xpose.msra.mxu0 0.0
    %668 = vmatprep.subr.mxu0 0.0
    %669 = vmatpush1.xpose.msra.mxu0 0.0
    %670 = vmatprep.subr.mxu0 0.0
    %671 = vmatpush1.xpose.msra.mxu0 0.0
    %672 = vmatprep.subr.mxu0 0.0
    %673 = vmatpush1.xpose.msra.mxu0 0.0
    %674 = vmatprep.subr.mxu0 0.0
    %675 = vmatpush1.xpose.msra.mxu0 0.0
    %676 = vmatprep.subr.mxu0 0.0
    %677 = vmatpush1.xpose.msra.mxu0 0.0
    %678 = vmatprep.subr.mxu0 0.0
    %679 = vmatpush1.xpose.msra.mxu0 0.0
    %680 = vmatprep.subr.mxu0 0.0
    %681 = vmatpush1.xpose.msra.mxu0 0.0
    %682 = vmatprep.subr.mxu0 0.0
    %683 = vmatpush1.xpose.msra.mxu0 0.0
    %684 = vmatprep.subr.mxu0 0.0
    %685 = vmatpush1.xpose.msra.mxu0 0.0
    %686 = vmatprep.subr.mxu0 0.0
    %687 = vmatpush1.xpose.msra.mxu0 0.0
    %688 = vmatprep.subr.mxu0 0.0
    %689 = vmatpush1.xpose.msra.mxu0 0.0
    %690 = vmatprep.subr.mxu0 0.0
    %691 = vmatpush1.xpose.msra.mxu0 0.0
    %692 = vmatprep.subr.mxu0 0.0
    %693 = vmatpush1.xpose.msra.mxu0 0.0
    %694 = vmatprep.subr.mxu0 0.0
    %695 = vmatpush1.xpose.msra.mxu0 0.0
    %696 = vmatprep.subr.mxu0 0.0
    %697 = vmatpush1.xpose.msra.mxu0 0.0
    %698 = vmatprep.subr.mxu0 0.0
    %699 = vmatpush1.xpose.msra.mxu0 0.0
    %700 = vmatprep.subr.mxu0 0.0
    %701 = vmatpush1.xpose.msra.mxu0 0.0
    %702 = vmatprep.subr.mxu0 0.0
    %703 = vmatpush1.xpose.msra.mxu0 0.0
    %704 = vmatprep.subr.mxu0 0.0
    %705 = vmatpush1.xpose.msra.mxu0 0.0
    %706 = vmatprep.subr.mxu0 0.0
    %707 = vmatpush1.xpose.msra.mxu0 0.0
    %708 = vmatprep.subr.mxu0 0.0
    %709 = vmatpush1.xpose.msra.mxu0 0.0
    %710 = vmatprep.subr.mxu0 0.0
    %711 = vmatpush1.xpose.msra.mxu0 0.0
    %712 = vmatprep.subr.mxu0 0.0
    %713 = vmatpush1.xpose.msra.mxu0 0.0
    %714 = vmatprep.subr.mxu0 0.0
    %715 = vmatpush1.xpose.msra.mxu0 0.0
    %716 = vmatprep.mubr.f32.mxu0 0.0
    %717 = vmatmul.mubr.f32.gmra.mrb[0].mxu0 %v648
    %v718 = vpop.f32.mrb[0].mxu0
    %v719 = vadd.f32 %v20, %v718
    %v720 = vpop.f32.mrb[0].mxu0
    %721 = vdwg.mxu0
    %722 = vrot.lane.b32.xlu0 %v188, 96
    %v723 = vpop.permute.xlu0 %722
    %v724 = vsel %vm191, %v188, 0
    %v726 = vsel %vm191, %v723, 0
    %728 = vmatprep.subr.mxu0 0.0
    %729 = vmatpush1.xpose.msra.mxu0 %v726
    %730 = vmatprep.subr.mxu0 0.0
    %731 = vmatpush1.xpose.msra.mxu0 0.0
    %732 = vmatprep.subr.mxu0 0.0
    %733 = vmatpush1.xpose.msra.mxu0 0.0
    %734 = vmatprep.subr.mxu0 0.0
    %735 = vmatpush1.xpose.msra.mxu0 0.0
    %736 = vmatprep.subr.mxu0 0.0
    %737 = vmatpush1.xpose.msra.mxu0 0.0
    %738 = vmatprep.subr.mxu0 0.0
    %739 = vmatpush1.xpose.msra.mxu0 0.0
    %740 = vmatprep.subr.mxu0 0.0
    %741 = vmatpush1.xpose.msra.mxu0 0.0
    %742 = vmatprep.subr.mxu0 0.0
    %743 = vmatpush1.xpose.msra.mxu0 0.0
    %744 = vmatprep.subr.mxu0 0.0
    %745 = vmatpush1.xpose.msra.mxu0 0.0
    %746 = vmatprep.subr.mxu0 0.0
    %747 = vmatpush1.xpose.msra.mxu0 0.0
    %748 = vmatprep.subr.mxu0 0.0
    %749 = vmatpush1.xpose.msra.mxu0 0.0
    %750 = vmatprep.subr.mxu0 0.0
    %751 = vmatpush1.xpose.msra.mxu0 0.0
    %752 = vmatprep.subr.mxu0 0.0
    %753 = vmatpush1.xpose.msra.mxu0 0.0
    %754 = vmatprep.subr.mxu0 0.0
    %755 = vmatpush1.xpose.msra.mxu0 0.0
    %756 = vmatprep.subr.mxu0 0.0
    %757 = vmatpush1.xpose.msra.mxu0 0.0
    %758 = vmatprep.subr.mxu0 0.0
    %759 = vmatpush1.xpose.msra.mxu0 0.0
    %760 = vmatprep.subr.mxu0 0.0
    %761 = vmatpush1.xpose.msra.mxu0 0.0
    %762 = vmatprep.subr.mxu0 0.0
    %763 = vmatpush1.xpose.msra.mxu0 0.0
    %764 = vmatprep.subr.mxu0 0.0
    %765 = vmatpush1.xpose.msra.mxu0 0.0
    %766 = vmatprep.subr.mxu0 0.0
    %767 = vmatpush1.xpose.msra.mxu0 0.0
    %768 = vmatprep.subr.mxu0 0.0
    %769 = vmatpush1.xpose.msra.mxu0 0.0
    %770 = vmatprep.subr.mxu0 0.0
    %771 = vmatpush1.xpose.msra.mxu0 0.0
    %772 = vmatprep.subr.mxu0 0.0
    %773 = vmatpush1.xpose.msra.mxu0 0.0
    %774 = vmatprep.subr.mxu0 0.0
    %775 = vmatpush1.xpose.msra.mxu0 0.0
    %776 = vmatprep.subr.mxu0 0.0
    %777 = vmatpush1.xpose.msra.mxu0 0.0
    %778 = vmatprep.subr.mxu0 0.0
    %779 = vmatpush1.xpose.msra.mxu0 0.0
    %780 = vmatprep.subr.mxu0 0.0
    %781 = vmatpush1.xpose.msra.mxu0 0.0
    %782 = vmatprep.subr.mxu0 0.0
    %783 = vmatpush1.xpose.msra.mxu0 0.0
    %784 = vmatprep.subr.mxu0 0.0
    %785 = vmatpush1.xpose.msra.mxu0 0.0
    %786 = vmatprep.subr.mxu0 0.0
    %787 = vmatpush1.xpose.msra.mxu0 0.0
    %788 = vmatprep.subr.mxu0 0.0
    %789 = vmatpush1.xpose.msra.mxu0 0.0
    %790 = vmatprep.subr.mxu0 0.0
    %791 = vmatpush1.xpose.msra.mxu0 0.0
    %792 = vmatprep.mubr.f32.mxu0 0.0
    %793 = vmatmul.mubr.f32.gmra.mrb[0].mxu0 %v724
    %v794 = vpop.f32.mrb[0].mxu0
    %v795 = vadd.f32 %v21, %v794
    %v796 = vpop.f32.mrb[0].mxu0
    %797 = vdwg.mxu0
    %v798 = vsel %vm191, %v263, -inf
    %799 = vmax.xlane.f32.xlu0 %v798
    %v800 = vpop.xlane.xlu0 %799
    %v801 = vsel %vm191, %v339, -inf
    %802 = vmax.xlane.f32.xlu0 %v801
    %v803 = vpop.xlane.xlu0 %802
    %v804 = vsel %vm191, %v415, -inf
    %805 = vmax.xlane.f32.xlu0 %v804
    %v806 = vpop.xlane.xlu0 %805
    %v807 = vsel %vm191, %v491, -inf
    %808 = vmax.xlane.f32.xlu0 %v807
    %v809 = vpop.xlane.xlu0 %808
    %v810 = vsel %vm191, %v567, -inf
    %811 = vmax.xlane.f32.xlu0 %v810
    %v812 = vpop.xlane.xlu0 %811
    %v813 = vsel %vm191, %v643, -inf
    %814 = vmax.xlane.f32.xlu0 %v813
    %v815 = vpop.xlane.xlu0 %814
    %v816 = vsel %vm191, %v719, -inf
    %817 = vmax.xlane.f32.xlu0 %v816
    %v818 = vpop.xlane.xlu0 %817
    %v819 = vsel %vm191, %v795, -inf
    %820 = vmax.xlane.f32.xlu0 %v819
    %v821 = vpop.xlane.xlu0 %820
    %v822 = vsub.f32 %v263, %v800
    %v823 = vsub.f32 %v339, %v803
    %v824 = vsub.f32 %v415, %v806
    %v825 = vsub.f32 %v491, %v809
    %v826 = vsub.f32 %v567, %v812
    %v827 = vsub.f32 %v643, %v815
    %v828 = vsub.f32 %v719, %v818
    %v829 = vsub.f32 %v795, %v821
    %v830 = vmul.f32 %v822, 1.442695
    %v831 = vpow.pop %v830
    %v832 = vmul.f32 %v823, 1.442695
    %v833 = vpow.pop %v832
    %v834 = vmul.f32 %v824, 1.442695
    %v835 = vpow.pop %v834
    %v836 = vmul.f32 %v825, 1.442695
    %v837 = vpow.pop %v836
    %v838 = vmul.f32 %v826, 1.442695
    %v839 = vpow.pop %v838
    %v840 = vmul.f32 %v827, 1.442695
    %v841 = vpow.pop %v840
    %v842 = vmul.f32 %v828, 1.442695
    %v843 = vpow.pop %v842
    %v844 = vmul.f32 %v829, 1.442695
    %v845 = vpow.pop %v844
    %v846 = vsel %vm191, %v831, 0.0
    %847 = vadd.xlane.f32.xlu0 %v846
    %v848 = vpop.xlane.xlu0 %847
    %v849 = vsel %vm191, %v833, 0.0
    %850 = vadd.xlane.f32.xlu0 %v849
    %v851 = vpop.xlane.xlu0 %850
    %v852 = vsel %vm191, %v835, 0.0
    %853 = vadd.xlane.f32.xlu0 %v852
    %v854 = vpop.xlane.xlu0 %853
    %v855 = vsel %vm191, %v837, 0.0
    %856 = vadd.xlane.f32.xlu0 %v855
    %v857 = vpop.xlane.xlu0 %856
    %v858 = vsel %vm191, %v839, 0.0
    %859 = vadd.xlane.f32.xlu0 %v858
    %v860 = vpop.xlane.xlu0 %859
    %v861 = vsel %vm191, %v841, 0.0
    %862 = vadd.xlane.f32.xlu0 %v861
    %v863 = vpop.xlane.xlu0 %862
    %v864 = vsel %vm191, %v843, 0.0
    %865 = vadd.xlane.f32.xlu0 %v864
    %v866 = vpop.xlane.xlu0 %865
    %v867 = vsel %vm191, %v845, 0.0
    %868 = vadd.xlane.f32.xlu0 %v867
    %v869 = vpop.xlane.xlu0 %868
    %v870 = vrcp.pop %v848
    %v871 = vrcp.pop %v851
    %v872 = vrcp.pop %v854
    %v873 = vrcp.pop %v857
    %v874 = vrcp.pop %v860
    %v875 = vrcp.pop %v863
    %v876 = vrcp.pop %v866
    %v877 = vrcp.pop %v869
    %v878 = vmul.f32 %v831, %v870
    %v879 = vmul.f32 %v833, %v871
    %v880 = vmul.f32 %v835, %v872
    %v881 = vmul.f32 %v837, %v873
    %v882 = vmul.f32 %v839, %v874
    %v883 = vmul.f32 %v841, %v875
    %v884 = vmul.f32 %v843, %v876
    %v885 = vmul.f32 %v845, %v877
    %886 = vrot.lane.b32.xlu0 %v167, 64
    %v887 = vpop.permute.xlu0 %886
    %v890 = vsel %vm191, %v878, 0
    %892 = vmatprep.subr.mxu0 0.0
    %893 = vmatpush1.msra.mxu0 %v887
    %894 = vmatprep.subr.mxu0 0.0
    %895 = vmatpush1.msra.mxu0 0.0
    %896 = vmatprep.subr.mxu0 0.0
    %897 = vmatpush1.msra.mxu0 0.0
    %898 = vmatprep.subr.mxu0 0.0
    %899 = vmatpush1.msra.mxu0 0.0
    %900 = vmatprep.subr.mxu0 0.0
    %901 = vmatpush1.msra.mxu0 0.0
    %902 = vmatprep.subr.mxu0 0.0
    %903 = vmatpush1.msra.mxu0 0.0
    %904 = vmatprep.subr.mxu0 0.0
    %905 = vmatpush1.msra.mxu0 0.0
    %906 = vmatprep.subr.mxu0 0.0
    %907 = vmatpush1.msra.mxu0 0.0
    %908 = vmatprep.subr.mxu0 0.0
    %909 = vmatpush1.msra.mxu0 0.0
    %910 = vmatprep.subr.mxu0 0.0
    %911 = vmatpush1.msra.mxu0 0.0
    %912 = vmatprep.subr.mxu0 0.0
    %913 = vmatpush1.msra.mxu0 0.0
    %914 = vmatprep.subr.mxu0 0.0
    %915 = vmatpush1.msra.mxu0 0.0
    %916 = vmatprep.subr.mxu0 0.0
    %917 = vmatpush1.msra.mxu0 0.0
    %918 = vmatprep.subr.mxu0 0.0
    %919 = vmatpush1.msra.mxu0 0.0
    %920 = vmatprep.subr.mxu0 0.0
    %921 = vmatpush1.msra.mxu0 0.0
    %922 = vmatprep.subr.mxu0 0.0
    %923 = vmatpush1.msra.mxu0 0.0
    %924 = vmatprep.subr.mxu0 0.0
    %925 = vmatpush1.msra.mxu0 0.0
    %926 = vmatprep.subr.mxu0 0.0
    %927 = vmatpush1.msra.mxu0 0.0
    %928 = vmatprep.subr.mxu0 0.0
    %929 = vmatpush1.msra.mxu0 0.0
    %930 = vmatprep.subr.mxu0 0.0
    %931 = vmatpush1.msra.mxu0 0.0
    %932 = vmatprep.subr.mxu0 0.0
    %933 = vmatpush1.msra.mxu0 0.0
    %934 = vmatprep.subr.mxu0 0.0
    %935 = vmatpush1.msra.mxu0 0.0
    %936 = vmatprep.subr.mxu0 0.0
    %937 = vmatpush1.msra.mxu0 0.0
    %938 = vmatprep.subr.mxu0 0.0
    %939 = vmatpush1.msra.mxu0 0.0
    %940 = vmatprep.subr.mxu0 0.0
    %941 = vmatpush1.msra.mxu0 0.0
    %942 = vmatprep.subr.mxu0 0.0
    %943 = vmatpush1.msra.mxu0 0.0
    %944 = vmatprep.subr.mxu0 0.0
    %945 = vmatpush1.msra.mxu0 0.0
    %946 = vmatprep.subr.mxu0 0.0
    %947 = vmatpush1.msra.mxu0 0.0
    %948 = vmatprep.subr.mxu0 0.0
    %949 = vmatpush1.msra.mxu0 0.0
    %950 = vmatprep.subr.mxu0 0.0
    %951 = vmatpush1.msra.mxu0 0.0
    %952 = vmatprep.subr.mxu0 0.0
    %953 = vmatpush1.msra.mxu0 0.0
    %954 = vmatprep.subr.mxu0 0.0
    %955 = vmatpush1.msra.mxu0 0.0
    %956 = vmatprep.mubr.f32.mxu0 0.0
    %957 = vmatmul.mubr.f32.gmra.mrb[0].mxu0 %v890
    %v958 = vpop.f32.mrb[0].mxu0
    %v959 = vadd.f32 0.0, %v958
    %v960 = vpop.f32.mrb[0].mxu0
    %961 = vdwg.mxu0
    %962 = vrot.lane.b32.xlu0 %v172, 64
    %v963 = vpop.permute.xlu0 %962
    %v966 = vsel %vm191, %v879, 0
    %968 = vmatprep.subr.mxu0 0.0
    %969 = vmatpush1.msra.mxu0 %v963
    %970 = vmatprep.subr.mxu0 0.0
    %971 = vmatpush1.msra.mxu0 0.0
    %972 = vmatprep.subr.mxu0 0.0
    %973 = vmatpush1.msra.mxu0 0.0
    %974 = vmatprep.subr.mxu0 0.0
    %975 = vmatpush1.msra.mxu0 0.0
    %976 = vmatprep.subr.mxu0 0.0
    %977 = vmatpush1.msra.mxu0 0.0
    %978 = vmatprep.subr.mxu0 0.0
    %979 = vmatpush1.msra.mxu0 0.0
    %980 = vmatprep.subr.mxu0 0.0
    %981 = vmatpush1.msra.mxu0 0.0
    %982 = vmatprep.subr.mxu0 0.0
    %983 = vmatpush1.msra.mxu0 0.0
    %984 = vmatprep.subr.mxu0 0.0
    %985 = vmatpush1.msra.mxu0 0.0
    %986 = vmatprep.subr.mxu0 0.0
    %987 = vmatpush1.msra.mxu0 0.0
    %988 = vmatprep.subr.mxu0 0.0
    %989 = vmatpush1.msra.mxu0 0.0
    %990 = vmatprep.subr.mxu0 0.0
    %991 = vmatpush1.msra.mxu0 0.0
    %992 = vmatprep.subr.mxu0 0.0
    %993 = vmatpush1.msra.mxu0 0.0
    %994 = vmatprep.subr.mxu0 0.0
    %995 = vmatpush1.msra.mxu0 0.0
    %996 = vmatprep.subr.mxu0 0.0
    %997 = vmatpush1.msra.mxu0 0.0
    %998 = vmatprep.subr.mxu0 0.0
    %999 = vmatpush1.msra.mxu0 0.0
    %1000 = vmatprep.subr.mxu0 0.0
    %1001 = vmatpush1.msra.mxu0 0.0
    %1002 = vmatprep.subr.mxu0 0.0
    %1003 = vmatpush1.msra.mxu0 0.0
    %1004 = vmatprep.subr.mxu0 0.0
    %1005 = vmatpush1.msra.mxu0 0.0
    %1006 = vmatprep.subr.mxu0 0.0
    %1007 = vmatpush1.msra.mxu0 0.0
    %1008 = vmatprep.subr.mxu0 0.0
    %1009 = vmatpush1.msra.mxu0 0.0
    %1010 = vmatprep.subr.mxu0 0.0
    %1011 = vmatpush1.msra.mxu0 0.0
    %1012 = vmatprep.subr.mxu0 0.0
    %1013 = vmatpush1.msra.mxu0 0.0
    %1014 = vmatprep.subr.mxu0 0.0
    %1015 = vmatpush1.msra.mxu0 0.0
    %1016 = vmatprep.subr.mxu0 0.0
    %1017 = vmatpush1.msra.mxu0 0.0
    %1018 = vmatprep.subr.mxu0 0.0
    %1019 = vmatpush1.msra.mxu0 0.0
    %1020 = vmatprep.subr.mxu0 0.0
    %1021 = vmatpush1.msra.mxu0 0.0
    %1022 = vmatprep.subr.mxu0 0.0
    %1023 = vmatpush1.msra.mxu0 0.0
    %1024 = vmatprep.subr.mxu0 0.0
    %1025 = vmatpush1.msra.mxu0 0.0
    %1026 = vmatprep.subr.mxu0 0.0
    %1027 = vmatpush1.msra.mxu0 0.0
    %1028 = vmatprep.subr.mxu0 0.0
    %1029 = vmatpush1.msra.mxu0 0.0
    %1030 = vmatprep.subr.mxu0 0.0
    %1031 = vmatpush1.msra.mxu0 0.0
    %1032 = vmatprep.mubr.f32.mxu0 0.0
    %1033 = vmatmul.mubr.f32.gmra.mrb[0].mxu0 %v966
    %v1034 = vpop.f32.mrb[0].mxu0
    %v1035 = vadd.f32 0.0, %v1034
    %v1036 = vpop.f32.mrb[0].mxu0
    %1037 = vdwg.mxu0
    %1038 = vrot.lane.b32.xlu0 %v178, 64
    %v1039 = vpop.permute.xlu0 %1038
    %v1042 = vsel %vm191, %v880, 0
    %1044 = vmatprep.subr.mxu0 0.0
    %1045 = vmatpush1.msra.mxu0 %v1039
    %1046 = vmatprep.subr.mxu0 0.0
    %1047 = vmatpush1.msra.mxu0 0.0
    %1048 = vmatprep.subr.mxu0 0.0
    %1049 = vmatpush1.msra.mxu0 0.0
    %1050 = vmatprep.subr.mxu0 0.0
    %1051 = vmatpush1.msra.mxu0 0.0
    %1052 = vmatprep.subr.mxu0 0.0
    %1053 = vmatpush1.msra.mxu0 0.0
    %1054 = vmatprep.subr.mxu0 0.0
    %1055 = vmatpush1.msra.mxu0 0.0
    %1056 = vmatprep.subr.mxu0 0.0
    %1057 = vmatpush1.msra.mxu0 0.0
    %1058 = vmatprep.subr.mxu0 0.0
    %1059 = vmatpush1.msra.mxu0 0.0
    %1060 = vmatprep.subr.mxu0 0.0
    %1061 = vmatpush1.msra.mxu0 0.0
    %1062 = vmatprep.subr.mxu0 0.0
    %1063 = vmatpush1.msra.mxu0 0.0
    %1064 = vmatprep.subr.mxu0 0.0
    %1065 = vmatpush1.msra.mxu0 0.0
    %1066 = vmatprep.subr.mxu0 0.0
    %1067 = vmatpush1.msra.mxu0 0.0
    %1068 = vmatprep.subr.mxu0 0.0
    %1069 = vmatpush1.msra.mxu0 0.0
    %1070 = vmatprep.subr.mxu0 0.0
    %1071 = vmatpush1.msra.mxu0 0.0
    %1072 = vmatprep.subr.mxu0 0.0
    %1073 = vmatpush1.msra.mxu0 0.0
    %1074 = vmatprep.subr.mxu0 0.0
    %1075 = vmatpush1.msra.mxu0 0.0
    %1076 = vmatprep.subr.mxu0 0.0
    %1077 = vmatpush1.msra.mxu0 0.0
    %1078 = vmatprep.subr.mxu0 0.0
    %1079 = vmatpush1.msra.mxu0 0.0
    %1080 = vmatprep.subr.mxu0 0.0
    %1081 = vmatpush1.msra.mxu0 0.0
    %1082 = vmatprep.subr.mxu0 0.0
    %1083 = vmatpush1.msra.mxu0 0.0
    %1084 = vmatprep.subr.mxu0 0.0
    %1085 = vmatpush1.msra.mxu0 0.0
    %1086 = vmatprep.subr.mxu0 0.0
    %1087 = vmatpush1.msra.mxu0 0.0
    %1088 = vmatprep.subr.mxu0 0.0
    %1089 = vmatpush1.msra.mxu0 0.0
    %1090 = vmatprep.subr.mxu0 0.0
    %1091 = vmatpush1.msra.mxu0 0.0
    %1092 = vmatprep.subr.mxu0 0.0
    %1093 = vmatpush1.msra.mxu0 0.0
    %1094 = vmatprep.subr.mxu0 0.0
    %1095 = vmatpush1.msra.mxu0 0.0
    %1096 = vmatprep.subr.mxu0 0.0
    %1097 = vmatpush1.msra.mxu0 0.0
    %1098 = vmatprep.subr.mxu0 0.0
    %1099 = vmatpush1.msra.mxu0 0.0
    %1100 = vmatprep.subr.mxu0 0.0
    %1101 = vmatpush1.msra.mxu0 0.0
    %1102 = vmatprep.subr.mxu0 0.0
    %1103 = vmatpush1.msra.mxu0 0.0
    %1104 = vmatprep.subr.mxu0 0.0
    %1105 = vmatpush1.msra.mxu0 0.0
    %1106 = vmatprep.subr.mxu0 0.0
    %1107 = vmatpush1.msra.mxu0 0.0
    %1108 = vmatprep.mubr.f32.mxu0 0.0
    %1109 = vmatmul.mubr.f32.gmra.mrb[0].mxu0 %v1042
    %v1110 = vpop.f32.mrb[0].mxu0
    %v1111 = vadd.f32 0.0, %v1110
    %v1112 = vpop.f32.mrb[0].mxu0
    %1113 = vdwg.mxu0
    %1114 = vrot.lane.b32.xlu0 %v180, 64
    %v1115 = vpop.permute.xlu0 %1114
    %v1118 = vsel %vm191, %v881, 0
    %1120 = vmatprep.subr.mxu0 0.0
    %1121 = vmatpush1.msra.mxu0 %v1115
    %1122 = vmatprep.subr.mxu0 0.0
    %1123 = vmatpush1.msra.mxu0 0.0
    %1124 = vmatprep.subr.mxu0 0.0
    %1125 = vmatpush1.msra.mxu0 0.0
    %1126 = vmatprep.subr.mxu0 0.0
    %1127 = vmatpush1.msra.mxu0 0.0
    %1128 = vmatprep.subr.mxu0 0.0
    %1129 = vmatpush1.msra.mxu0 0.0
    %1130 = vmatprep.subr.mxu0 0.0
    %1131 = vmatpush1.msra.mxu0 0.0
    %1132 = vmatprep.subr.mxu0 0.0
    %1133 = vmatpush1.msra.mxu0 0.0
    %1134 = vmatprep.subr.mxu0 0.0
    %1135 = vmatpush1.msra.mxu0 0.0
    %1136 = vmatprep.subr.mxu0 0.0
    %1137 = vmatpush1.msra.mxu0 0.0
    %1138 = vmatprep.subr.mxu0 0.0
    %1139 = vmatpush1.msra.mxu0 0.0
    %1140 = vmatprep.subr.mxu0 0.0
    %1141 = vmatpush1.msra.mxu0 0.0
    %1142 = vmatprep.subr.mxu0 0.0
    %1143 = vmatpush1.msra.mxu0 0.0
    %1144 = vmatprep.subr.mxu0 0.0
    %1145 = vmatpush1.msra.mxu0 0.0
    %1146 = vmatprep.subr.mxu0 0.0
    %1147 = vmatpush1.msra.mxu0 0.0
    %1148 = vmatprep.subr.mxu0 0.0
    %1149 = vmatpush1.msra.mxu0 0.0
    %1150 = vmatprep.subr.mxu0 0.0
    %1151 = vmatpush1.msra.mxu0 0.0
    %1152 = vmatprep.subr.mxu0 0.0
    %1153 = vmatpush1.msra.mxu0 0.0
    %1154 = vmatprep.subr.mxu0 0.0
    %1155 = vmatpush1.msra.mxu0 0.0
    %1156 = vmatprep.subr.mxu0 0.0
    %1157 = vmatpush1.msra.mxu0 0.0
    %1158 = vmatprep.subr.mxu0 0.0
    %1159 = vmatpush1.msra.mxu0 0.0
    %1160 = vmatprep.subr.mxu0 0.0
    %1161 = vmatpush1.msra.mxu0 0.0
    %1162 = vmatprep.subr.mxu0 0.0
    %1163 = vmatpush1.msra.mxu0 0.0
    %1164 = vmatprep.subr.mxu0 0.0
    %1165 = vmatpush1.msra.mxu0 0.0
    %1166 = vmatprep.subr.mxu0 0.0
    %1167 = vmatpush1.msra.mxu0 0.0
    %1168 = vmatprep.subr.mxu0 0.0
    %1169 = vmatpush1.msra.mxu0 0.0
    %1170 = vmatprep.subr.mxu0 0.0
    %1171 = vmatpush1.msra.mxu0 0.0
    %1172 = vmatprep.subr.mxu0 0.0
    %1173 = vmatpush1.msra.mxu0 0.0
    %1174 = vmatprep.subr.mxu0 0.0
    %1175 = vmatpush1.msra.mxu0 0.0
    %1176 = vmatprep.subr.mxu0 0.0
    %1177 = vmatpush1.msra.mxu0 0.0
    %1178 = vmatprep.subr.mxu0 0.0
    %1179 = vmatpush1.msra.mxu0 0.0
    %1180 = vmatprep.subr.mxu0 0.0
    %1181 = vmatpush1.msra.mxu0 0.0
    %1182 = vmatprep.subr.mxu0 0.0
    %1183 = vmatpush1.msra.mxu0 0.0
    %1184 = vmatprep.mubr.f32.mxu0 0.0
    %1185 = vmatmul.mubr.f32.gmra.mrb[0].mxu0 %v1118
    %v1186 = vpop.f32.mrb[0].mxu0
    %v1187 = vadd.f32 0.0, %v1186
    %v1188 = vpop.f32.mrb[0].mxu0
    %1189 = vdwg.mxu0
    %1190 = vrot.lane.b32.xlu0 %v182, 64
    %v1191 = vpop.permute.xlu0 %1190
    %v1194 = vsel %vm191, %v882, 0
    %1196 = vmatprep.subr.mxu0 0.0
    %1197 = vmatpush1.msra.mxu0 %v1191
    %1198 = vmatprep.subr.mxu0 0.0
    %1199 = vmatpush1.msra.mxu0 0.0
    %1200 = vmatprep.subr.mxu0 0.0
    %1201 = vmatpush1.msra.mxu0 0.0
    %1202 = vmatprep.subr.mxu0 0.0
    %1203 = vmatpush1.msra.mxu0 0.0
    %1204 = vmatprep.subr.mxu0 0.0
    %1205 = vmatpush1.msra.mxu0 0.0
    %1206 = vmatprep.subr.mxu0 0.0
    %1207 = vmatpush1.msra.mxu0 0.0
    %1208 = vmatprep.subr.mxu0 0.0
    %1209 = vmatpush1.msra.mxu0 0.0
    %1210 = vmatprep.subr.mxu0 0.0
    %1211 = vmatpush1.msra.mxu0 0.0
    %1212 = vmatprep.subr.mxu0 0.0
    %1213 = vmatpush1.msra.mxu0 0.0
    %1214 = vmatprep.subr.mxu0 0.0
    %1215 = vmatpush1.msra.mxu0 0.0
    %1216 = vmatprep.subr.mxu0 0.0
    %1217 = vmatpush1.msra.mxu0 0.0
    %1218 = vmatprep.subr.mxu0 0.0
    %1219 = vmatpush1.msra.mxu0 0.0
    %1220 = vmatprep.subr.mxu0 0.0
    %1221 = vmatpush1.msra.mxu0 0.0
    %1222 = vmatprep.subr.mxu0 0.0
    %1223 = vmatpush1.msra.mxu0 0.0
    %1224 = vmatprep.subr.mxu0 0.0
    %1225 = vmatpush1.msra.mxu0 0.0
    %1226 = vmatprep.subr.mxu0 0.0
    %1227 = vmatpush1.msra.mxu0 0.0
    %1228 = vmatprep.subr.mxu0 0.0
    %1229 = vmatpush1.msra.mxu0 0.0
    %1230 = vmatprep.subr.mxu0 0.0
    %1231 = vmatpush1.msra.mxu0 0.0
    %1232 = vmatprep.subr.mxu0 0.0
    %1233 = vmatpush1.msra.mxu0 0.0
    %1234 = vmatprep.subr.mxu0 0.0
    %1235 = vmatpush1.msra.mxu0 0.0
    %1236 = vmatprep.subr.mxu0 0.0
    %1237 = vmatpush1.msra.mxu0 0.0
    %1238 = vmatprep.subr.mxu0 0.0
    %1239 = vmatpush1.msra.mxu0 0.0
    %1240 = vmatprep.subr.mxu0 0.0
    %1241 = vmatpush1.msra.mxu0 0.0
    %1242 = vmatprep.subr.mxu0 0.0
    %1243 = vmatpush1.msra.mxu0 0.0
    %1244 = vmatprep.subr.mxu0 0.0
    %1245 = vmatpush1.msra.mxu0 0.0
    %1246 = vmatprep.subr.mxu0 0.0
    %1247 = vmatpush1.msra.mxu0 0.0
    %1248 = vmatprep.subr.mxu0 0.0
    %1249 = vmatpush1.msra.mxu0 0.0
    %1250 = vmatprep.subr.mxu0 0.0
    %1251 = vmatpush1.msra.mxu0 0.0
    %1252 = vmatprep.subr.mxu0 0.0
    %1253 = vmatpush1.msra.mxu0 0.0
    %1254 = vmatprep.subr.mxu0 0.0
    %1255 = vmatpush1.msra.mxu0 0.0
    %1256 = vmatprep.subr.mxu0 0.0
    %1257 = vmatpush1.msra.mxu0 0.0
    %1258 = vmatprep.subr.mxu0 0.0
    %1259 = vmatpush1.msra.mxu0 0.0
    %1260 = vmatprep.mubr.f32.mxu0 0.0
    %1261 = vmatmul.mubr.f32.gmra.mrb[0].mxu0 %v1194
    %v1262 = vpop.f32.mrb[0].mxu0
    %v1263 = vadd.f32 0.0, %v1262
    %v1264 = vpop.f32.mrb[0].mxu0
    %1265 = vdwg.mxu0
    %1266 = vrot.lane.b32.xlu0 %v184, 64
    %v1267 = vpop.permute.xlu0 %1266
    %v1270 = vsel %vm191, %v883, 0
    %1272 = vmatprep.subr.mxu0 0.0
    %1273 = vmatpush1.msra.mxu0 %v1267
    %1274 = vmatprep.subr.mxu0 0.0
    %1275 = vmatpush1.msra.mxu0 0.0
    %1276 = vmatprep.subr.mxu0 0.0
    %1277 = vmatpush1.msra.mxu0 0.0
    %1278 = vmatprep.subr.mxu0 0.0
    %1279 = vmatpush1.msra.mxu0 0.0
    %1280 = vmatprep.subr.mxu0 0.0
    %1281 = vmatpush1.msra.mxu0 0.0
    %1282 = vmatprep.subr.mxu0 0.0
    %1283 = vmatpush1.msra.mxu0 0.0
    %1284 = vmatprep.subr.mxu0 0.0
    %1285 = vmatpush1.msra.mxu0 0.0
    %1286 = vmatprep.subr.mxu0 0.0
    %1287 = vmatpush1.msra.mxu0 0.0
    %1288 = vmatprep.subr.mxu0 0.0
    %1289 = vmatpush1.msra.mxu0 0.0
    %1290 = vmatprep.subr.mxu0 0.0
    %1291 = vmatpush1.msra.mxu0 0.0
    %1292 = vmatprep.subr.mxu0 0.0
    %1293 = vmatpush1.msra.mxu0 0.0
    %1294 = vmatprep.subr.mxu0 0.0
    %1295 = vmatpush1.msra.mxu0 0.0
    %1296 = vmatprep.subr.mxu0 0.0
    %1297 = vmatpush1.msra.mxu0 0.0
    %1298 = vmatprep.subr.mxu0 0.0
    %1299 = vmatpush1.msra.mxu0 0.0
    %1300 = vmatprep.subr.mxu0 0.0
    %1301 = vmatpush1.msra.mxu0 0.0
    %1302 = vmatprep.subr.mxu0 0.0
    %1303 = vmatpush1.msra.mxu0 0.0
    %1304 = vmatprep.subr.mxu0 0.0
    %1305 = vmatpush1.msra.mxu0 0.0
    %1306 = vmatprep.subr.mxu0 0.0
    %1307 = vmatpush1.msra.mxu0 0.0
    %1308 = vmatprep.subr.mxu0 0.0
    %1309 = vmatpush1.msra.mxu0 0.0
    %1310 = vmatprep.subr.mxu0 0.0
    %1311 = vmatpush1.msra.mxu0 0.0
    %1312 = vmatprep.subr.mxu0 0.0
    %1313 = vmatpush1.msra.mxu0 0.0
    %1314 = vmatprep.subr.mxu0 0.0
    %1315 = vmatpush1.msra.mxu0 0.0
    %1316 = vmatprep.subr.mxu0 0.0
    %1317 = vmatpush1.msra.mxu0 0.0
    %1318 = vmatprep.subr.mxu0 0.0
    %1319 = vmatpush1.msra.mxu0 0.0
    %1320 = vmatprep.subr.mxu0 0.0
    %1321 = vmatpush1.msra.mxu0 0.0
    %1322 = vmatprep.subr.mxu0 0.0
    %1323 = vmatpush1.msra.mxu0 0.0
    %1324 = vmatprep.subr.mxu0 0.0
    %1325 = vmatpush1.msra.mxu0 0.0
    %1326 = vmatprep.subr.mxu0 0.0
    %1327 = vmatpush1.msra.mxu0 0.0
    %1328 = vmatprep.subr.mxu0 0.0
    %1329 = vmatpush1.msra.mxu0 0.0
    %1330 = vmatprep.subr.mxu0 0.0
    %1331 = vmatpush1.msra.mxu0 0.0
    %1332 = vmatprep.subr.mxu0 0.0
    %1333 = vmatpush1.msra.mxu0 0.0
    %1334 = vmatprep.subr.mxu0 0.0
    %1335 = vmatpush1.msra.mxu0 0.0
    %1336 = vmatprep.mubr.f32.mxu0 0.0
    %1337 = vmatmul.mubr.f32.gmra.mrb[0].mxu0 %v1270
    %v1338 = vpop.f32.mrb[0].mxu0
    %v1339 = vadd.f32 0.0, %v1338
    %v1340 = vpop.f32.mrb[0].mxu0
    %1341 = vdwg.mxu0
    %1342 = vrot.lane.b32.xlu0 %v186, 64
    %v1343 = vpop.permute.xlu0 %1342
    %v1346 = vsel %vm191, %v884, 0
    %1348 = vmatprep.subr.mxu0 0.0
    %1349 = vmatpush1.msra.mxu0 %v1343
    %1350 = vmatprep.subr.mxu0 0.0
    %1351 = vmatpush1.msra.mxu0 0.0
    %1352 = vmatprep.subr.mxu0 0.0
    %1353 = vmatpush1.msra.mxu0 0.0
    %1354 = vmatprep.subr.mxu0 0.0
    %1355 = vmatpush1.msra.mxu0 0.0
    %1356 = vmatprep.subr.mxu0 0.0
    %1357 = vmatpush1.msra.mxu0 0.0
    %1358 = vmatprep.subr.mxu0 0.0
    %1359 = vmatpush1.msra.mxu0 0.0
    %1360 = vmatprep.subr.mxu0 0.0
    %1361 = vmatpush1.msra.mxu0 0.0
    %1362 = vmatprep.subr.mxu0 0.0
    %1363 = vmatpush1.msra.mxu0 0.0
    %1364 = vmatprep.subr.mxu0 0.0
    %1365 = vmatpush1.msra.mxu0 0.0
    %1366 = vmatprep.subr.mxu0 0.0
    %1367 = vmatpush1.msra.mxu0 0.0
    %1368 = vmatprep.subr.mxu0 0.0
    %1369 = vmatpush1.msra.mxu0 0.0
    %1370 = vmatprep.subr.mxu0 0.0
    %1371 = vmatpush1.msra.mxu0 0.0
    %1372 = vmatprep.subr.mxu0 0.0
    %1373 = vmatpush1.msra.mxu0 0.0
    %1374 = vmatprep.subr.mxu0 0.0
    %1375 = vmatpush1.msra.mxu0 0.0
    %1376 = vmatprep.subr.mxu0 0.0
    %1377 = vmatpush1.msra.mxu0 0.0
    %1378 = vmatprep.subr.mxu0 0.0
    %1379 = vmatpush1.msra.mxu0 0.0
    %1380 = vmatprep.subr.mxu0 0.0
    %1381 = vmatpush1.msra.mxu0 0.0
    %1382 = vmatprep.subr.mxu0 0.0
    %1383 = vmatpush1.msra.mxu0 0.0
    %1384 = vmatprep.subr.mxu0 0.0
    %1385 = vmatpush1.msra.mxu0 0.0
    %1386 = vmatprep.subr.mxu0 0.0
    %1387 = vmatpush1.msra.mxu0 0.0
    %1388 = vmatprep.subr.mxu0 0.0
    %1389 = vmatpush1.msra.mxu0 0.0
    %1390 = vmatprep.subr.mxu0 0.0
    %1391 = vmatpush1.msra.mxu0 0.0
    %1392 = vmatprep.subr.mxu0 0.0
    %1393 = vmatpush1.msra.mxu0 0.0
    %1394 = vmatprep.subr.mxu0 0.0
    %1395 = vmatpush1.msra.mxu0 0.0
    %1396 = vmatprep.subr.mxu0 0.0
    %1397 = vmatpush1.msra.mxu0 0.0
    %1398 = vmatprep.subr.mxu0 0.0
    %1399 = vmatpush1.msra.mxu0 0.0
    %1400 = vmatprep.subr.mxu0 0.0
    %1401 = vmatpush1.msra.mxu0 0.0
    %1402 = vmatprep.subr.mxu0 0.0
    %1403 = vmatpush1.msra.mxu0 0.0
    %1404 = vmatprep.subr.mxu0 0.0
    %1405 = vmatpush1.msra.mxu0 0.0
    %1406 = vmatprep.subr.mxu0 0.0
    %1407 = vmatpush1.msra.mxu0 0.0
    %1408 = vmatprep.subr.mxu0 0.0
    %1409 = vmatpush1.msra.mxu0 0.0
    %1410 = vmatprep.subr.mxu0 0.0
    %1411 = vmatpush1.msra.mxu0 0.0
    %1412 = vmatprep.mubr.f32.mxu0 0.0
    %1413 = vmatmul.mubr.f32.gmra.mrb[0].mxu0 %v1346
    %v1414 = vpop.f32.mrb[0].mxu0
    %v1415 = vadd.f32 0.0, %v1414
    %v1416 = vpop.f32.mrb[0].mxu0
    %1417 = vdwg.mxu0
    %1418 = vrot.lane.b32.xlu0 %v188, 64
    %v1419 = vpop.permute.xlu0 %1418
    %v1422 = vsel %vm191, %v885, 0
    %1424 = vmatprep.subr.mxu0 0.0
    %1425 = vmatpush1.msra.mxu0 %v1419
    %1426 = vmatprep.subr.mxu0 0.0
    %1427 = vmatpush1.msra.mxu0 0.0
    %1428 = vmatprep.subr.mxu0 0.0
    %1429 = vmatpush1.msra.mxu0 0.0
    %1430 = vmatprep.subr.mxu0 0.0
    %1431 = vmatpush1.msra.mxu0 0.0
    %1432 = vmatprep.subr.mxu0 0.0
    %1433 = vmatpush1.msra.mxu0 0.0
    %1434 = vmatprep.subr.mxu0 0.0
    %1435 = vmatpush1.msra.mxu0 0.0
    %1436 = vmatprep.subr.mxu0 0.0
    %1437 = vmatpush1.msra.mxu0 0.0
    %1438 = vmatprep.subr.mxu0 0.0
    %1439 = vmatpush1.msra.mxu0 0.0
    %1440 = vmatprep.subr.mxu0 0.0
    %1441 = vmatpush1.msra.mxu0 0.0
    %1442 = vmatprep.subr.mxu0 0.0
    %1443 = vmatpush1.msra.mxu0 0.0
    %1444 = vmatprep.subr.mxu0 0.0
    %1445 = vmatpush1.msra.mxu0 0.0
    %1446 = vmatprep.subr.mxu0 0.0
    %1447 = vmatpush1.msra.mxu0 0.0
    %1448 = vmatprep.subr.mxu0 0.0
    %1449 = vmatpush1.msra.mxu0 0.0
    %1450 = vmatprep.subr.mxu0 0.0
    %1451 = vmatpush1.msra.mxu0 0.0
    %1452 = vmatprep.subr.mxu0 0.0
    %1453 = vmatpush1.msra.mxu0 0.0
    %1454 = vmatprep.subr.mxu0 0.0
    %1455 = vmatpush1.msra.mxu0 0.0
    %1456 = vmatprep.subr.mxu0 0.0
    %1457 = vmatpush1.msra.mxu0 0.0
    %1458 = vmatprep.subr.mxu0 0.0
    %1459 = vmatpush1.msra.mxu0 0.0
    %1460 = vmatprep.subr.mxu0 0.0
    %1461 = vmatpush1.msra.mxu0 0.0
    %1462 = vmatprep.subr.mxu0 0.0
    %1463 = vmatpush1.msra.mxu0 0.0
    %1464 = vmatprep.subr.mxu0 0.0
    %1465 = vmatpush1.msra.mxu0 0.0
    %1466 = vmatprep.subr.mxu0 0.0
    %1467 = vmatpush1.msra.mxu0 0.0
    %1468 = vmatprep.subr.mxu0 0.0
    %1469 = vmatpush1.msra.mxu0 0.0
    %1470 = vmatprep.subr.mxu0 0.0
    %1471 = vmatpush1.msra.mxu0 0.0
    %1472 = vmatprep.subr.mxu0 0.0
    %1473 = vmatpush1.msra.mxu0 0.0
    %1474 = vmatprep.subr.mxu0 0.0
    %1475 = vmatpush1.msra.mxu0 0.0
    %1476 = vmatprep.subr.mxu0 0.0
    %1477 = vmatpush1.msra.mxu0 0.0
    %1478 = vmatprep.subr.mxu0 0.0
    %1479 = vmatpush1.msra.mxu0 0.0
    %1480 = vmatprep.subr.mxu0 0.0
    %1481 = vmatpush1.msra.mxu0 0.0
    %1482 = vmatprep.subr.mxu0 0.0
    %1483 = vmatpush1.msra.mxu0 0.0
    %1484 = vmatprep.subr.mxu0 0.0
    %1485 = vmatpush1.msra.mxu0 0.0
    %1486 = vmatprep.subr.mxu0 0.0
    %1487 = vmatpush1.msra.mxu0 0.0
    %1488 = vmatprep.mubr.f32.mxu0 0.0
    %1489 = vmatmul.mubr.f32.gmra.mrb[0].mxu0 %v1422
    %v1490 = vpop.f32.mrb[0].mxu0
    %v1491 = vadd.f32 0.0, %v1490
    %v1492 = vpop.f32.mrb[0].mxu0
    %1493 = vdwg.mxu0
    %1494 = vst.msk [vmem:[#allocation2] sm:$0xff] %vm191, %v959
    %1495 = vst.msk [vmem:[#allocation2 + $0x8] sm:$0xff] %vm191, %v1035
    %1498 = vrot.lane.b32.xlu0 %v1111, 8
    %v1499 = vpop.permute.xlu0 %1498
    %1500 = vrot.lane.b32.xlu0 %v1187, 8
    %v1501 = vpop.permute.xlu0 %1500
    %vm1504 = vcmask 130112
    %1505 = vst.msk [vmem:[#allocation2] sm:$0xff] %vm1504, %v1499
    %1506 = vst.msk [vmem:[#allocation2 + $0x8] sm:$0xff] %vm1504, %v1501
    %1509 = vrot.lane.b32.xlu0 %v1263, 16
    %v1510 = vpop.permute.xlu0 %1509
    %1511 = vrot.lane.b32.xlu0 %v1339, 16
    %v1512 = vpop.permute.xlu0 %1511
    %vm1515 = vcmask 195712
    %1516 = vst.msk [vmem:[#allocation2] sm:$0xff] %vm1515, %v1510
    %1517 = vst.msk [vmem:[#allocation2 + $0x8] sm:$0xff] %vm1515, %v1512
    %1520 = vrot.lane.b32.xlu0 %v1415, 24
    %v1521 = vpop.permute.xlu0 %1520
    %1522 = vrot.lane.b32.xlu0 %v1491, 24
    %v1523 = vpop.permute.xlu0 %1522
    %vm1526 = vcmask 261312
    %1527 = vst.msk [vmem:[#allocation2] sm:$0xff] %vm1526, %v1521
    %1528 = vst.msk [vmem:[#allocation2 + $0x8] sm:$0xff] %vm1526, %v1523
    %v1529 = vld [vmem:[#allocation2] sm:$0xff]
    %v1530 = vld [vmem:[#allocation2 + $0x8] sm:$0xff]
    %v1531 = vlaneseq
    %v1532 = vshrl.u32 %v1531, 7
    %v1533 = vsub.s32 0, %v1532
    %v1534 = vrot.slane %v33, %v1533
    %v1536 = vsel %vm50, %v1529, 0
    %v1539 = vsel %vm50, %v1530, 0
    %1541 = vmatprep.subr.mxu0 0.0
    %1542 = vmatpush1.msra.mxu0 %v29
    %1543 = vmatprep.subr.mxu0 0.0
    %1544 = vmatpush1.msra.mxu0 %v30
    %1545 = vmatprep.subr.mxu0 0.0
    %1546 = vmatpush1.msra.mxu0 %v31
    %1547 = vmatprep.subr.mxu0 0.0
    %1548 = vmatpush1.msra.mxu0 %v32
    %1549 = vmatprep.subr.mxu0 0.0
    %1550 = vmatpush1.msra.mxu0 0.0
    %1551 = vmatprep.subr.mxu0 0.0
    %1552 = vmatpush1.msra.mxu0 0.0
    %1553 = vmatprep.subr.mxu0 0.0
    %1554 = vmatpush1.msra.mxu0 0.0
    %1555 = vmatprep.subr.mxu0 0.0
    %1556 = vmatpush1.msra.mxu0 0.0
    %1557 = vmatprep.subr.mxu0 0.0
    %1558 = vmatpush1.msra.mxu0 0.0
    %1559 = vmatprep.subr.mxu0 0.0
    %1560 = vmatpush1.msra.mxu0 0.0
    %1561 = vmatprep.subr.mxu0 0.0
    %1562 = vmatpush1.msra.mxu0 0.0
    %1563 = vmatprep.subr.mxu0 0.0
    %1564 = vmatpush1.msra.mxu0 0.0
    %1565 = vmatprep.subr.mxu0 0.0
    %1566 = vmatpush1.msra.mxu0 0.0
    %1567 = vmatprep.subr.mxu0 0.0
    %1568 = vmatpush1.msra.mxu0 0.0
    %1569 = vmatprep.subr.mxu0 0.0
    %1570 = vmatpush1.msra.mxu0 0.0
    %1571 = vmatprep.subr.mxu0 0.0
    %1572 = vmatpush1.msra.mxu0 0.0
    %1573 = vmatprep.subr.mxu0 0.0
    %1574 = vmatpush1.msra.mxu0 0.0
    %1575 = vmatprep.subr.mxu0 0.0
    %1576 = vmatpush1.msra.mxu0 0.0
    %1577 = vmatprep.subr.mxu0 0.0
    %1578 = vmatpush1.msra.mxu0 0.0
    %1579 = vmatprep.subr.mxu0 0.0
    %1580 = vmatpush1.msra.mxu0 0.0
    %1581 = vmatprep.subr.mxu0 0.0
    %1582 = vmatpush1.msra.mxu0 0.0
    %1583 = vmatprep.subr.mxu0 0.0
    %1584 = vmatpush1.msra.mxu0 0.0
    %1585 = vmatprep.subr.mxu0 0.0
    %1586 = vmatpush1.msra.mxu0 0.0
    %1587 = vmatprep.subr.mxu0 0.0
    %1588 = vmatpush1.msra.mxu0 0.0
    %1589 = vmatprep.subr.mxu0 0.0
    %1590 = vmatpush1.msra.mxu0 0.0
    %1591 = vmatprep.subr.mxu0 0.0
    %1592 = vmatpush1.msra.mxu0 0.0
    %1593 = vmatprep.subr.mxu0 0.0
    %1594 = vmatpush1.msra.mxu0 0.0
    %1595 = vmatprep.subr.mxu0 0.0
    %1596 = vmatpush1.msra.mxu0 0.0
    %1597 = vmatprep.subr.mxu0 0.0
    %1598 = vmatpush1.msra.mxu0 0.0
    %1599 = vmatprep.subr.mxu0 0.0
    %1600 = vmatpush1.msra.mxu0 0.0
    %1601 = vmatprep.subr.mxu0 0.0
    %1602 = vmatpush1.msra.mxu0 0.0
    %1603 = vmatprep.subr.mxu0 0.0
    %1604 = vmatpush1.msra.mxu0 0.0
    %1605 = vmatprep.mubr.f32.mxu0 0.0
    %1606 = vmatmul.mubr.f32.gmra.mrb[0].mxu0 %v1536
    %v1607 = vpop.f32.mrb[0].mxu0
    %v1608 = vadd.f32 %v1534, %v1607
    %v1609 = vpop.f32.mrb[0].mxu0
    %1610 = vmatprep.mubr.f32.mxu0 0.0
    %1611 = vmatmul.mubr.f32.gmra.mrb[0].mxu0 %v1539
    %v1612 = vpop.f32.mrb[0].mxu0
    %v1613 = vadd.f32 %v1534, %v1612
    %v1614 = vpop.f32.mrb[0].mxu0
    %1615 = vdwg.mxu0
    %v1616 = vadd.f32 %v1608, %v18
    %v1617 = vadd.f32 %v1613, %v19
    %v1618 = vsel %vm50, %v1616, 0.0
    %1619 = vadd.xlane.f32.xlu0 %v1618
    %v1620 = vpop.xlane.xlu0 %1619
    %v1621 = vsel %vm50, %v1617, 0.0
    %1622 = vadd.xlane.f32.xlu0 %v1621
    %v1623 = vpop.xlane.xlu0 %1622
    %v1624 = vmul.f32 %v1620, %v57
    %v1625 = vmul.f32 %v1623, %v57
    %v1626 = vsub.f32 %v1616, %v1624
    %v1627 = vsub.f32 %v1617, %v1625
    %v1628 = vmul.f32 %v1626, %v1626
    %v1629 = vmul.f32 %v1627, %v1627
    %v1630 = vsel %vm50, %v1628, 0.0
    %1631 = vadd.xlane.f32.xlu0 %v1630
    %v1632 = vpop.xlane.xlu0 %1631
    %v1633 = vsel %vm50, %v1629, 0.0
    %1634 = vadd.xlane.f32.xlu0 %v1633
    %v1635 = vpop.xlane.xlu0 %1634
    %v1636 = vmul.f32 %v1632, %v57
    %v1637 = vmul.f32 %v1635, %v57
    %v1638 = vadd.f32 %v1636, 1e-06
    %v1639 = vadd.f32 %v1637, 1e-06
    %v1640 = vrsqrt.pop %v1638
    %v1641 = vrsqrt.pop %v1639
    %v1642 = vmul.f32 %v1626, %v1640
    %v1643 = vmul.f32 %v1627, %v1641
    %v1644 = vlaneseq
    %v1645 = vshrl.u32 %v1644, 7
    %v1646 = vsub.s32 0, %v1645
    %v1647 = vrot.slane %v34, %v1646
    %v1648 = vmul.f32 %v1642, %v1647
    %v1649 = vmul.f32 %v1643, %v1647
    %v1650 = vlaneseq
    %v1651 = vshrl.u32 %v1650, 7
    %v1652 = vsub.s32 0, %v1651
    %v1653 = vrot.slane %v35, %v1652
    %v1654 = vadd.f32 %v1648, %v1653
    %v1655 = vadd.f32 %v1649, %v1653
    %v1656 = vlaneseq
    %v1657 = vshrl.u32 %v1656, 7
    %v1658 = vsub.s32 0, %v1657
    %v1659 = vrot.slane %v40, %v1658
    %v1661 = vsel %vm50, %v1654, 0
    %v1664 = vsel %vm50, %v1655, 0
    %1666 = vmatprep.subr.mxu0 0.0
    %1667 = vmatpush1.msra.mxu0 %v36
    %1668 = vmatprep.subr.mxu0 0.0
    %1669 = vmatpush1.msra.mxu0 %v37
    %1670 = vmatprep.subr.mxu0 0.0
    %1671 = vmatpush1.msra.mxu0 %v38
    %1672 = vmatprep.subr.mxu0 0.0
    %1673 = vmatpush1.msra.mxu0 %v39
    %1674 = vmatprep.subr.mxu0 0.0
    %1675 = vmatpush1.msra.mxu0 0.0
    %1676 = vmatprep.subr.mxu0 0.0
    %1677 = vmatpush1.msra.mxu0 0.0
    %1678 = vmatprep.subr.mxu0 0.0
    %1679 = vmatpush1.msra.mxu0 0.0
    %1680 = vmatprep.subr.mxu0 0.0
    %1681 = vmatpush1.msra.mxu0 0.0
    %1682 = vmatprep.subr.mxu0 0.0
    %1683 = vmatpush1.msra.mxu0 0.0
    %1684 = vmatprep.subr.mxu0 0.0
    %1685 = vmatpush1.msra.mxu0 0.0
    %1686 = vmatprep.subr.mxu0 0.0
    %1687 = vmatpush1.msra.mxu0 0.0
    %1688 = vmatprep.subr.mxu0 0.0
    %1689 = vmatpush1.msra.mxu0 0.0
    %1690 = vmatprep.subr.mxu0 0.0
    %1691 = vmatpush1.msra.mxu0 0.0
    %1692 = vmatprep.subr.mxu0 0.0
    %1693 = vmatpush1.msra.mxu0 0.0
    %1694 = vmatprep.subr.mxu0 0.0
    %1695 = vmatpush1.msra.mxu0 0.0
    %1696 = vmatprep.subr.mxu0 0.0
    %1697 = vmatpush1.msra.mxu0 0.0
    %1698 = vmatprep.subr.mxu0 0.0
    %1699 = vmatpush1.msra.mxu0 0.0
    %1700 = vmatprep.subr.mxu0 0.0
    %1701 = vmatpush1.msra.mxu0 0.0
    %1702 = vmatprep.subr.mxu0 0.0
    %1703 = vmatpush1.msra.mxu0 0.0
    %1704 = vmatprep.subr.mxu0 0.0
    %1705 = vmatpush1.msra.mxu0 0.0
    %1706 = vmatprep.subr.mxu0 0.0
    %1707 = vmatpush1.msra.mxu0 0.0
    %1708 = vmatprep.subr.mxu0 0.0
    %1709 = vmatpush1.msra.mxu0 0.0
    %1710 = vmatprep.subr.mxu0 0.0
    %1711 = vmatpush1.msra.mxu0 0.0
    %1712 = vmatprep.subr.mxu0 0.0
    %1713 = vmatpush1.msra.mxu0 0.0
    %1714 = vmatprep.subr.mxu0 0.0
    %1715 = vmatpush1.msra.mxu0 0.0
    %1716 = vmatprep.subr.mxu0 0.0
    %1717 = vmatpush1.msra.mxu0 0.0
    %1718 = vmatprep.subr.mxu0 0.0
    %1719 = vmatpush1.msra.mxu0 0.0
    %1720 = vmatprep.subr.mxu0 0.0
    %1721 = vmatpush1.msra.mxu0 0.0
    %1722 = vmatprep.subr.mxu0 0.0
    %1723 = vmatpush1.msra.mxu0 0.0
    %1724 = vmatprep.subr.mxu0 0.0
    %1725 = vmatpush1.msra.mxu0 0.0
    %1726 = vmatprep.subr.mxu0 0.0
    %1727 = vmatpush1.msra.mxu0 0.0
    %1728 = vmatprep.subr.mxu0 0.0
    %1729 = vmatpush1.msra.mxu0 0.0
    %1730 = vmatprep.mubr.f32.mxu0 0.0
    %1731 = vmatmul.mubr.f32.gmra.mrb[0].mxu0 %v1661
    %v1732 = vpop.f32.mrb[0].mxu0
    %v1733 = vadd.f32 %v1659, %v1732
    %v1734 = vpop.f32.mrb[0].mxu0
    %1735 = vmatprep.mubr.f32.mxu0 0.0
    %1736 = vmatmul.mubr.f32.gmra.mrb[0].mxu0 %v1664
    %v1737 = vpop.f32.mrb[0].mxu0
    %v1738 = vadd.f32 %v1659, %v1737
    %v1739 = vpop.f32.mrb[0].mxu0
    %1740 = vdwg.mxu0
    %v1741 = vmax.f32 %v1733, 0.0
    %v1742 = vmax.f32 %v1738, 0.0
    %v1743 = vlaneseq
    %v1744 = vshrl.u32 %v1743, 7
    %v1745 = vsub.s32 0, %v1744
    %v1746 = vrot.slane %v49, %v1745
    %vm1747 = vcmask 523264
    %v1749 = vsel %vm1747, %v1741, 0
    %v1752 = vsel %vm1747, %v1742, 0
    %1754 = vmatprep.subr.mxu0 0.0
    %1755 = vmatpush1.msra.mxu0 %v41
    %1756 = vmatprep.subr.mxu0 0.0
    %1757 = vmatpush1.msra.mxu0 %v42
    %1758 = vmatprep.subr.mxu0 0.0
    %1759 = vmatpush1.msra.mxu0 %v43
    %1760 = vmatprep.subr.mxu0 0.0
    %1761 = vmatpush1.msra.mxu0 %v44
    %1762 = vmatprep.subr.mxu0 0.0
    %1763 = vmatpush1.msra.mxu0 %v45
    %1764 = vmatprep.subr.mxu0 0.0
    %1765 = vmatpush1.msra.mxu0 %v46
    %1766 = vmatprep.subr.mxu0 0.0
    %1767 = vmatpush1.msra.mxu0 %v47
    %1768 = vmatprep.subr.mxu0 0.0
    %1769 = vmatpush1.msra.mxu0 %v48
    %1770 = vmatprep.subr.mxu0 0.0
    %1771 = vmatpush1.msra.mxu0 0.0
    %1772 = vmatprep.subr.mxu0 0.0
    %1773 = vmatpush1.msra.mxu0 0.0
    %1774 = vmatprep.subr.mxu0 0.0
    %1775 = vmatpush1.msra.mxu0 0.0
    %1776 = vmatprep.subr.mxu0 0.0
    %1777 = vmatpush1.msra.mxu0 0.0
    %1778 = vmatprep.subr.mxu0 0.0
    %1779 = vmatpush1.msra.mxu0 0.0
    %1780 = vmatprep.subr.mxu0 0.0
    %1781 = vmatpush1.msra.mxu0 0.0
    %1782 = vmatprep.subr.mxu0 0.0
    %1783 = vmatpush1.msra.mxu0 0.0
    %1784 = vmatprep.subr.mxu0 0.0
    %1785 = vmatpush1.msra.mxu0 0.0
    %1786 = vmatprep.subr.mxu0 0.0
    %1787 = vmatpush1.msra.mxu0 0.0
    %1788 = vmatprep.subr.mxu0 0.0
    %1789 = vmatpush1.msra.mxu0 0.0
    %1790 = vmatprep.subr.mxu0 0.0
    %1791 = vmatpush1.msra.mxu0 0.0
    %1792 = vmatprep.subr.mxu0 0.0
    %1793 = vmatpush1.msra.mxu0 0.0
    %1794 = vmatprep.subr.mxu0 0.0
    %1795 = vmatpush1.msra.mxu0 0.0
    %1796 = vmatprep.subr.mxu0 0.0
    %1797 = vmatpush1.msra.mxu0 0.0
    %1798 = vmatprep.subr.mxu0 0.0
    %1799 = vmatpush1.msra.mxu0 0.0
    %1800 = vmatprep.subr.mxu0 0.0
    %1801 = vmatpush1.msra.mxu0 0.0
    %1802 = vmatprep.subr.mxu0 0.0
    %1803 = vmatpush1.msra.mxu0 0.0
    %1804 = vmatprep.subr.mxu0 0.0
    %1805 = vmatpush1.msra.mxu0 0.0
    %1806 = vmatprep.subr.mxu0 0.0
    %1807 = vmatpush1.msra.mxu0 0.0
    %1808 = vmatprep.subr.mxu0 0.0
    %1809 = vmatpush1.msra.mxu0 0.0
    %1810 = vmatprep.subr.mxu0 0.0
    %1811 = vmatpush1.msra.mxu0 0.0
    %1812 = vmatprep.subr.mxu0 0.0
    %1813 = vmatpush1.msra.mxu0 0.0
    %1814 = vmatprep.subr.mxu0 0.0
    %1815 = vmatpush1.msra.mxu0 0.0
    %1816 = vmatprep.subr.mxu0 0.0
    %1817 = vmatpush1.msra.mxu0 0.0
    %1818 = vmatprep.mubr.f32.mxu0 0.0
    %1819 = vmatmul.mubr.f32.gmra.mrb[0].mxu0 %v1749
    %v1820 = vpop.f32.mrb[0].mxu0
    %v1821 = vadd.f32 %v1746, %v1820
    %v1822 = vpop.f32.mrb[0].mxu0
    %1823 = vmatprep.mubr.f32.mxu0 0.0
    %1824 = vmatmul.mubr.f32.gmra.mrb[0].mxu0 %v1752
    %v1825 = vpop.f32.mrb[0].mxu0
    %v1826 = vadd.f32 %v1746, %v1825
    %v1827 = vpop.f32.mrb[0].mxu0
    %1828 = vdwg.mxu0
    %v1829 = vadd.f32 %v1821, %v1616
    %v1830 = vadd.f32 %v1826, %v1617
    %v1831 = vld [vmem:[%s2 + $0xa8] sm:$0x1]
    %v1832 = vld [vmem:[%s2 + $0xa9] sm:$0x1]
    %v1833 = vld [vmem:[%s2 + $0xab] sm:$0xff]
    %v1834 = vld [vmem:[%s2 + $0xb3] sm:$0xff]
    %v1835 = vld [vmem:[%s2 + $0xbb] sm:$0xff]
    %v1836 = vld [vmem:[%s2 + $0xc3] sm:$0xff]
    %v1837 = vld [vmem:[%s2 + $0xaa] sm:$0x1]
    %v1838 = vld [vmem:[%s2 + $0xcb] sm:$0xff]
    %v1839 = vld [vmem:[%s2 + $0xd3] sm:$0xff]
    %v1840 = vld [vmem:[%s2 + $0xdb] sm:$0xff]
    %v1841 = vld [vmem:[%s2 + $0xe3] sm:$0xff]
    %v1842 = vld [vmem:[%s2 + $0xeb] sm:$0x1]
    %v1843 = vld [vmem:[%s2 + $0xec] sm:$0x1]
    %v1844 = vld [vmem:[%s2 + $0xed] sm:$0x1]
    %v1845 = vld [vmem:[%s2 + $0xee] sm:$0xff]
    %v1846 = vld [vmem:[%s2 + $0xf6] sm:$0xff]
    %v1847 = vld [vmem:[%s2 + $0xfe] sm:$0xff]
    %v1848 = vld [vmem:[%s2 + $0x106] sm:$0xff]
    %v1849 = vld [vmem:[%s2 + $0x10e] sm:$0x1]
    %v1850 = vld [vmem:[%s2 + $0x10f] sm:$0xff]
    %v1851 = vld [vmem:[%s2 + $0x117] sm:$0xff]
    %v1852 = vld [vmem:[%s2 + $0x11f] sm:$0xff]
    %v1853 = vld [vmem:[%s2 + $0x127] sm:$0xff]
    %v1854 = vld [vmem:[%s2 + $0x12f] sm:$0xff]
    %v1855 = vld [vmem:[%s2 + $0x137] sm:$0xff]
    %v1856 = vld [vmem:[%s2 + $0x13f] sm:$0xff]
    %v1857 = vld [vmem:[%s2 + $0x147] sm:$0xff]
    %v1858 = vld [vmem:[%s2 + $0x14f] sm:$0x1]
    %v1859 = vsel %vm50, %v1829, 0.0
    %1860 = vadd.xlane.f32.xlu0 %v1859
    %v1861 = vpop.xlane.xlu0 %1860
    %v1862 = vsel %vm50, %v1830, 0.0
    %1863 = vadd.xlane.f32.xlu0 %v1862
    %v1864 = vpop.xlane.xlu0 %1863
    %v1865 = vmul.f32 %v1861, %v57
    %v1866 = vmul.f32 %v1864, %v57
    %v1867 = vsub.f32 %v1829, %v1865
    %v1868 = vsub.f32 %v1830, %v1866
    %v1869 = vmul.f32 %v1867, %v1867
    %v1870 = vmul.f32 %v1868, %v1868
    %v1871 = vsel %vm50, %v1869, 0.0
    %1872 = vadd.xlane.f32.xlu0 %v1871
    %v1873 = vpop.xlane.xlu0 %1872
    %v1874 = vsel %vm50, %v1870, 0.0
    %1875 = vadd.xlane.f32.xlu0 %v1874
    %v1876 = vpop.xlane.xlu0 %1875
    %v1877 = vmul.f32 %v1873, %v57
    %v1878 = vmul.f32 %v1876, %v57
    %v1879 = vadd.f32 %v1877, 1e-06
    %v1880 = vadd.f32 %v1878, 1e-06
    %v1881 = vrsqrt.pop %v1879
    %v1882 = vrsqrt.pop %v1880
    %v1883 = vmul.f32 %v1867, %v1881
    %v1884 = vmul.f32 %v1868, %v1882
    %v1885 = vlaneseq
    %v1886 = vshrl.u32 %v1885, 7
    %v1887 = vsub.s32 0, %v1886
    %v1888 = vrot.slane %v1831, %v1887
    %v1889 = vmul.f32 %v1883, %v1888
    %v1890 = vmul.f32 %v1884, %v1888
    %v1891 = vlaneseq
    %v1892 = vshrl.u32 %v1891, 7
    %v1893 = vsub.s32 0, %v1892
    %v1894 = vrot.slane %v1832, %v1893
    %v1895 = vadd.f32 %v1889, %v1894
    %v1896 = vadd.f32 %v1890, %v1894
    %v1897 = vlaneseq
    %v1898 = vshrl.u32 %v1897, 7
    %v1899 = vsub.s32 0, %v1898
    %v1900 = vrot.slane %v1837, %v1899
    %v1902 = vsel %vm50, %v1895, 0
    %v1905 = vsel %vm50, %v1896, 0
    %1907 = vmatprep.subr.mxu0 0.0
    %1908 = vmatpush1.msra.mxu0 %v1833
    %1909 = vmatprep.subr.mxu0 0.0
    %1910 = vmatpush1.msra.mxu0 %v1834
    %1911 = vmatprep.subr.mxu0 0.0
    %1912 = vmatpush1.msra.mxu0 %v1835
    %1913 = vmatprep.subr.mxu0 0.0
    %1914 = vmatpush1.msra.mxu0 %v1836
    %1915 = vmatprep.subr.mxu0 0.0
    %1916 = vmatpush1.msra.mxu0 0.0
    %1917 = vmatprep.subr.mxu0 0.0
    %1918 = vmatpush1.msra.mxu0 0.0
    %1919 = vmatprep.subr.mxu0 0.0
    %1920 = vmatpush1.msra.mxu0 0.0
    %1921 = vmatprep.subr.mxu0 0.0
    %1922 = vmatpush1.msra.mxu0 0.0
    %1923 = vmatprep.subr.mxu0 0.0
    %1924 = vmatpush1.msra.mxu0 0.0
    %1925 = vmatprep.subr.mxu0 0.0
    %1926 = vmatpush1.msra.mxu0 0.0
    %1927 = vmatprep.subr.mxu0 0.0
    %1928 = vmatpush1.msra.mxu0 0.0
    %1929 = vmatprep.subr.mxu0 0.0
    %1930 = vmatpush1.msra.mxu0 0.0
    %1931 = vmatprep.subr.mxu0 0.0
    %1932 = vmatpush1.msra.mxu0 0.0
    %1933 = vmatprep.subr.mxu0 0.0
    %1934 = vmatpush1.msra.mxu0 0.0
    %1935 = vmatprep.subr.mxu0 0.0
    %1936 = vmatpush1.msra.mxu0 0.0
    %1937 = vmatprep.subr.mxu0 0.0
    %1938 = vmatpush1.msra.mxu0 0.0
    %1939 = vmatprep.subr.mxu0 0.0
    %1940 = vmatpush1.msra.mxu0 0.0
    %1941 = vmatprep.subr.mxu0 0.0
    %1942 = vmatpush1.msra.mxu0 0.0
    %1943 = vmatprep.subr.mxu0 0.0
    %1944 = vmatpush1.msra.mxu0 0.0
    %1945 = vmatprep.subr.mxu0 0.0
    %1946 = vmatpush1.msra.mxu0 0.0
    %1947 = vmatprep.subr.mxu0 0.0
    %1948 = vmatpush1.msra.mxu0 0.0
    %1949 = vmatprep.subr.mxu0 0.0
    %1950 = vmatpush1.msra.mxu0 0.0
    %1951 = vmatprep.subr.mxu0 0.0
    %1952 = vmatpush1.msra.mxu0 0.0
    %1953 = vmatprep.subr.mxu0 0.0
    %1954 = vmatpush1.msra.mxu0 0.0
    %1955 = vmatprep.subr.mxu0 0.0
    %1956 = vmatpush1.msra.mxu0 0.0
    %1957 = vmatprep.subr.mxu0 0.0
    %1958 = vmatpush1.msra.mxu0 0.0
    %1959 = vmatprep.subr.mxu0 0.0
    %1960 = vmatpush1.msra.mxu0 0.0
    %1961 = vmatprep.subr.mxu0 0.0
    %1962 = vmatpush1.msra.mxu0 0.0
    %1963 = vmatprep.subr.mxu0 0.0
    %1964 = vmatpush1.msra.mxu0 0.0
    %1965 = vmatprep.subr.mxu0 0.0
    %1966 = vmatpush1.msra.mxu0 0.0
    %1967 = vmatprep.subr.mxu0 0.0
    %1968 = vmatpush1.msra.mxu0 0.0
    %1969 = vmatprep.subr.mxu0 0.0
    %1970 = vmatpush1.msra.mxu0 0.0
    %1971 = vmatprep.mubr.f32.mxu0 0.0
    %1972 = vmatmul.mubr.f32.gmra.mrb[0].mxu0 %v1902
    %v1973 = vpop.f32.mrb[0].mxu0
    %v1974 = vadd.f32 %v1900, %v1973
    %v1975 = vpop.f32.mrb[0].mxu0
    %1976 = vmatprep.mubr.f32.mxu0 0.0
    %1977 = vmatmul.mubr.f32.gmra.mrb[0].mxu0 %v1905
    %v1978 = vpop.f32.mrb[0].mxu0
    %v1979 = vadd.f32 %v1900, %v1978
    %v1980 = vpop.f32.mrb[0].mxu0
    %1981 = vdwg.mxu0
    %1984 = vrot.lane.b32.xlu0 %v1974, 120
    %v1985 = vpop.permute.xlu0 %1984
    %1986 = vrot.lane.b32.xlu0 %v1979, 120
    %v1987 = vpop.permute.xlu0 %1986
    %1988 = vrot.lane.b32.xlu0 %v1974, 112
    %v1989 = vpop.permute.xlu0 %1988
    %1990 = vrot.lane.b32.xlu0 %v1979, 112
    %v1991 = vpop.permute.xlu0 %1990
    %1992 = vrot.lane.b32.xlu0 %v1974, 104
    %v1993 = vpop.permute.xlu0 %1992
    %1994 = vrot.lane.b32.xlu0 %v1979, 104
    %v1995 = vpop.permute.xlu0 %1994
    %1996 = vrot.lane.b32.xlu0 %v1974, 96
    %v1997 = vpop.permute.xlu0 %1996
    %v1998 = vsel %vm191, %v1974, 0
    %v2000 = vsel %vm191, %v1997, 0
    %2002 = vmatprep.subr.mxu0 0.0
    %2003 = vmatpush1.xpose.msra.mxu0 %v2000
    %2004 = vmatprep.subr.mxu0 0.0
    %2005 = vmatpush1.xpose.msra.mxu0 0.0
    %2006 = vmatprep.subr.mxu0 0.0
    %2007 = vmatpush1.xpose.msra.mxu0 0.0
    %2008 = vmatprep.subr.mxu0 0.0
    %2009 = vmatpush1.xpose.msra.mxu0 0.0
    %2010 = vmatprep.subr.mxu0 0.0
    %2011 = vmatpush1.xpose.msra.mxu0 0.0
    %2012 = vmatprep.subr.mxu0 0.0
    %2013 = vmatpush1.xpose.msra.mxu0 0.0
    %2014 = vmatprep.subr.mxu0 0.0
    %2015 = vmatpush1.xpose.msra.mxu0 0.0
    %2016 = vmatprep.subr.mxu0 0.0
    %2017 = vmatpush1.xpose.msra.mxu0 0.0
    %2018 = vmatprep.subr.mxu0 0.0
    %2019 = vmatpush1.xpose.msra.mxu0 0.0
    %2020 = vmatprep.subr.mxu0 0.0
    %2021 = vmatpush1.xpose.msra.mxu0 0.0
    %2022 = vmatprep.subr.mxu0 0.0
    %2023 = vmatpush1.xpose.msra.mxu0 0.0
    %2024 = vmatprep.subr.mxu0 0.0
    %2025 = vmatpush1.xpose.msra.mxu0 0.0
    %2026 = vmatprep.subr.mxu0 0.0
    %2027 = vmatpush1.xpose.msra.mxu0 0.0
    %2028 = vmatprep.subr.mxu0 0.0
    %2029 = vmatpush1.xpose.msra.mxu0 0.0
    %2030 = vmatprep.subr.mxu0 0.0
    %2031 = vmatpush1.xpose.msra.mxu0 0.0
    %2032 = vmatprep.subr.mxu0 0.0
    %2033 = vmatpush1.xpose.msra.mxu0 0.0
    %2034 = vmatprep.subr.mxu0 0.0
    %2035 = vmatpush1.xpose.msra.mxu0 0.0
    %2036 = vmatprep.subr.mxu0 0.0
    %2037 = vmatpush1.xpose.msra.mxu0 0.0
    %2038 = vmatprep.subr.mxu0 0.0
    %2039 = vmatpush1.xpose.msra.mxu0 0.0
    %2040 = vmatprep.subr.mxu0 0.0
    %2041 = vmatpush1.xpose.msra.mxu0 0.0
    %2042 = vmatprep.subr.mxu0 0.0
    %2043 = vmatpush1.xpose.msra.mxu0 0.0
    %2044 = vmatprep.subr.mxu0 0.0
    %2045 = vmatpush1.xpose.msra.mxu0 0.0
    %2046 = vmatprep.subr.mxu0 0.0
    %2047 = vmatpush1.xpose.msra.mxu0 0.0
    %2048 = vmatprep.subr.mxu0 0.0
    %2049 = vmatpush1.xpose.msra.mxu0 0.0
    %2050 = vmatprep.subr.mxu0 0.0
    %2051 = vmatpush1.xpose.msra.mxu0 0.0
    %2052 = vmatprep.subr.mxu0 0.0
    %2053 = vmatpush1.xpose.msra.mxu0 0.0
    %2054 = vmatprep.subr.mxu0 0.0
    %2055 = vmatpush1.xpose.msra.mxu0 0.0
    %2056 = vmatprep.subr.mxu0 0.0
    %2057 = vmatpush1.xpose.msra.mxu0 0.0
    %2058 = vmatprep.subr.mxu0 0.0
    %2059 = vmatpush1.xpose.msra.mxu0 0.0
    %2060 = vmatprep.subr.mxu0 0.0
    %2061 = vmatpush1.xpose.msra.mxu0 0.0
    %2062 = vmatprep.subr.mxu0 0.0
    %2063 = vmatpush1.xpose.msra.mxu0 0.0
    %2064 = vmatprep.subr.mxu0 0.0
    %2065 = vmatpush1.xpose.msra.mxu0 0.0
    %2066 = vmatprep.mubr.f32.mxu0 0.0
    %2067 = vmatmul.mubr.f32.gmra.mrb[0].mxu0 %v1998
    %v2068 = vpop.f32.mrb[0].mxu0
    %v2069 = vadd.f32 %v20, %v2068
    %v2070 = vpop.f32.mrb[0].mxu0
    %2071 = vdwg.mxu0
    %2072 = vrot.lane.b32.xlu0 %v1979, 96
    %v2073 = vpop.permute.xlu0 %2072
    %v2074 = vsel %vm191, %v1979, 0
    %v2076 = vsel %vm191, %v2073, 0
    %2078 = vmatprep.subr.mxu0 0.0
    %2079 = vmatpush1.xpose.msra.mxu0 %v2076
    %2080 = vmatprep.subr.mxu0 0.0
    %2081 = vmatpush1.xpose.msra.mxu0 0.0
    %2082 = vmatprep.subr.mxu0 0.0
    %2083 = vmatpush1.xpose.msra.mxu0 0.0
    %2084 = vmatprep.subr.mxu0 0.0
    %2085 = vmatpush1.xpose.msra.mxu0 0.0
    %2086 = vmatprep.subr.mxu0 0.0
    %2087 = vmatpush1.xpose.msra.mxu0 0.0
    %2088 = vmatprep.subr.mxu0 0.0
    %2089 = vmatpush1.xpose.msra.mxu0 0.0
    %2090 = vmatprep.subr.mxu0 0.0
    %2091 = vmatpush1.xpose.msra.mxu0 0.0
    %2092 = vmatprep.subr.mxu0 0.0
    %2093 = vmatpush1.xpose.msra.mxu0 0.0
    %2094 = vmatprep.subr.mxu0 0.0
    %2095 = vmatpush1.xpose.msra.mxu0 0.0
    %2096 = vmatprep.subr.mxu0 0.0
    %2097 = vmatpush1.xpose.msra.mxu0 0.0
    %2098 = vmatprep.subr.mxu0 0.0
    %2099 = vmatpush1.xpose.msra.mxu0 0.0
    %2100 = vmatprep.subr.mxu0 0.0
    %2101 = vmatpush1.xpose.msra.mxu0 0.0
    %2102 = vmatprep.subr.mxu0 0.0
    %2103 = vmatpush1.xpose.msra.mxu0 0.0
    %2104 = vmatprep.subr.mxu0 0.0
    %2105 = vmatpush1.xpose.msra.mxu0 0.0
    %2106 = vmatprep.subr.mxu0 0.0
    %2107 = vmatpush1.xpose.msra.mxu0 0.0
    %2108 = vmatprep.subr.mxu0 0.0
    %2109 = vmatpush1.xpose.msra.mxu0 0.0
    %2110 = vmatprep.subr.mxu0 0.0
    %2111 = vmatpush1.xpose.msra.mxu0 0.0
    %2112 = vmatprep.subr.mxu0 0.0
    %2113 = vmatpush1.xpose.msra.mxu0 0.0
    %2114 = vmatprep.subr.mxu0 0.0
    %2115 = vmatpush1.xpose.msra.mxu0 0.0
    %2116 = vmatprep.subr.mxu0 0.0
    %2117 = vmatpush1.xpose.msra.mxu0 0.0
    %2118 = vmatprep.subr.mxu0 0.0
    %2119 = vmatpush1.xpose.msra.mxu0 0.0
    %2120 = vmatprep.subr.mxu0 0.0
    %2121 = vmatpush1.xpose.msra.mxu0 0.0
    %2122 = vmatprep.subr.mxu0 0.0
    %2123 = vmatpush1.xpose.msra.mxu0 0.0
    %2124 = vmatprep.subr.mxu0 0.0
    %2125 = vmatpush1.xpose.msra.mxu0 0.0
    %2126 = vmatprep.subr.mxu0 0.0
    %2127 = vmatpush1.xpose.msra.mxu0 0.0
    %2128 = vmatprep.subr.mxu0 0.0
    %2129 = vmatpush1.xpose.msra.mxu0 0.0
    %2130 = vmatprep.subr.mxu0 0.0
    %2131 = vmatpush1.xpose.msra.mxu0 0.0
    %2132 = vmatprep.subr.mxu0 0.0
    %2133 = vmatpush1.xpose.msra.mxu0 0.0
    %2134 = vmatprep.subr.mxu0 0.0
    %2135 = vmatpush1.xpose.msra.mxu0 0.0
    %2136 = vmatprep.subr.mxu0 0.0
    %2137 = vmatpush1.xpose.msra.mxu0 0.0
    %2138 = vmatprep.subr.mxu0 0.0
    %2139 = vmatpush1.xpose.msra.mxu0 0.0
    %2140 = vmatprep.subr.mxu0 0.0
    %2141 = vmatpush1.xpose.msra.mxu0 0.0
    %2142 = vmatprep.mubr.f32.mxu0 0.0
    %2143 = vmatmul.mubr.f32.gmra.mrb[0].mxu0 %v2074
    %v2144 = vpop.f32.mrb[0].mxu0
    %v2145 = vadd.f32 %v21, %v2144
    %v2146 = vpop.f32.mrb[0].mxu0
    %2147 = vdwg.mxu0
    %2148 = vrot.lane.b32.xlu0 %v1985, 96
    %v2149 = vpop.permute.xlu0 %2148
    %v2150 = vsel %vm191, %v1985, 0
    %v2152 = vsel %vm191, %v2149, 0
    %2154 = vmatprep.subr.mxu0 0.0
    %2155 = vmatpush1.xpose.msra.mxu0 %v2152
    %2156 = vmatprep.subr.mxu0 0.0
    %2157 = vmatpush1.xpose.msra.mxu0 0.0
    %2158 = vmatprep.subr.mxu0 0.0
    %2159 = vmatpush1.xpose.msra.mxu0 0.0
    %2160 = vmatprep.subr.mxu0 0.0
    %2161 = vmatpush1.xpose.msra.mxu0 0.0
    %2162 = vmatprep.subr.mxu0 0.0
    %2163 = vmatpush1.xpose.msra.mxu0 0.0
    %2164 = vmatprep.subr.mxu0 0.0
    %2165 = vmatpush1.xpose.msra.mxu0 0.0
    %2166 = vmatprep.subr.mxu0 0.0
    %2167 = vmatpush1.xpose.msra.mxu0 0.0
    %2168 = vmatprep.subr.mxu0 0.0
    %2169 = vmatpush1.xpose.msra.mxu0 0.0
    %2170 = vmatprep.subr.mxu0 0.0
    %2171 = vmatpush1.xpose.msra.mxu0 0.0
    %2172 = vmatprep.subr.mxu0 0.0
    %2173 = vmatpush1.xpose.msra.mxu0 0.0
    %2174 = vmatprep.subr.mxu0 0.0
    %2175 = vmatpush1.xpose.msra.mxu0 0.0
    %2176 = vmatprep.subr.mxu0 0.0
    %2177 = vmatpush1.xpose.msra.mxu0 0.0
    %2178 = vmatprep.subr.mxu0 0.0
    %2179 = vmatpush1.xpose.msra.mxu0 0.0
    %2180 = vmatprep.subr.mxu0 0.0
    %2181 = vmatpush1.xpose.msra.mxu0 0.0
    %2182 = vmatprep.subr.mxu0 0.0
    %2183 = vmatpush1.xpose.msra.mxu0 0.0
    %2184 = vmatprep.subr.mxu0 0.0
    %2185 = vmatpush1.xpose.msra.mxu0 0.0
    %2186 = vmatprep.subr.mxu0 0.0
    %2187 = vmatpush1.xpose.msra.mxu0 0.0
    %2188 = vmatprep.subr.mxu0 0.0
    %2189 = vmatpush1.xpose.msra.mxu0 0.0
    %2190 = vmatprep.subr.mxu0 0.0
    %2191 = vmatpush1.xpose.msra.mxu0 0.0
    %2192 = vmatprep.subr.mxu0 0.0
    %2193 = vmatpush1.xpose.msra.mxu0 0.0
    %2194 = vmatprep.subr.mxu0 0.0
    %2195 = vmatpush1.xpose.msra.mxu0 0.0
    %2196 = vmatprep.subr.mxu0 0.0
    %2197 = vmatpush1.xpose.msra.mxu0 0.0
    %2198 = vmatprep.subr.mxu0 0.0
    %2199 = vmatpush1.xpose.msra.mxu0 0.0
    %2200 = vmatprep.subr.mxu0 0.0
    %2201 = vmatpush1.xpose.msra.mxu0 0.0
    %2202 = vmatprep.subr.mxu0 0.0
    %2203 = vmatpush1.xpose.msra.mxu0 0.0
    %2204 = vmatprep.subr.mxu0 0.0
    %2205 = vmatpush1.xpose.msra.mxu0 0.0
    %2206 = vmatprep.subr.mxu0 0.0
    %2207 = vmatpush1.xpose.msra.mxu0 0.0
    %2208 = vmatprep.subr.mxu0 0.0
    %2209 = vmatpush1.xpose.msra.mxu0 0.0
    %2210 = vmatprep.subr.mxu0 0.0
    %2211 = vmatpush1.xpose.msra.mxu0 0.0
    %2212 = vmatprep.subr.mxu0 0.0
    %2213 = vmatpush1.xpose.msra.mxu0 0.0
    %2214 = vmatprep.subr.mxu0 0.0
    %2215 = vmatpush1.xpose.msra.mxu0 0.0
    %2216 = vmatprep.subr.mxu0 0.0
    %2217 = vmatpush1.xpose.msra.mxu0 0.0
    %2218 = vmatprep.mubr.f32.mxu0 0.0
    %2219 = vmatmul.mubr.f32.gmra.mrb[0].mxu0 %v2150
    %v2220 = vpop.f32.mrb[0].mxu0
    %v2221 = vadd.f32 %v20, %v2220
    %v2222 = vpop.f32.mrb[0].mxu0
    %2223 = vdwg.mxu0
    %2224 = vrot.lane.b32.xlu0 %v1987, 96
    %v2225 = vpop.permute.xlu0 %2224
    %v2226 = vsel %vm191, %v1987, 0
    %v2228 = vsel %vm191, %v2225, 0
    %2230 = vmatprep.subr.mxu0 0.0
    %2231 = vmatpush1.xpose.msra.mxu0 %v2228
    %2232 = vmatprep.subr.mxu0 0.0
    %2233 = vmatpush1.xpose.msra.mxu0 0.0
    %2234 = vmatprep.subr.mxu0 0.0
    %2235 = vmatpush1.xpose.msra.mxu0 0.0
    %2236 = vmatprep.subr.mxu0 0.0
    %2237 = vmatpush1.xpose.msra.mxu0 0.0
    %2238 = vmatprep.subr.mxu0 0.0
    %2239 = vmatpush1.xpose.msra.mxu0 0.0
    %2240 = vmatprep.subr.mxu0 0.0
    %2241 = vmatpush1.xpose.msra.mxu0 0.0
    %2242 = vmatprep.subr.mxu0 0.0
    %2243 = vmatpush1.xpose.msra.mxu0 0.0
    %2244 = vmatprep.subr.mxu0 0.0
    %2245 = vmatpush1.xpose.msra.mxu0 0.0
    %2246 = vmatprep.subr.mxu0 0.0
    %2247 = vmatpush1.xpose.msra.mxu0 0.0
    %2248 = vmatprep.subr.mxu0 0.0
    %2249 = vmatpush1.xpose.msra.mxu0 0.0
    %2250 = vmatprep.subr.mxu0 0.0
    %2251 = vmatpush1.xpose.msra.mxu0 0.0
    %2252 = vmatprep.subr.mxu0 0.0
    %2253 = vmatpush1.xpose.msra.mxu0 0.0
    %2254 = vmatprep.subr.mxu0 0.0
    %2255 = vmatpush1.xpose.msra.mxu0 0.0
    %2256 = vmatprep.subr.mxu0 0.0
    %2257 = vmatpush1.xpose.msra.mxu0 0.0
    %2258 = vmatprep.subr.mxu0 0.0
    %2259 = vmatpush1.xpose.msra.mxu0 0.0
    %2260 = vmatprep.subr.mxu0 0.0
    %2261 = vmatpush1.xpose.msra.mxu0 0.0
    %2262 = vmatprep.subr.mxu0 0.0
    %2263 = vmatpush1.xpose.msra.mxu0 0.0
    %2264 = vmatprep.subr.mxu0 0.0
    %2265 = vmatpush1.xpose.msra.mxu0 0.0
    %2266 = vmatprep.subr.mxu0 0.0
    %2267 = vmatpush1.xpose.msra.mxu0 0.0
    %2268 = vmatprep.subr.mxu0 0.0
    %2269 = vmatpush1.xpose.msra.mxu0 0.0
    %2270 = vmatprep.subr.mxu0 0.0
    %2271 = vmatpush1.xpose.msra.mxu0 0.0
    %2272 = vmatprep.subr.mxu0 0.0
    %2273 = vmatpush1.xpose.msra.mxu0 0.0
    %2274 = vmatprep.subr.mxu0 0.0
    %2275 = vmatpush1.xpose.msra.mxu0 0.0
    %2276 = vmatprep.subr.mxu0 0.0
    %2277 = vmatpush1.xpose.msra.mxu0 0.0
    %2278 = vmatprep.subr.mxu0 0.0
    %2279 = vmatpush1.xpose.msra.mxu0 0.0
    %2280 = vmatprep.subr.mxu0 0.0
    %2281 = vmatpush1.xpose.msra.mxu0 0.0
    %2282 = vmatprep.subr.mxu0 0.0
    %2283 = vmatpush1.xpose.msra.mxu0 0.0
    %2284 = vmatprep.subr.mxu0 0.0
    %2285 = vmatpush1.xpose.msra.mxu0 0.0
    %2286 = vmatprep.subr.mxu0 0.0
    %2287 = vmatpush1.xpose.msra.mxu0 0.0
    %2288 = vmatprep.subr.mxu0 0.0
    %2289 = vmatpush1.xpose.msra.mxu0 0.0
    %2290 = vmatprep.subr.mxu0 0.0
    %2291 = vmatpush1.xpose.msra.mxu0 0.0
    %2292 = vmatprep.subr.mxu0 0.0
    %2293 = vmatpush1.xpose.msra.mxu0 0.0
    %2294 = vmatprep.mubr.f32.mxu0 0.0
    %2295 = vmatmul.mubr.f32.gmra.mrb[0].mxu0 %v2226
    %v2296 = vpop.f32.mrb[0].mxu0
    %v2297 = vadd.f32 %v21, %v2296
    %v2298 = vpop.f32.mrb[0].mxu0
    %2299 = vdwg.mxu0
    %2300 = vrot.lane.b32.xlu0 %v1989, 96
    %v2301 = vpop.permute.xlu0 %2300
    %v2302 = vsel %vm191, %v1989, 0
    %v2304 = vsel %vm191, %v2301, 0
    %2306 = vmatprep.subr.mxu0 0.0
    %2307 = vmatpush1.xpose.msra.mxu0 %v2304
    %2308 = vmatprep.subr.mxu0 0.0
    %2309 = vmatpush1.xpose.msra.mxu0 0.0
    %2310 = vmatprep.subr.mxu0 0.0
    %2311 = vmatpush1.xpose.msra.mxu0 0.0
    %2312 = vmatprep.subr.mxu0 0.0
    %2313 = vmatpush1.xpose.msra.mxu0 0.0
    %2314 = vmatprep.subr.mxu0 0.0
    %2315 = vmatpush1.xpose.msra.mxu0 0.0
    %2316 = vmatprep.subr.mxu0 0.0
    %2317 = vmatpush1.xpose.msra.mxu0 0.0
    %2318 = vmatprep.subr.mxu0 0.0
    %2319 = vmatpush1.xpose.msra.mxu0 0.0
    %2320 = vmatprep.subr.mxu0 0.0
    %2321 = vmatpush1.xpose.msra.mxu0 0.0
    %2322 = vmatprep.subr.mxu0 0.0
    %2323 = vmatpush1.xpose.msra.mxu0 0.0
    %2324 = vmatprep.subr.mxu0 0.0
    %2325 = vmatpush1.xpose.msra.mxu0 0.0
    %2326 = vmatprep.subr.mxu0 0.0
    %2327 = vmatpush1.xpose.msra.mxu0 0.0
    %2328 = vmatprep.subr.mxu0 0.0
    %2329 = vmatpush1.xpose.msra.mxu0 0.0
    %2330 = vmatprep.subr.mxu0 0.0
    %2331 = vmatpush1.xpose.msra.mxu0 0.0
    %2332 = vmatprep.subr.mxu0 0.0
    %2333 = vmatpush1.xpose.msra.mxu0 0.0
    %2334 = vmatprep.subr.mxu0 0.0
    %2335 = vmatpush1.xpose.msra.mxu0 0.0
    %2336 = vmatprep.subr.mxu0 0.0
    %2337 = vmatpush1.xpose.msra.mxu0 0.0
    %2338 = vmatprep.subr.mxu0 0.0
    %2339 = vmatpush1.xpose.msra.mxu0 0.0
    %2340 = vmatprep.subr.mxu0 0.0
    %2341 = vmatpush1.xpose.msra.mxu0 0.0
    %2342 = vmatprep.subr.mxu0 0.0
    %2343 = vmatpush1.xpose.msra.mxu0 0.0
    %2344 = vmatprep.subr.mxu0 0.0
    %2345 = vmatpush1.xpose.msra.mxu0 0.0
    %2346 = vmatprep.subr.mxu0 0.0
    %2347 = vmatpush1.xpose.msra.mxu0 0.0
    %2348 = vmatprep.subr.mxu0 0.0
    %2349 = vmatpush1.xpose.msra.mxu0 0.0
    %2350 = vmatprep.subr.mxu0 0.0
    %2351 = vmatpush1.xpose.msra.mxu0 0.0
    %2352 = vmatprep.subr.mxu0 0.0
    %2353 = vmatpush1.xpose.msra.mxu0 0.0
    %2354 = vmatprep.subr.mxu0 0.0
    %2355 = vmatpush1.xpose.msra.mxu0 0.0
    %2356 = vmatprep.subr.mxu0 0.0
    %2357 = vmatpush1.xpose.msra.mxu0 0.0
    %2358 = vmatprep.subr.mxu0 0.0
    %2359 = vmatpush1.xpose.msra.mxu0 0.0
    %2360 = vmatprep.subr.mxu0 0.0
    %2361 = vmatpush1.xpose.msra.mxu0 0.0
    %2362 = vmatprep.subr.mxu0 0.0
    %2363 = vmatpush1.xpose.msra.mxu0 0.0
    %2364 = vmatprep.subr.mxu0 0.0
    %2365 = vmatpush1.xpose.msra.mxu0 0.0
    %2366 = vmatprep.subr.mxu0 0.0
    %2367 = vmatpush1.xpose.msra.mxu0 0.0
    %2368 = vmatprep.subr.mxu0 0.0
    %2369 = vmatpush1.xpose.msra.mxu0 0.0
    %2370 = vmatprep.mubr.f32.mxu0 0.0
    %2371 = vmatmul.mubr.f32.gmra.mrb[0].mxu0 %v2302
    %v2372 = vpop.f32.mrb[0].mxu0
    %v2373 = vadd.f32 %v20, %v2372
    %v2374 = vpop.f32.mrb[0].mxu0
    %2375 = vdwg.mxu0
    %2376 = vrot.lane.b32.xlu0 %v1991, 96
    %v2377 = vpop.permute.xlu0 %2376
    %v2378 = vsel %vm191, %v1991, 0
    %v2380 = vsel %vm191, %v2377, 0
    %2382 = vmatprep.subr.mxu0 0.0
    %2383 = vmatpush1.xpose.msra.mxu0 %v2380
    %2384 = vmatprep.subr.mxu0 0.0
    %2385 = vmatpush1.xpose.msra.mxu0 0.0
    %2386 = vmatprep.subr.mxu0 0.0
    %2387 = vmatpush1.xpose.msra.mxu0 0.0
    %2388 = vmatprep.subr.mxu0 0.0
    %2389 = vmatpush1.xpose.msra.mxu0 0.0
    %2390 = vmatprep.subr.mxu0 0.0
    %2391 = vmatpush1.xpose.msra.mxu0 0.0
    %2392 = vmatprep.subr.mxu0 0.0
    %2393 = vmatpush1.xpose.msra.mxu0 0.0
    %2394 = vmatprep.subr.mxu0 0.0
    %2395 = vmatpush1.xpose.msra.mxu0 0.0
    %2396 = vmatprep.subr.mxu0 0.0
    %2397 = vmatpush1.xpose.msra.mxu0 0.0
    %2398 = vmatprep.subr.mxu0 0.0
    %2399 = vmatpush1.xpose.msra.mxu0 0.0
    %2400 = vmatprep.subr.mxu0 0.0
    %2401 = vmatpush1.xpose.msra.mxu0 0.0
    %2402 = vmatprep.subr.mxu0 0.0
    %2403 = vmatpush1.xpose.msra.mxu0 0.0
    %2404 = vmatprep.subr.mxu0 0.0
    %2405 = vmatpush1.xpose.msra.mxu0 0.0
    %2406 = vmatprep.subr.mxu0 0.0
    %2407 = vmatpush1.xpose.msra.mxu0 0.0
    %2408 = vmatprep.subr.mxu0 0.0
    %2409 = vmatpush1.xpose.msra.mxu0 0.0
    %2410 = vmatprep.subr.mxu0 0.0
    %2411 = vmatpush1.xpose.msra.mxu0 0.0
    %2412 = vmatprep.subr.mxu0 0.0
    %2413 = vmatpush1.xpose.msra.mxu0 0.0
    %2414 = vmatprep.subr.mxu0 0.0
    %2415 = vmatpush1.xpose.msra.mxu0 0.0
    %2416 = vmatprep.subr.mxu0 0.0
    %2417 = vmatpush1.xpose.msra.mxu0 0.0
    %2418 = vmatprep.subr.mxu0 0.0
    %2419 = vmatpush1.xpose.msra.mxu0 0.0
    %2420 = vmatprep.subr.mxu0 0.0
    %2421 = vmatpush1.xpose.msra.mxu0 0.0
    %2422 = vmatprep.subr.mxu0 0.0
    %2423 = vmatpush1.xpose.msra.mxu0 0.0
    %2424 = vmatprep.subr.mxu0 0.0
    %2425 = vmatpush1.xpose.msra.mxu0 0.0
    %2426 = vmatprep.subr.mxu0 0.0
    %2427 = vmatpush1.xpose.msra.mxu0 0.0
    %2428 = vmatprep.subr.mxu0 0.0
    %2429 = vmatpush1.xpose.msra.mxu0 0.0
    %2430 = vmatprep.subr.mxu0 0.0
    %2431 = vmatpush1.xpose.msra.mxu0 0.0
    %2432 = vmatprep.subr.mxu0 0.0
    %2433 = vmatpush1.xpose.msra.mxu0 0.0
    %2434 = vmatprep.subr.mxu0 0.0
    %2435 = vmatpush1.xpose.msra.mxu0 0.0
    %2436 = vmatprep.subr.mxu0 0.0
    %2437 = vmatpush1.xpose.msra.mxu0 0.0
    %2438 = vmatprep.subr.mxu0 0.0
    %2439 = vmatpush1.xpose.msra.mxu0 0.0
    %2440 = vmatprep.subr.mxu0 0.0
    %2441 = vmatpush1.xpose.msra.mxu0 0.0
    %2442 = vmatprep.subr.mxu0 0.0
    %2443 = vmatpush1.xpose.msra.mxu0 0.0
    %2444 = vmatprep.subr.mxu0 0.0
    %2445 = vmatpush1.xpose.msra.mxu0 0.0
    %2446 = vmatprep.mubr.f32.mxu0 0.0
    %2447 = vmatmul.mubr.f32.gmra.mrb[0].mxu0 %v2378
    %v2448 = vpop.f32.mrb[0].mxu0
    %v2449 = vadd.f32 %v21, %v2448
    %v2450 = vpop.f32.mrb[0].mxu0
    %2451 = vdwg.mxu0
    %2452 = vrot.lane.b32.xlu0 %v1993, 96
    %v2453 = vpop.permute.xlu0 %2452
    %v2454 = vsel %vm191, %v1993, 0
    %v2456 = vsel %vm191, %v2453, 0
    %2458 = vmatprep.subr.mxu0 0.0
    %2459 = vmatpush1.xpose.msra.mxu0 %v2456
    %2460 = vmatprep.subr.mxu0 0.0
    %2461 = vmatpush1.xpose.msra.mxu0 0.0
    %2462 = vmatprep.subr.mxu0 0.0
    %2463 = vmatpush1.xpose.msra.mxu0 0.0
    %2464 = vmatprep.subr.mxu0 0.0
    %2465 = vmatpush1.xpose.msra.mxu0 0.0
    %2466 = vmatprep.subr.mxu0 0.0
    %2467 = vmatpush1.xpose.msra.mxu0 0.0
    %2468 = vmatprep.subr.mxu0 0.0
    %2469 = vmatpush1.xpose.msra.mxu0 0.0
    %2470 = vmatprep.subr.mxu0 0.0
    %2471 = vmatpush1.xpose.msra.mxu0 0.0
    %2472 = vmatprep.subr.mxu0 0.0
    %2473 = vmatpush1.xpose.msra.mxu0 0.0
    %2474 = vmatprep.subr.mxu0 0.0
    %2475 = vmatpush1.xpose.msra.mxu0 0.0
    %2476 = vmatprep.subr.mxu0 0.0
    %2477 = vmatpush1.xpose.msra.mxu0 0.0
    %2478 = vmatprep.subr.mxu0 0.0
    %2479 = vmatpush1.xpose.msra.mxu0 0.0
    %2480 = vmatprep.subr.mxu0 0.0
    %2481 = vmatpush1.xpose.msra.mxu0 0.0
    %2482 = vmatprep.subr.mxu0 0.0
    %2483 = vmatpush1.xpose.msra.mxu0 0.0
    %2484 = vmatprep.subr.mxu0 0.0
    %2485 = vmatpush1.xpose.msra.mxu0 0.0
    %2486 = vmatprep.subr.mxu0 0.0
    %2487 = vmatpush1.xpose.msra.mxu0 0.0
    %2488 = vmatprep.subr.mxu0 0.0
    %2489 = vmatpush1.xpose.msra.mxu0 0.0
    %2490 = vmatprep.subr.mxu0 0.0
    %2491 = vmatpush1.xpose.msra.mxu0 0.0
    %2492 = vmatprep.subr.mxu0 0.0
    %2493 = vmatpush1.xpose.msra.mxu0 0.0
    %2494 = vmatprep.subr.mxu0 0.0
    %2495 = vmatpush1.xpose.msra.mxu0 0.0
    %2496 = vmatprep.subr.mxu0 0.0
    %2497 = vmatpush1.xpose.msra.mxu0 0.0
    %2498 = vmatprep.subr.mxu0 0.0
    %2499 = vmatpush1.xpose.msra.mxu0 0.0
    %2500 = vmatprep.subr.mxu0 0.0
    %2501 = vmatpush1.xpose.msra.mxu0 0.0
    %2502 = vmatprep.subr.mxu0 0.0
    %2503 = vmatpush1.xpose.msra.mxu0 0.0
    %2504 = vmatprep.subr.mxu0 0.0
    %2505 = vmatpush1.xpose.msra.mxu0 0.0
    %2506 = vmatprep.subr.mxu0 0.0
    %2507 = vmatpush1.xpose.msra.mxu0 0.0
    %2508 = vmatprep.subr.mxu0 0.0
    %2509 = vmatpush1.xpose.msra.mxu0 0.0
    %2510 = vmatprep.subr.mxu0 0.0
    %2511 = vmatpush1.xpose.msra.mxu0 0.0
    %2512 = vmatprep.subr.mxu0 0.0
    %2513 = vmatpush1.xpose.msra.mxu0 0.0
    %2514 = vmatprep.subr.mxu0 0.0
    %2515 = vmatpush1.xpose.msra.mxu0 0.0
    %2516 = vmatprep.subr.mxu0 0.0
    %2517 = vmatpush1.xpose.msra.mxu0 0.0
    %2518 = vmatprep.subr.mxu0 0.0
    %2519 = vmatpush1.xpose.msra.mxu0 0.0
    %2520 = vmatprep.subr.mxu0 0.0
    %2521 = vmatpush1.xpose.msra.mxu0 0.0
    %2522 = vmatprep.mubr.f32.mxu0 0.0
    %2523 = vmatmul.mubr.f32.gmra.mrb[0].mxu0 %v2454
    %v2524 = vpop.f32.mrb[0].mxu0
    %v2525 = vadd.f32 %v20, %v2524
    %v2526 = vpop.f32.mrb[0].mxu0
    %2527 = vdwg.mxu0
    %2528 = vrot.lane.b32.xlu0 %v1995, 96
    %v2529 = vpop.permute.xlu0 %2528
    %v2530 = vsel %vm191, %v1995, 0
    %v2532 = vsel %vm191, %v2529, 0
    %2534 = vmatprep.subr.mxu0 0.0
    %2535 = vmatpush1.xpose.msra.mxu0 %v2532
    %2536 = vmatprep.subr.mxu0 0.0
    %2537 = vmatpush1.xpose.msra.mxu0 0.0
    %2538 = vmatprep.subr.mxu0 0.0
    %2539 = vmatpush1.xpose.msra.mxu0 0.0
    %2540 = vmatprep.subr.mxu0 0.0
    %2541 = vmatpush1.xpose.msra.mxu0 0.0
    %2542 = vmatprep.subr.mxu0 0.0
    %2543 = vmatpush1.xpose.msra.mxu0 0.0
    %2544 = vmatprep.subr.mxu0 0.0
    %2545 = vmatpush1.xpose.msra.mxu0 0.0
    %2546 = vmatprep.subr.mxu0 0.0
    %2547 = vmatpush1.xpose.msra.mxu0 0.0
    %2548 = vmatprep.subr.mxu0 0.0
    %2549 = vmatpush1.xpose.msra.mxu0 0.0
    %2550 = vmatprep.subr.mxu0 0.0
    %2551 = vmatpush1.xpose.msra.mxu0 0.0
    %2552 = vmatprep.subr.mxu0 0.0
    %2553 = vmatpush1.xpose.msra.mxu0 0.0
    %2554 = vmatprep.subr.mxu0 0.0
    %2555 = vmatpush1.xpose.msra.mxu0 0.0
    %2556 = vmatprep.subr.mxu0 0.0
    %2557 = vmatpush1.xpose.msra.mxu0 0.0
    %2558 = vmatprep.subr.mxu0 0.0
    %2559 = vmatpush1.xpose.msra.mxu0 0.0
    %2560 = vmatprep.subr.mxu0 0.0
    %2561 = vmatpush1.xpose.msra.mxu0 0.0
    %2562 = vmatprep.subr.mxu0 0.0
    %2563 = vmatpush1.xpose.msra.mxu0 0.0
    %2564 = vmatprep.subr.mxu0 0.0
    %2565 = vmatpush1.xpose.msra.mxu0 0.0
    %2566 = vmatprep.subr.mxu0 0.0
    %2567 = vmatpush1.xpose.msra.mxu0 0.0
    %2568 = vmatprep.subr.mxu0 0.0
    %2569 = vmatpush1.xpose.msra.mxu0 0.0
    %2570 = vmatprep.subr.mxu0 0.0
    %2571 = vmatpush1.xpose.msra.mxu0 0.0
    %2572 = vmatprep.subr.mxu0 0.0
    %2573 = vmatpush1.xpose.msra.mxu0 0.0
    %2574 = vmatprep.subr.mxu0 0.0
    %2575 = vmatpush1.xpose.msra.mxu0 0.0
    %2576 = vmatprep.subr.mxu0 0.0
    %2577 = vmatpush1.xpose.msra.mxu0 0.0
    %2578 = vmatprep.subr.mxu0 0.0
    %2579 = vmatpush1.xpose.msra.mxu0 0.0
    %2580 = vmatprep.subr.mxu0 0.0
    %2581 = vmatpush1.xpose.msra.mxu0 0.0
    %2582 = vmatprep.subr.mxu0 0.0
    %2583 = vmatpush1.xpose.msra.mxu0 0.0
    %2584 = vmatprep.subr.mxu0 0.0
    %2585 = vmatpush1.xpose.msra.mxu0 0.0
    %2586 = vmatprep.subr.mxu0 0.0
    %2587 = vmatpush1.xpose.msra.mxu0 0.0
    %2588 = vmatprep.subr.mxu0 0.0
    %2589 = vmatpush1.xpose.msra.mxu0 0.0
    %2590 = vmatprep.subr.mxu0 0.0
    %2591 = vmatpush1.xpose.msra.mxu0 0.0
    %2592 = vmatprep.subr.mxu0 0.0
    %2593 = vmatpush1.xpose.msra.mxu0 0.0
    %2594 = vmatprep.subr.mxu0 0.0
    %2595 = vmatpush1.xpose.msra.mxu0 0.0
    %2596 = vmatprep.subr.mxu0 0.0
    %2597 = vmatpush1.xpose.msra.mxu0 0.0
    %2598 = vmatprep.mubr.f32.mxu0 0.0
    %2599 = vmatmul.mubr.f32.gmra.mrb[0].mxu0 %v2530
    %v2600 = vpop.f32.mrb[0].mxu0
    %v2601 = vadd.f32 %v21, %v2600
    %v2602 = vpop.f32.mrb[0].mxu0
    %2603 = vdwg.mxu0
    %v2604 = vsel %vm191, %v2069, -inf
    %2605 = vmax.xlane.f32.xlu0 %v2604
    %v2606 = vpop.xlane.xlu0 %2605
    %v2607 = vsel %vm191, %v2145, -inf
    %2608 = vmax.xlane.f32.xlu0 %v2607
    %v2609 = vpop.xlane.xlu0 %2608
    %v2610 = vsel %vm191, %v2221, -inf
    %2611 = vmax.xlane.f32.xlu0 %v2610
    %v2612 = vpop.xlane.xlu0 %2611
    %v2613 = vsel %vm191, %v2297, -inf
    %2614 = vmax.xlane.f32.xlu0 %v2613
    %v2615 = vpop.xlane.xlu0 %2614
    %v2616 = vsel %vm191, %v2373, -inf
    %2617 = vmax.xlane.f32.xlu0 %v2616
    %v2618 = vpop.xlane.xlu0 %2617
    %v2619 = vsel %vm191, %v2449, -inf
    %2620 = vmax.xlane.f32.xlu0 %v2619
    %v2621 = vpop.xlane.xlu0 %2620
    %v2622 = vsel %vm191, %v2525, -inf
    %2623 = vmax.xlane.f32.xlu0 %v2622
    %v2624 = vpop.xlane.xlu0 %2623
    %v2625 = vsel %vm191, %v2601, -inf
    %2626 = vmax.xlane.f32.xlu0 %v2625
    %v2627 = vpop.xlane.xlu0 %2626
    %v2628 = vsub.f32 %v2069, %v2606
    %v2629 = vsub.f32 %v2145, %v2609
    %v2630 = vsub.f32 %v2221, %v2612
    %v2631 = vsub.f32 %v2297, %v2615
    %v2632 = vsub.f32 %v2373, %v2618
    %v2633 = vsub.f32 %v2449, %v2621
    %v2634 = vsub.f32 %v2525, %v2624
    %v2635 = vsub.f32 %v2601, %v2627
    %v2636 = vmul.f32 %v2628, 1.442695
    %v2637 = vpow.pop %v2636
    %v2638 = vmul.f32 %v2629, 1.442695
    %v2639 = vpow.pop %v2638
    %v2640 = vmul.f32 %v2630, 1.442695
    %v2641 = vpow.pop %v2640
    %v2642 = vmul.f32 %v2631, 1.442695
    %v2643 = vpow.pop %v2642
    %v2644 = vmul.f32 %v2632, 1.442695
    %v2645 = vpow.pop %v2644
    %v2646 = vmul.f32 %v2633, 1.442695
    %v2647 = vpow.pop %v2646
    %v2648 = vmul.f32 %v2634, 1.442695
    %v2649 = vpow.pop %v2648
    %v2650 = vmul.f32 %v2635, 1.442695
    %v2651 = vpow.pop %v2650
    %v2652 = vsel %vm191, %v2637, 0.0
    %2653 = vadd.xlane.f32.xlu0 %v2652
    %v2654 = vpop.xlane.xlu0 %2653
    %v2655 = vsel %vm191, %v2639, 0.0
    %2656 = vadd.xlane.f32.xlu0 %v2655
    %v2657 = vpop.xlane.xlu0 %2656
    %v2658 = vsel %vm191, %v2641, 0.0
    %2659 = vadd.xlane.f32.xlu0 %v2658
    %v2660 = vpop.xlane.xlu0 %2659
    %v2661 = vsel %vm191, %v2643, 0.0
    %2662 = vadd.xlane.f32.xlu0 %v2661
    %v2663 = vpop.xlane.xlu0 %2662
    %v2664 = vsel %vm191, %v2645, 0.0
    %2665 = vadd.xlane.f32.xlu0 %v2664
    %v2666 = vpop.xlane.xlu0 %2665
    %v2667 = vsel %vm191, %v2647, 0.0
    %2668 = vadd.xlane.f32.xlu0 %v2667
    %v2669 = vpop.xlane.xlu0 %2668
    %v2670 = vsel %vm191, %v2649, 0.0
    %2671 = vadd.xlane.f32.xlu0 %v2670
    %v2672 = vpop.xlane.xlu0 %2671
    %v2673 = vsel %vm191, %v2651, 0.0
    %2674 = vadd.xlane.f32.xlu0 %v2673
    %v2675 = vpop.xlane.xlu0 %2674
    %v2676 = vrcp.pop %v2654
    %v2677 = vrcp.pop %v2657
    %v2678 = vrcp.pop %v2660
    %v2679 = vrcp.pop %v2663
    %v2680 = vrcp.pop %v2666
    %v2681 = vrcp.pop %v2669
    %v2682 = vrcp.pop %v2672
    %v2683 = vrcp.pop %v2675
    %v2684 = vmul.f32 %v2637, %v2676
    %v2685 = vmul.f32 %v2639, %v2677
    %v2686 = vmul.f32 %v2641, %v2678
    %v2687 = vmul.f32 %v2643, %v2679
    %v2688 = vmul.f32 %v2645, %v2680
    %v2689 = vmul.f32 %v2647, %v2681
    %v2690 = vmul.f32 %v2649, %v2682
    %v2691 = vmul.f32 %v2651, %v2683
    %2692 = vrot.lane.b32.xlu0 %v1974, 64
    %v2693 = vpop.permute.xlu0 %2692
    %v2696 = vsel %vm191, %v2684, 0
    %2698 = vmatprep.subr.mxu0 0.0
    %2699 = vmatpush1.msra.mxu0 %v2693
    %2700 = vmatprep.subr.mxu0 0.0
    %2701 = vmatpush1.msra.mxu0 0.0
    %2702 = vmatprep.subr.mxu0 0.0
    %2703 = vmatpush1.msra.mxu0 0.0
    %2704 = vmatprep.subr.mxu0 0.0
    %2705 = vmatpush1.msra.mxu0 0.0
    %2706 = vmatprep.subr.mxu0 0.0
    %2707 = vmatpush1.msra.mxu0 0.0
    %2708 = vmatprep.subr.mxu0 0.0
    %2709 = vmatpush1.msra.mxu0 0.0
    %2710 = vmatprep.subr.mxu0 0.0
    %2711 = vmatpush1.msra.mxu0 0.0
    %2712 = vmatprep.subr.mxu0 0.0
    %2713 = vmatpush1.msra.mxu0 0.0
    %2714 = vmatprep.subr.mxu0 0.0
    %2715 = vmatpush1.msra.mxu0 0.0
    %2716 = vmatprep.subr.mxu0 0.0
    %2717 = vmatpush1.msra.mxu0 0.0
    %2718 = vmatprep.subr.mxu0 0.0
    %2719 = vmatpush1.msra.mxu0 0.0
    %2720 = vmatprep.subr.mxu0 0.0
    %2721 = vmatpush1.msra.mxu0 0.0
    %2722 = vmatprep.subr.mxu0 0.0
    %2723 = vmatpush1.msra.mxu0 0.0
    %2724 = vmatprep.subr.mxu0 0.0
    %2725 = vmatpush1.msra.mxu0 0.0
    %2726 = vmatprep.subr.mxu0 0.0
    %2727 = vmatpush1.msra.mxu0 0.0
    %2728 = vmatprep.subr.mxu0 0.0
    %2729 = vmatpush1.msra.mxu0 0.0
    %2730 = vmatprep.subr.mxu0 0.0
    %2731 = vmatpush1.msra.mxu0 0.0
    %2732 = vmatprep.subr.mxu0 0.0
    %2733 = vmatpush1.msra.mxu0 0.0
    %2734 = vmatprep.subr.mxu0 0.0
    %2735 = vmatpush1.msra.mxu0 0.0
    %2736 = vmatprep.subr.mxu0 0.0
    %2737 = vmatpush1.msra.mxu0 0.0
    %2738 = vmatprep.subr.mxu0 0.0
    %2739 = vmatpush1.msra.mxu0 0.0
    %2740 = vmatprep.subr.mxu0 0.0
    %2741 = vmatpush1.msra.mxu0 0.0
    %2742 = vmatprep.subr.mxu0 0.0
    %2743 = vmatpush1.msra.mxu0 0.0
    %2744 = vmatprep.subr.mxu0 0.0
    %2745 = vmatpush1.msra.mxu0 0.0
    %2746 = vmatprep.subr.mxu0 0.0
    %2747 = vmatpush1.msra.mxu0 0.0
    %2748 = vmatprep.subr.mxu0 0.0
    %2749 = vmatpush1.msra.mxu0 0.0
    %2750 = vmatprep.subr.mxu0 0.0
    %2751 = vmatpush1.msra.mxu0 0.0
    %2752 = vmatprep.subr.mxu0 0.0
    %2753 = vmatpush1.msra.mxu0 0.0
    %2754 = vmatprep.subr.mxu0 0.0
    %2755 = vmatpush1.msra.mxu0 0.0
    %2756 = vmatprep.subr.mxu0 0.0
    %2757 = vmatpush1.msra.mxu0 0.0
    %2758 = vmatprep.subr.mxu0 0.0
    %2759 = vmatpush1.msra.mxu0 0.0
    %2760 = vmatprep.subr.mxu0 0.0
    %2761 = vmatpush1.msra.mxu0 0.0
    %2762 = vmatprep.mubr.f32.mxu0 0.0
    %2763 = vmatmul.mubr.f32.gmra.mrb[0].mxu0 %v2696
    %v2764 = vpop.f32.mrb[0].mxu0
    %v2765 = vadd.f32 0.0, %v2764
    %v2766 = vpop.f32.mrb[0].mxu0
    %2767 = vdwg.mxu0
    %2768 = vrot.lane.b32.xlu0 %v1979, 64
    %v2769 = vpop.permute.xlu0 %2768
    %v2772 = vsel %vm191, %v2685, 0
    %2774 = vmatprep.subr.mxu0 0.0
    %2775 = vmatpush1.msra.mxu0 %v2769
    %2776 = vmatprep.subr.mxu0 0.0
    %2777 = vmatpush1.msra.mxu0 0.0
    %2778 = vmatprep.subr.mxu0 0.0
    %2779 = vmatpush1.msra.mxu0 0.0
    %2780 = vmatprep.subr.mxu0 0.0
    %2781 = vmatpush1.msra.mxu0 0.0
    %2782 = vmatprep.subr.mxu0 0.0
    %2783 = vmatpush1.msra.mxu0 0.0
    %2784 = vmatprep.subr.mxu0 0.0
    %2785 = vmatpush1.msra.mxu0 0.0
    %2786 = vmatprep.subr.mxu0 0.0
    %2787 = vmatpush1.msra.mxu0 0.0
    %2788 = vmatprep.subr.mxu0 0.0
    %2789 = vmatpush1.msra.mxu0 0.0
    %2790 = vmatprep.subr.mxu0 0.0
    %2791 = vmatpush1.msra.mxu0 0.0
    %2792 = vmatprep.subr.mxu0 0.0
    %2793 = vmatpush1.msra.mxu0 0.0
    %2794 = vmatprep.subr.mxu0 0.0
    %2795 = vmatpush1.msra.mxu0 0.0
    %2796 = vmatprep.subr.mxu0 0.0
    %2797 = vmatpush1.msra.mxu0 0.0
    %2798 = vmatprep.subr.mxu0 0.0
    %2799 = vmatpush1.msra.mxu0 0.0
    %2800 = vmatprep.subr.mxu0 0.0
    %2801 = vmatpush1.msra.mxu0 0.0
    %2802 = vmatprep.subr.mxu0 0.0
    %2803 = vmatpush1.msra.mxu0 0.0
    %2804 = vmatprep.subr.mxu0 0.0
    %2805 = vmatpush1.msra.mxu0 0.0
    %2806 = vmatprep.subr.mxu0 0.0
    %2807 = vmatpush1.msra.mxu0 0.0
    %2808 = vmatprep.subr.mxu0 0.0
    %2809 = vmatpush1.msra.mxu0 0.0
    %2810 = vmatprep.subr.mxu0 0.0
    %2811 = vmatpush1.msra.mxu0 0.0
    %2812 = vmatprep.subr.mxu0 0.0
    %2813 = vmatpush1.msra.mxu0 0.0
    %2814 = vmatprep.subr.mxu0 0.0
    %2815 = vmatpush1.msra.mxu0 0.0
    %2816 = vmatprep.subr.mxu0 0.0
    %2817 = vmatpush1.msra.mxu0 0.0
    %2818 = vmatprep.subr.mxu0 0.0
    %2819 = vmatpush1.msra.mxu0 0.0
    %2820 = vmatprep.subr.mxu0 0.0
    %2821 = vmatpush1.msra.mxu0 0.0
    %2822 = vmatprep.subr.mxu0 0.0
    %2823 = vmatpush1.msra.mxu0 0.0
    %2824 = vmatprep.subr.mxu0 0.0
    %2825 = vmatpush1.msra.mxu0 0.0
    %2826 = vmatprep.subr.mxu0 0.0
    %2827 = vmatpush1.msra.mxu0 0.0
    %2828 = vmatprep.subr.mxu0 0.0
    %2829 = vmatpush1.msra.mxu0 0.0
    %2830 = vmatprep.subr.mxu0 0.0
    %2831 = vmatpush1.msra.mxu0 0.0
    %2832 = vmatprep.subr.mxu0 0.0
    %2833 = vmatpush1.msra.mxu0 0.0
    %2834 = vmatprep.subr.mxu0 0.0
    %2835 = vmatpush1.msra.mxu0 0.0
    %2836 = vmatprep.subr.mxu0 0.0
    %2837 = vmatpush1.msra.mxu0 0.0
    %2838 = vmatprep.mubr.f32.mxu0 0.0
    %2839 = vmatmul.mubr.f32.gmra.mrb[0].mxu0 %v2772
    %v2840 = vpop.f32.mrb[0].mxu0
    %v2841 = vadd.f32 0.0, %v2840
    %v2842 = vpop.f32.mrb[0].mxu0
    %2843 = vdwg.mxu0
    %2844 = vrot.lane.b32.xlu0 %v1985, 64
    %v2845 = vpop.permute.xlu0 %2844
    %v2848 = vsel %vm191, %v2686, 0
    %2850 = vmatprep.subr.mxu0 0.0
    %2851 = vmatpush1.msra.mxu0 %v2845
    %2852 = vmatprep.subr.mxu0 0.0
    %2853 = vmatpush1.msra.mxu0 0.0
    %2854 = vmatprep.subr.mxu0 0.0
    %2855 = vmatpush1.msra.mxu0 0.0
    %2856 = vmatprep.subr.mxu0 0.0
    %2857 = vmatpush1.msra.mxu0 0.0
    %2858 = vmatprep.subr.mxu0 0.0
    %2859 = vmatpush1.msra.mxu0 0.0
    %2860 = vmatprep.subr.mxu0 0.0
    %2861 = vmatpush1.msra.mxu0 0.0
    %2862 = vmatprep.subr.mxu0 0.0
    %2863 = vmatpush1.msra.mxu0 0.0
    %2864 = vmatprep.subr.mxu0 0.0
    %2865 = vmatpush1.msra.mxu0 0.0
    %2866 = vmatprep.subr.mxu0 0.0
    %2867 = vmatpush1.msra.mxu0 0.0
    %2868 = vmatprep.subr.mxu0 0.0
    %2869 = vmatpush1.msra.mxu0 0.0
    %2870 = vmatprep.subr.mxu0 0.0
    %2871 = vmatpush1.msra.mxu0 0.0
    %2872 = vmatprep.subr.mxu0 0.0
    %2873 = vmatpush1.msra.mxu0 0.0
    %2874 = vmatprep.subr.mxu0 0.0
    %2875 = vmatpush1.msra.mxu0 0.0
    %2876 = vmatprep.subr.mxu0 0.0
    %2877 = vmatpush1.msra.mxu0 0.0
    %2878 = vmatprep.subr.mxu0 0.0
    %2879 = vmatpush1.msra.mxu0 0.0
    %2880 = vmatprep.subr.mxu0 0.0
    %2881 = vmatpush1.msra.mxu0 0.0
    %2882 = vmatprep.subr.mxu0 0.0
    %2883 = vmatpush1.msra.mxu0 0.0
    %2884 = vmatprep.subr.mxu0 0.0
    %2885 = vmatpush1.msra.mxu0 0.0
    %2886 = vmatprep.subr.mxu0 0.0
    %2887 = vmatpush1.msra.mxu0 0.0
    %2888 = vmatprep.subr.mxu0 0.0
    %2889 = vmatpush1.msra.mxu0 0.0
    %2890 = vmatprep.subr.mxu0 0.0
    %2891 = vmatpush1.msra.mxu0 0.0
    %2892 = vmatprep.subr.mxu0 0.0
    %2893 = vmatpush1.msra.mxu0 0.0
    %2894 = vmatprep.subr.mxu0 0.0
    %2895 = vmatpush1.msra.mxu0 0.0
    %2896 = vmatprep.subr.mxu0 0.0
    %2897 = vmatpush1.msra.mxu0 0.0
    %2898 = vmatprep.subr.mxu0 0.0
    %2899 = vmatpush1.msra.mxu0 0.0
    %2900 = vmatprep.subr.mxu0 0.0
    %2901 = vmatpush1.msra.mxu0 0.0
    %2902 = vmatprep.subr.mxu0 0.0
    %2903 = vmatpush1.msra.mxu0 0.0
    %2904 = vmatprep.subr.mxu0 0.0
    %2905 = vmatpush1.msra.mxu0 0.0
    %2906 = vmatprep.subr.mxu0 0.0
    %2907 = vmatpush1.msra.mxu0 0.0
    %2908 = vmatprep.subr.mxu0 0.0
    %2909 = vmatpush1.msra.mxu0 0.0
    %2910 = vmatprep.subr.mxu0 0.0
    %2911 = vmatpush1.msra.mxu0 0.0
    %2912 = vmatprep.subr.mxu0 0.0
    %2913 = vmatpush1.msra.mxu0 0.0
    %2914 = vmatprep.mubr.f32.mxu0 0.0
    %2915 = vmatmul.mubr.f32.gmra.mrb[0].mxu0 %v2848
    %v2916 = vpop.f32.mrb[0].mxu0
    %v2917 = vadd.f32 0.0, %v2916
    %v2918 = vpop.f32.mrb[0].mxu0
    %2919 = vdwg.mxu0
    %2920 = vrot.lane.b32.xlu0 %v1987, 64
    %v2921 = vpop.permute.xlu0 %2920
    %v2924 = vsel %vm191, %v2687, 0
    %2926 = vmatprep.subr.mxu0 0.0
    %2927 = vmatpush1.msra.mxu0 %v2921
    %2928 = vmatprep.subr.mxu0 0.0
    %2929 = vmatpush1.msra.mxu0 0.0
    %2930 = vmatprep.subr.mxu0 0.0
    %2931 = vmatpush1.msra.mxu0 0.0
    %2932 = vmatprep.subr.mxu0 0.0
    %2933 = vmatpush1.msra.mxu0 0.0
    %2934 = vmatprep.subr.mxu0 0.0
    %2935 = vmatpush1.msra.mxu0 0.0
    %2936 = vmatprep.subr.mxu0 0.0
    %2937 = vmatpush1.msra.mxu0 0.0
    %2938 = vmatprep.subr.mxu0 0.0
    %2939 = vmatpush1.msra.mxu0 0.0
    %2940 = vmatprep.subr.mxu0 0.0
    %2941 = vmatpush1.msra.mxu0 0.0
    %2942 = vmatprep.subr.mxu0 0.0
    %2943 = vmatpush1.msra.mxu0 0.0
    %2944 = vmatprep.subr.mxu0 0.0
    %2945 = vmatpush1.msra.mxu0 0.0
    %2946 = vmatprep.subr.mxu0 0.0
    %2947 = vmatpush1.msra.mxu0 0.0
    %2948 = vmatprep.subr.mxu0 0.0
    %2949 = vmatpush1.msra.mxu0 0.0
    %2950 = vmatprep.subr.mxu0 0.0
    %2951 = vmatpush1.msra.mxu0 0.0
    %2952 = vmatprep.subr.mxu0 0.0
    %2953 = vmatpush1.msra.mxu0 0.0
    %2954 = vmatprep.subr.mxu0 0.0
    %2955 = vmatpush1.msra.mxu0 0.0
    %2956 = vmatprep.subr.mxu0 0.0
    %2957 = vmatpush1.msra.mxu0 0.0
    %2958 = vmatprep.subr.mxu0 0.0
    %2959 = vmatpush1.msra.mxu0 0.0
    %2960 = vmatprep.subr.mxu0 0.0
    %2961 = vmatpush1.msra.mxu0 0.0
    %2962 = vmatprep.subr.mxu0 0.0
    %2963 = vmatpush1.msra.mxu0 0.0
    %2964 = vmatprep.subr.mxu0 0.0
    %2965 = vmatpush1.msra.mxu0 0.0
    %2966 = vmatprep.subr.mxu0 0.0
    %2967 = vmatpush1.msra.mxu0 0.0
    %2968 = vmatprep.subr.mxu0 0.0
    %2969 = vmatpush1.msra.mxu0 0.0
    %2970 = vmatprep.subr.mxu0 0.0
    %2971 = vmatpush1.msra.mxu0 0.0
    %2972 = vmatprep.subr.mxu0 0.0
    %2973 = vmatpush1.msra.mxu0 0.0
    %2974 = vmatprep.subr.mxu0 0.0
    %2975 = vmatpush1.msra.mxu0 0.0
    %2976 = vmatprep.subr.mxu0 0.0
    %2977 = vmatpush1.msra.mxu0 0.0
    %2978 = vmatprep.subr.mxu0 0.0
    %2979 = vmatpush1.msra.mxu0 0.0
    %2980 = vmatprep.subr.mxu0 0.0
    %2981 = vmatpush1.msra.mxu0 0.0
    %2982 = vmatprep.subr.mxu0 0.0
    %2983 = vmatpush1.msra.mxu0 0.0
    %2984 = vmatprep.subr.mxu0 0.0
    %2985 = vmatpush1.msra.mxu0 0.0
    %2986 = vmatprep.subr.mxu0 0.0
    %2987 = vmatpush1.msra.mxu0 0.0
    %2988 = vmatprep.subr.mxu0 0.0
    %2989 = vmatpush1.msra.mxu0 0.0
    %2990 = vmatprep.mubr.f32.mxu0 0.0
    %2991 = vmatmul.mubr.f32.gmra.mrb[0].mxu0 %v2924
    %v2992 = vpop.f32.mrb[0].mxu0
    %v2993 = vadd.f32 0.0, %v2992
    %v2994 = vpop.f32.mrb[0].mxu0
    %2995 = vdwg.mxu0
    %2996 = vrot.lane.b32.xlu0 %v1989, 64
    %v2997 = vpop.permute.xlu0 %2996
    %v3000 = vsel %vm191, %v2688, 0
    %3002 = vmatprep.subr.mxu0 0.0
    %3003 = vmatpush1.msra.mxu0 %v2997
    %3004 = vmatprep.subr.mxu0 0.0
    %3005 = vmatpush1.msra.mxu0 0.0
    %3006 = vmatprep.subr.mxu0 0.0
    %3007 = vmatpush1.msra.mxu0 0.0
    %3008 = vmatprep.subr.mxu0 0.0
    %3009 = vmatpush1.msra.mxu0 0.0
    %3010 = vmatprep.subr.mxu0 0.0
    %3011 = vmatpush1.msra.mxu0 0.0
    %3012 = vmatprep.subr.mxu0 0.0
    %3013 = vmatpush1.msra.mxu0 0.0
    %3014 = vmatprep.subr.mxu0 0.0
    %3015 = vmatpush1.msra.mxu0 0.0
    %3016 = vmatprep.subr.mxu0 0.0
    %3017 = vmatpush1.msra.mxu0 0.0
    %3018 = vmatprep.subr.mxu0 0.0
    %3019 = vmatpush1.msra.mxu0 0.0
    %3020 = vmatprep.subr.mxu0 0.0
    %3021 = vmatpush1.msra.mxu0 0.0
    %3022 = vmatprep.subr.mxu0 0.0
    %3023 = vmatpush1.msra.mxu0 0.0
    %3024 = vmatprep.subr.mxu0 0.0
    %3025 = vmatpush1.msra.mxu0 0.0
    %3026 = vmatprep.subr.mxu0 0.0
    %3027 = vmatpush1.msra.mxu0 0.0
    %3028 = vmatprep.subr.mxu0 0.0
    %3029 = vmatpush1.msra.mxu0 0.0
    %3030 = vmatprep.subr.mxu0 0.0
    %3031 = vmatpush1.msra.mxu0 0.0
    %3032 = vmatprep.subr.mxu0 0.0
    %3033 = vmatpush1.msra.mxu0 0.0
    %3034 = vmatprep.subr.mxu0 0.0
    %3035 = vmatpush1.msra.mxu0 0.0
    %3036 = vmatprep.subr.mxu0 0.0
    %3037 = vmatpush1.msra.mxu0 0.0
    %3038 = vmatprep.subr.mxu0 0.0
    %3039 = vmatpush1.msra.mxu0 0.0
    %3040 = vmatprep.subr.mxu0 0.0
    %3041 = vmatpush1.msra.mxu0 0.0
    %3042 = vmatprep.subr.mxu0 0.0
    %3043 = vmatpush1.msra.mxu0 0.0
    %3044 = vmatprep.subr.mxu0 0.0
    %3045 = vmatpush1.msra.mxu0 0.0
    %3046 = vmatprep.subr.mxu0 0.0
    %3047 = vmatpush1.msra.mxu0 0.0
    %3048 = vmatprep.subr.mxu0 0.0
    %3049 = vmatpush1.msra.mxu0 0.0
    %3050 = vmatprep.subr.mxu0 0.0
    %3051 = vmatpush1.msra.mxu0 0.0
    %3052 = vmatprep.subr.mxu0 0.0
    %3053 = vmatpush1.msra.mxu0 0.0
    %3054 = vmatprep.subr.mxu0 0.0
    %3055 = vmatpush1.msra.mxu0 0.0
    %3056 = vmatprep.subr.mxu0 0.0
    %3057 = vmatpush1.msra.mxu0 0.0
    %3058 = vmatprep.subr.mxu0 0.0
    %3059 = vmatpush1.msra.mxu0 0.0
    %3060 = vmatprep.subr.mxu0 0.0
    %3061 = vmatpush1.msra.mxu0 0.0
    %3062 = vmatprep.subr.mxu0 0.0
    %3063 = vmatpush1.msra.mxu0 0.0
    %3064 = vmatprep.subr.mxu0 0.0
    %3065 = vmatpush1.msra.mxu0 0.0
    %3066 = vmatprep.mubr.f32.mxu0 0.0
    %3067 = vmatmul.mubr.f32.gmra.mrb[0].mxu0 %v3000
    %v3068 = vpop.f32.mrb[0].mxu0
    %v3069 = vadd.f32 0.0, %v3068
    %v3070 = vpop.f32.mrb[0].mxu0
    %3071 = vdwg.mxu0
    %3072 = vrot.lane.b32.xlu0 %v1991, 64
    %v3073 = vpop.permute.xlu0 %3072
    %v3076 = vsel %vm191, %v2689, 0
    %3078 = vmatprep.subr.mxu0 0.0
    %3079 = vmatpush1.msra.mxu0 %v3073
    %3080 = vmatprep.subr.mxu0 0.0
    %3081 = vmatpush1.msra.mxu0 0.0
    %3082 = vmatprep.subr.mxu0 0.0
    %3083 = vmatpush1.msra.mxu0 0.0
    %3084 = vmatprep.subr.mxu0 0.0
    %3085 = vmatpush1.msra.mxu0 0.0
    %3086 = vmatprep.subr.mxu0 0.0
    %3087 = vmatpush1.msra.mxu0 0.0
    %3088 = vmatprep.subr.mxu0 0.0
    %3089 = vmatpush1.msra.mxu0 0.0
    %3090 = vmatprep.subr.mxu0 0.0
    %3091 = vmatpush1.msra.mxu0 0.0
    %3092 = vmatprep.subr.mxu0 0.0
    %3093 = vmatpush1.msra.mxu0 0.0
    %3094 = vmatprep.subr.mxu0 0.0
    %3095 = vmatpush1.msra.mxu0 0.0
    %3096 = vmatprep.subr.mxu0 0.0
    %3097 = vmatpush1.msra.mxu0 0.0
    %3098 = vmatprep.subr.mxu0 0.0
    %3099 = vmatpush1.msra.mxu0 0.0
    %3100 = vmatprep.subr.mxu0 0.0
    %3101 = vmatpush1.msra.mxu0 0.0
    %3102 = vmatprep.subr.mxu0 0.0
    %3103 = vmatpush1.msra.mxu0 0.0
    %3104 = vmatprep.subr.mxu0 0.0
    %3105 = vmatpush1.msra.mxu0 0.0
    %3106 = vmatprep.subr.mxu0 0.0
    %3107 = vmatpush1.msra.mxu0 0.0
    %3108 = vmatprep.subr.mxu0 0.0
    %3109 = vmatpush1.msra.mxu0 0.0
    %3110 = vmatprep.subr.mxu0 0.0
    %3111 = vmatpush1.msra.mxu0 0.0
    %3112 = vmatprep.subr.mxu0 0.0
    %3113 = vmatpush1.msra.mxu0 0.0
    %3114 = vmatprep.subr.mxu0 0.0
    %3115 = vmatpush1.msra.mxu0 0.0
    %3116 = vmatprep.subr.mxu0 0.0
    %3117 = vmatpush1.msra.mxu0 0.0
    %3118 = vmatprep.subr.mxu0 0.0
    %3119 = vmatpush1.msra.mxu0 0.0
    %3120 = vmatprep.subr.mxu0 0.0
    %3121 = vmatpush1.msra.mxu0 0.0
    %3122 = vmatprep.subr.mxu0 0.0
    %3123 = vmatpush1.msra.mxu0 0.0
    %3124 = vmatprep.subr.mxu0 0.0
    %3125 = vmatpush1.msra.mxu0 0.0
    %3126 = vmatprep.subr.mxu0 0.0
    %3127 = vmatpush1.msra.mxu0 0.0
    %3128 = vmatprep.subr.mxu0 0.0
    %3129 = vmatpush1.msra.mxu0 0.0
    %3130 = vmatprep.subr.mxu0 0.0
    %3131 = vmatpush1.msra.mxu0 0.0
    %3132 = vmatprep.subr.mxu0 0.0
    %3133 = vmatpush1.msra.mxu0 0.0
    %3134 = vmatprep.subr.mxu0 0.0
    %3135 = vmatpush1.msra.mxu0 0.0
    %3136 = vmatprep.subr.mxu0 0.0
    %3137 = vmatpush1.msra.mxu0 0.0
    %3138 = vmatprep.subr.mxu0 0.0
    %3139 = vmatpush1.msra.mxu0 0.0
    %3140 = vmatprep.subr.mxu0 0.0
    %3141 = vmatpush1.msra.mxu0 0.0
    %3142 = vmatprep.mubr.f32.mxu0 0.0
    %3143 = vmatmul.mubr.f32.gmra.mrb[0].mxu0 %v3076
    %v3144 = vpop.f32.mrb[0].mxu0
    %v3145 = vadd.f32 0.0, %v3144
    %v3146 = vpop.f32.mrb[0].mxu0
    %3147 = vdwg.mxu0
    %3148 = vrot.lane.b32.xlu0 %v1993, 64
    %v3149 = vpop.permute.xlu0 %3148
    %v3152 = vsel %vm191, %v2690, 0
    %3154 = vmatprep.subr.mxu0 0.0
    %3155 = vmatpush1.msra.mxu0 %v3149
    %3156 = vmatprep.subr.mxu0 0.0
    %3157 = vmatpush1.msra.mxu0 0.0
    %3158 = vmatprep.subr.mxu0 0.0
    %3159 = vmatpush1.msra.mxu0 0.0
    %3160 = vmatprep.subr.mxu0 0.0
    %3161 = vmatpush1.msra.mxu0 0.0
    %3162 = vmatprep.subr.mxu0 0.0
    %3163 = vmatpush1.msra.mxu0 0.0
    %3164 = vmatprep.subr.mxu0 0.0
    %3165 = vmatpush1.msra.mxu0 0.0
    %3166 = vmatprep.subr.mxu0 0.0
    %3167 = vmatpush1.msra.mxu0 0.0
    %3168 = vmatprep.subr.mxu0 0.0
    %3169 = vmatpush1.msra.mxu0 0.0
    %3170 = vmatprep.subr.mxu0 0.0
    %3171 = vmatpush1.msra.mxu0 0.0
    %3172 = vmatprep.subr.mxu0 0.0
    %3173 = vmatpush1.msra.mxu0 0.0
    %3174 = vmatprep.subr.mxu0 0.0
    %3175 = vmatpush1.msra.mxu0 0.0
    %3176 = vmatprep.subr.mxu0 0.0
    %3177 = vmatpush1.msra.mxu0 0.0
    %3178 = vmatprep.subr.mxu0 0.0
    %3179 = vmatpush1.msra.mxu0 0.0
    %3180 = vmatprep.subr.mxu0 0.0
    %3181 = vmatpush1.msra.mxu0 0.0
    %3182 = vmatprep.subr.mxu0 0.0
    %3183 = vmatpush1.msra.mxu0 0.0
    %3184 = vmatprep.subr.mxu0 0.0
    %3185 = vmatpush1.msra.mxu0 0.0
    %3186 = vmatprep.subr.mxu0 0.0
    %3187 = vmatpush1.msra.mxu0 0.0
    %3188 = vmatprep.subr.mxu0 0.0
    %3189 = vmatpush1.msra.mxu0 0.0
    %3190 = vmatprep.subr.mxu0 0.0
    %3191 = vmatpush1.msra.mxu0 0.0
    %3192 = vmatprep.subr.mxu0 0.0
    %3193 = vmatpush1.msra.mxu0 0.0
    %3194 = vmatprep.subr.mxu0 0.0
    %3195 = vmatpush1.msra.mxu0 0.0
    %3196 = vmatprep.subr.mxu0 0.0
    %3197 = vmatpush1.msra.mxu0 0.0
    %3198 = vmatprep.subr.mxu0 0.0
    %3199 = vmatpush1.msra.mxu0 0.0
    %3200 = vmatprep.subr.mxu0 0.0
    %3201 = vmatpush1.msra.mxu0 0.0
    %3202 = vmatprep.subr.mxu0 0.0
    %3203 = vmatpush1.msra.mxu0 0.0
    %3204 = vmatprep.subr.mxu0 0.0
    %3205 = vmatpush1.msra.mxu0 0.0
    %3206 = vmatprep.subr.mxu0 0.0
    %3207 = vmatpush1.msra.mxu0 0.0
    %3208 = vmatprep.subr.mxu0 0.0
    %3209 = vmatpush1.msra.mxu0 0.0
    %3210 = vmatprep.subr.mxu0 0.0
    %3211 = vmatpush1.msra.mxu0 0.0
    %3212 = vmatprep.subr.mxu0 0.0
    %3213 = vmatpush1.msra.mxu0 0.0
    %3214 = vmatprep.subr.mxu0 0.0
    %3215 = vmatpush1.msra.mxu0 0.0
    %3216 = vmatprep.subr.mxu0 0.0
    %3217 = vmatpush1.msra.mxu0 0.0
    %3218 = vmatprep.mubr.f32.mxu0 0.0
    %3219 = vmatmul.mubr.f32.gmra.mrb[0].mxu0 %v3152
    %v3220 = vpop.f32.mrb[0].mxu0
    %v3221 = vadd.f32 0.0, %v3220
    %v3222 = vpop.f32.mrb[0].mxu0
    %3223 = vdwg.mxu0
    %3224 = vrot.lane.b32.xlu0 %v1995, 64
    %v3225 = vpop.permute.xlu0 %3224
    %v3228 = vsel %vm191, %v2691, 0
    %3230 = vmatprep.subr.mxu0 0.0
    %3231 = vmatpush1.msra.mxu0 %v3225
    %3232 = vmatprep.subr.mxu0 0.0
    %3233 = vmatpush1.msra.mxu0 0.0
    %3234 = vmatprep.subr.mxu0 0.0
    %3235 = vmatpush1.msra.mxu0 0.0
    %3236 = vmatprep.subr.mxu0 0.0
    %3237 = vmatpush1.msra.mxu0 0.0
    %3238 = vmatprep.subr.mxu0 0.0
    %3239 = vmatpush1.msra.mxu0 0.0
    %3240 = vmatprep.subr.mxu0 0.0
    %3241 = vmatpush1.msra.mxu0 0.0
    %3242 = vmatprep.subr.mxu0 0.0
    %3243 = vmatpush1.msra.mxu0 0.0
    %3244 = vmatprep.subr.mxu0 0.0
    %3245 = vmatpush1.msra.mxu0 0.0
    %3246 = vmatprep.subr.mxu0 0.0
    %3247 = vmatpush1.msra.mxu0 0.0
    %3248 = vmatprep.subr.mxu0 0.0
    %3249 = vmatpush1.msra.mxu0 0.0
    %3250 = vmatprep.subr.mxu0 0.0
    %3251 = vmatpush1.msra.mxu0 0.0
    %3252 = vmatprep.subr.mxu0 0.0
    %3253 = vmatpush1.msra.mxu0 0.0
    %3254 = vmatprep.subr.mxu0 0.0
    %3255 = vmatpush1.msra.mxu0 0.0
    %3256 = vmatprep.subr.mxu0 0.0
    %3257 = vmatpush1.msra.mxu0 0.0
    %3258 = vmatprep.subr.mxu0 0.0
    %3259 = vmatpush1.msra.mxu0 0.0
    %3260 = vmatprep.subr.mxu0 0.0
    %3261 = vmatpush1.msra.mxu0 0.0
    %3262 = vmatprep.subr.mxu0 0.0
    %3263 = vmatpush1.msra.mxu0 0.0
    %3264 = vmatprep.subr.mxu0 0.0
    %3265 = vmatpush1.msra.mxu0 0.0
    %3266 = vmatprep.subr.mxu0 0.0
    %3267 = vmatpush1.msra.mxu0 0.0
    %3268 = vmatprep.subr.mxu0 0.0
    %3269 = vmatpush1.msra.mxu0 0.0
    %3270 = vmatprep.subr.mxu0 0.0
    %3271 = vmatpush1.msra.mxu0 0.0
    %3272 = vmatprep.subr.mxu0 0.0
    %3273 = vmatpush1.msra.mxu0 0.0
    %3274 = vmatprep.subr.mxu0 0.0
    %3275 = vmatpush1.msra.mxu0 0.0
    %3276 = vmatprep.subr.mxu0 0.0
    %3277 = vmatpush1.msra.mxu0 0.0
    %3278 = vmatprep.subr.mxu0 0.0
    %3279 = vmatpush1.msra.mxu0 0.0
    %3280 = vmatprep.subr.mxu0 0.0
    %3281 = vmatpush1.msra.mxu0 0.0
    %3282 = vmatprep.subr.mxu0 0.0
    %3283 = vmatpush1.msra.mxu0 0.0
    %3284 = vmatprep.subr.mxu0 0.0
    %3285 = vmatpush1.msra.mxu0 0.0
    %3286 = vmatprep.subr.mxu0 0.0
    %3287 = vmatpush1.msra.mxu0 0.0
    %3288 = vmatprep.subr.mxu0 0.0
    %3289 = vmatpush1.msra.mxu0 0.0
    %3290 = vmatprep.subr.mxu0 0.0
    %3291 = vmatpush1.msra.mxu0 0.0
    %3292 = vmatprep.subr.mxu0 0.0
    %3293 = vmatpush1.msra.mxu0 0.0
    %3294 = vmatprep.mubr.f32.mxu0 0.0
    %3295 = vmatmul.mubr.f32.gmra.mrb[0].mxu0 %v3228
    %v3296 = vpop.f32.mrb[0].mxu0
    %v3297 = vadd.f32 0.0, %v3296
    %v3298 = vpop.f32.mrb[0].mxu0
    %3299 = vdwg.mxu0
    %3300 = vst.msk [vmem:[#allocation2] sm:$0xff] %vm191, %v2765
    %3301 = vst.msk [vmem:[#allocation2 + $0x8] sm:$0xff] %vm191, %v2841
    %3304 = vrot.lane.b32.xlu0 %v2917, 8
    %v3305 = vpop.permute.xlu0 %3304
    %3306 = vrot.lane.b32.xlu0 %v2993, 8
    %v3307 = vpop.permute.xlu0 %3306
    %3310 = vst.msk [vmem:[#allocation2] sm:$0xff] %vm1504, %v3305
    %3311 = vst.msk [vmem:[#allocation2 + $0x8] sm:$0xff] %vm1504, %v3307
    %3314 = vrot.lane.b32.xlu0 %v3069, 16
    %v3315 = vpop.permute.xlu0 %3314
    %3316 = vrot.lane.b32.xlu0 %v3145, 16
    %v3317 = vpop.permute.xlu0 %3316
    %3320 = vst.msk [vmem:[#allocation2] sm:$0xff] %vm1515, %v3315
    %3321 = vst.msk [vmem:[#allocation2 + $0x8] sm:$0xff] %vm1515, %v3317
    %3324 = vrot.lane.b32.xlu0 %v3221, 24
    %v3325 = vpop.permute.xlu0 %3324
    %3326 = vrot.lane.b32.xlu0 %v3297, 24
    %v3327 = vpop.permute.xlu0 %3326
    %3330 = vst.msk [vmem:[#allocation2] sm:$0xff] %vm1526, %v3325
    %3331 = vst.msk [vmem:[#allocation2 + $0x8] sm:$0xff] %vm1526, %v3327
    %v3332 = vld [vmem:[#allocation2] sm:$0xff]
    %v3333 = vld [vmem:[#allocation2 + $0x8] sm:$0xff]
    %v3334 = vlaneseq
    %v3335 = vshrl.u32 %v3334, 7
    %v3336 = vsub.s32 0, %v3335
    %v3337 = vrot.slane %v1842, %v3336
    %v3339 = vsel %vm50, %v3332, 0
    %v3342 = vsel %vm50, %v3333, 0
    %3344 = vmatprep.subr.mxu0 0.0
    %3345 = vmatpush1.msra.mxu0 %v1838
    %3346 = vmatprep.subr.mxu0 0.0
    %3347 = vmatpush1.msra.mxu0 %v1839
    %3348 = vmatprep.subr.mxu0 0.0
    %3349 = vmatpush1.msra.mxu0 %v1840
    %3350 = vmatprep.subr.mxu0 0.0
    %3351 = vmatpush1.msra.mxu0 %v1841
    %3352 = vmatprep.subr.mxu0 0.0
    %3353 = vmatpush1.msra.mxu0 0.0
    %3354 = vmatprep.subr.mxu0 0.0
    %3355 = vmatpush1.msra.mxu0 0.0
    %3356 = vmatprep.subr.mxu0 0.0
    %3357 = vmatpush1.msra.mxu0 0.0
    %3358 = vmatprep.subr.mxu0 0.0
    %3359 = vmatpush1.msra.mxu0 0.0
    %3360 = vmatprep.subr.mxu0 0.0
    %3361 = vmatpush1.msra.mxu0 0.0
    %3362 = vmatprep.subr.mxu0 0.0
    %3363 = vmatpush1.msra.mxu0 0.0
    %3364 = vmatprep.subr.mxu0 0.0
    %3365 = vmatpush1.msra.mxu0 0.0
    %3366 = vmatprep.subr.mxu0 0.0
    %3367 = vmatpush1.msra.mxu0 0.0
    %3368 = vmatprep.subr.mxu0 0.0
    %3369 = vmatpush1.msra.mxu0 0.0
    %3370 = vmatprep.subr.mxu0 0.0
    %3371 = vmatpush1.msra.mxu0 0.0
    %3372 = vmatprep.subr.mxu0 0.0
    %3373 = vmatpush1.msra.mxu0 0.0
    %3374 = vmatprep.subr.mxu0 0.0
    %3375 = vmatpush1.msra.mxu0 0.0
    %3376 = vmatprep.subr.mxu0 0.0
    %3377 = vmatpush1.msra.mxu0 0.0
    %3378 = vmatprep.subr.mxu0 0.0
    %3379 = vmatpush1.msra.mxu0 0.0
    %3380 = vmatprep.subr.mxu0 0.0
    %3381 = vmatpush1.msra.mxu0 0.0
    %3382 = vmatprep.subr.mxu0 0.0
    %3383 = vmatpush1.msra.mxu0 0.0
    %3384 = vmatprep.subr.mxu0 0.0
    %3385 = vmatpush1.msra.mxu0 0.0
    %3386 = vmatprep.subr.mxu0 0.0
    %3387 = vmatpush1.msra.mxu0 0.0
    %3388 = vmatprep.subr.mxu0 0.0
    %3389 = vmatpush1.msra.mxu0 0.0
    %3390 = vmatprep.subr.mxu0 0.0
    %3391 = vmatpush1.msra.mxu0 0.0
    %3392 = vmatprep.subr.mxu0 0.0
    %3393 = vmatpush1.msra.mxu0 0.0
    %3394 = vmatprep.subr.mxu0 0.0
    %3395 = vmatpush1.msra.mxu0 0.0
    %3396 = vmatprep.subr.mxu0 0.0
    %3397 = vmatpush1.msra.mxu0 0.0
    %3398 = vmatprep.subr.mxu0 0.0
    %3399 = vmatpush1.msra.mxu0 0.0
    %3400 = vmatprep.subr.mxu0 0.0
    %3401 = vmatpush1.msra.mxu0 0.0
    %3402 = vmatprep.subr.mxu0 0.0
    %3403 = vmatpush1.msra.mxu0 0.0
    %3404 = vmatprep.subr.mxu0 0.0
    %3405 = vmatpush1.msra.mxu0 0.0
    %3406 = vmatprep.subr.mxu0 0.0
    %3407 = vmatpush1.msra.mxu0 0.0
    %3408 = vmatprep.mubr.f32.mxu0 0.0
    %3409 = vmatmul.mubr.f32.gmra.mrb[0].mxu0 %v3339
    %v3410 = vpop.f32.mrb[0].mxu0
    %v3411 = vadd.f32 %v3337, %v3410
    %v3412 = vpop.f32.mrb[0].mxu0
    %3413 = vmatprep.mubr.f32.mxu0 0.0
    %3414 = vmatmul.mubr.f32.gmra.mrb[0].mxu0 %v3342
    %v3415 = vpop.f32.mrb[0].mxu0
    %v3416 = vadd.f32 %v3337, %v3415
    %v3417 = vpop.f32.mrb[0].mxu0
    %3418 = vdwg.mxu0
    %v3419 = vadd.f32 %v3411, %v1829
    %v3420 = vadd.f32 %v3416, %v1830
    %v3421 = vsel %vm50, %v3419, 0.0
    %3422 = vadd.xlane.f32.xlu0 %v3421
    %v3423 = vpop.xlane.xlu0 %3422
    %v3424 = vsel %vm50, %v3420, 0.0
    %3425 = vadd.xlane.f32.xlu0 %v3424
    %v3426 = vpop.xlane.xlu0 %3425
    %v3427 = vmul.f32 %v3423, %v57
    %v3428 = vmul.f32 %v3426, %v57
    %v3429 = vsub.f32 %v3419, %v3427
    %v3430 = vsub.f32 %v3420, %v3428
    %v3431 = vmul.f32 %v3429, %v3429
    %v3432 = vmul.f32 %v3430, %v3430
    %v3433 = vsel %vm50, %v3431, 0.0
    %3434 = vadd.xlane.f32.xlu0 %v3433
    %v3435 = vpop.xlane.xlu0 %3434
    %v3436 = vsel %vm50, %v3432, 0.0
    %3437 = vadd.xlane.f32.xlu0 %v3436
    %v3438 = vpop.xlane.xlu0 %3437
    %v3439 = vmul.f32 %v3435, %v57
    %v3440 = vmul.f32 %v3438, %v57
    %v3441 = vadd.f32 %v3439, 1e-06
    %v3442 = vadd.f32 %v3440, 1e-06
    %v3443 = vrsqrt.pop %v3441
    %v3444 = vrsqrt.pop %v3442
    %v3445 = vmul.f32 %v3429, %v3443
    %v3446 = vmul.f32 %v3430, %v3444
    %v3447 = vlaneseq
    %v3448 = vshrl.u32 %v3447, 7
    %v3449 = vsub.s32 0, %v3448
    %v3450 = vrot.slane %v1843, %v3449
    %v3451 = vmul.f32 %v3445, %v3450
    %v3452 = vmul.f32 %v3446, %v3450
    %v3453 = vlaneseq
    %v3454 = vshrl.u32 %v3453, 7
    %v3455 = vsub.s32 0, %v3454
    %v3456 = vrot.slane %v1844, %v3455
    %v3457 = vadd.f32 %v3451, %v3456
    %v3458 = vadd.f32 %v3452, %v3456
    %v3459 = vlaneseq
    %v3460 = vshrl.u32 %v3459, 7
    %v3461 = vsub.s32 0, %v3460
    %v3462 = vrot.slane %v1849, %v3461
    %v3464 = vsel %vm50, %v3457, 0
    %v3467 = vsel %vm50, %v3458, 0
    %3469 = vmatprep.subr.mxu0 0.0
    %3470 = vmatpush1.msra.mxu0 %v1845
    %3471 = vmatprep.subr.mxu0 0.0
    %3472 = vmatpush1.msra.mxu0 %v1846
    %3473 = vmatprep.subr.mxu0 0.0
    %3474 = vmatpush1.msra.mxu0 %v1847
    %3475 = vmatprep.subr.mxu0 0.0
    %3476 = vmatpush1.msra.mxu0 %v1848
    %3477 = vmatprep.subr.mxu0 0.0
    %3478 = vmatpush1.msra.mxu0 0.0
    %3479 = vmatprep.subr.mxu0 0.0
    %3480 = vmatpush1.msra.mxu0 0.0
    %3481 = vmatprep.subr.mxu0 0.0
    %3482 = vmatpush1.msra.mxu0 0.0
    %3483 = vmatprep.subr.mxu0 0.0
    %3484 = vmatpush1.msra.mxu0 0.0
    %3485 = vmatprep.subr.mxu0 0.0
    %3486 = vmatpush1.msra.mxu0 0.0
    %3487 = vmatprep.subr.mxu0 0.0
    %3488 = vmatpush1.msra.mxu0 0.0
    %3489 = vmatprep.subr.mxu0 0.0
    %3490 = vmatpush1.msra.mxu0 0.0
    %3491 = vmatprep.subr.mxu0 0.0
    %3492 = vmatpush1.msra.mxu0 0.0
    %3493 = vmatprep.subr.mxu0 0.0
    %3494 = vmatpush1.msra.mxu0 0.0
    %3495 = vmatprep.subr.mxu0 0.0
    %3496 = vmatpush1.msra.mxu0 0.0
    %3497 = vmatprep.subr.mxu0 0.0
    %3498 = vmatpush1.msra.mxu0 0.0
    %3499 = vmatprep.subr.mxu0 0.0
    %3500 = vmatpush1.msra.mxu0 0.0
    %3501 = vmatprep.subr.mxu0 0.0
    %3502 = vmatpush1.msra.mxu0 0.0
    %3503 = vmatprep.subr.mxu0 0.0
    %3504 = vmatpush1.msra.mxu0 0.0
    %3505 = vmatprep.subr.mxu0 0.0
    %3506 = vmatpush1.msra.mxu0 0.0
    %3507 = vmatprep.subr.mxu0 0.0
    %3508 = vmatpush1.msra.mxu0 0.0
    %3509 = vmatprep.subr.mxu0 0.0
    %3510 = vmatpush1.msra.mxu0 0.0
    %3511 = vmatprep.subr.mxu0 0.0
    %3512 = vmatpush1.msra.mxu0 0.0
    %3513 = vmatprep.subr.mxu0 0.0
    %3514 = vmatpush1.msra.mxu0 0.0
    %3515 = vmatprep.subr.mxu0 0.0
    %3516 = vmatpush1.msra.mxu0 0.0
    %3517 = vmatprep.subr.mxu0 0.0
    %3518 = vmatpush1.msra.mxu0 0.0
    %3519 = vmatprep.subr.mxu0 0.0
    %3520 = vmatpush1.msra.mxu0 0.0
    %3521 = vmatprep.subr.mxu0 0.0
    %3522 = vmatpush1.msra.mxu0 0.0
    %3523 = vmatprep.subr.mxu0 0.0
    %3524 = vmatpush1.msra.mxu0 0.0
    %3525 = vmatprep.subr.mxu0 0.0
    %3526 = vmatpush1.msra.mxu0 0.0
    %3527 = vmatprep.subr.mxu0 0.0
    %3528 = vmatpush1.msra.mxu0 0.0
    %3529 = vmatprep.subr.mxu0 0.0
    %3530 = vmatpush1.msra.mxu0 0.0
    %3531 = vmatprep.subr.mxu0 0.0
    %3532 = vmatpush1.msra.mxu0 0.0
    %3533 = vmatprep.mubr.f32.mxu0 0.0
    %3534 = vmatmul.mubr.f32.gmra.mrb[0].mxu0 %v3464
    %v3535 = vpop.f32.mrb[0].mxu0
    %v3536 = vadd.f32 %v3462, %v3535
    %v3537 = vpop.f32.mrb[0].mxu0
    %3538 = vmatprep.mubr.f32.mxu0 0.0
    %3539 = vmatmul.mubr.f32.gmra.mrb[0].mxu0 %v3467
    %v3540 = vpop.f32.mrb[0].mxu0
    %v3541 = vadd.f32 %v3462, %v3540
    %v3542 = vpop.f32.mrb[0].mxu0
    %3543 = vdwg.mxu0
    %v3544 = vmax.f32 %v3536, 0.0
    %v3545 = vmax.f32 %v3541, 0.0
    %v3546 = vlaneseq
    %v3547 = vshrl.u32 %v3546, 7
    %v3548 = vsub.s32 0, %v3547
    %v3549 = vrot.slane %v1858, %v3548
    %v3551 = vsel %vm1747, %v3544, 0
    %v3554 = vsel %vm1747, %v3545, 0
    %3556 = vmatprep.subr.mxu0 0.0
    %3557 = vmatpush1.msra.mxu0 %v1850
    %3558 = vmatprep.subr.mxu0 0.0
    %3559 = vmatpush1.msra.mxu0 %v1851
    %3560 = vmatprep.subr.mxu0 0.0
    %3561 = vmatpush1.msra.mxu0 %v1852
    %3562 = vmatprep.subr.mxu0 0.0
    %3563 = vmatpush1.msra.mxu0 %v1853
    %3564 = vmatprep.subr.mxu0 0.0
    %3565 = vmatpush1.msra.mxu0 %v1854
    %3566 = vmatprep.subr.mxu0 0.0
    %3567 = vmatpush1.msra.mxu0 %v1855
    %3568 = vmatprep.subr.mxu0 0.0
    %3569 = vmatpush1.msra.mxu0 %v1856
    %3570 = vmatprep.subr.mxu0 0.0
    %3571 = vmatpush1.msra.mxu0 %v1857
    %3572 = vmatprep.subr.mxu0 0.0
    %3573 = vmatpush1.msra.mxu0 0.0
    %3574 = vmatprep.subr.mxu0 0.0
    %3575 = vmatpush1.msra.mxu0 0.0
    %3576 = vmatprep.subr.mxu0 0.0
    %3577 = vmatpush1.msra.mxu0 0.0
    %3578 = vmatprep.subr.mxu0 0.0
    %3579 = vmatpush1.msra.mxu0 0.0
    %3580 = vmatprep.subr.mxu0 0.0
    %3581 = vmatpush1.msra.mxu0 0.0
    %3582 = vmatprep.subr.mxu0 0.0
    %3583 = vmatpush1.msra.mxu0 0.0
    %3584 = vmatprep.subr.mxu0 0.0
    %3585 = vmatpush1.msra.mxu0 0.0
    %3586 = vmatprep.subr.mxu0 0.0
    %3587 = vmatpush1.msra.mxu0 0.0
    %3588 = vmatprep.subr.mxu0 0.0
    %3589 = vmatpush1.msra.mxu0 0.0
    %3590 = vmatprep.subr.mxu0 0.0
    %3591 = vmatpush1.msra.mxu0 0.0
    %3592 = vmatprep.subr.mxu0 0.0
    %3593 = vmatpush1.msra.mxu0 0.0
    %3594 = vmatprep.subr.mxu0 0.0
    %3595 = vmatpush1.msra.mxu0 0.0
    %3596 = vmatprep.subr.mxu0 0.0
    %3597 = vmatpush1.msra.mxu0 0.0
    %3598 = vmatprep.subr.mxu0 0.0
    %3599 = vmatpush1.msra.mxu0 0.0
    %3600 = vmatprep.subr.mxu0 0.0
    %3601 = vmatpush1.msra.mxu0 0.0
    %3602 = vmatprep.subr.mxu0 0.0
    %3603 = vmatpush1.msra.mxu0 0.0
    %3604 = vmatprep.subr.mxu0 0.0
    %3605 = vmatpush1.msra.mxu0 0.0
    %3606 = vmatprep.subr.mxu0 0.0
    %3607 = vmatpush1.msra.mxu0 0.0
    %3608 = vmatprep.subr.mxu0 0.0
    %3609 = vmatpush1.msra.mxu0 0.0
    %3610 = vmatprep.subr.mxu0 0.0
    %3611 = vmatpush1.msra.mxu0 0.0
    %3612 = vmatprep.subr.mxu0 0.0
    %3613 = vmatpush1.msra.mxu0 0.0
    %3614 = vmatprep.subr.mxu0 0.0
    %3615 = vmatpush1.msra.mxu0 0.0
    %3616 = vmatprep.subr.mxu0 0.0
    %3617 = vmatpush1.msra.mxu0 0.0
    %3618 = vmatprep.subr.mxu0 0.0
    %3619 = vmatpush1.msra.mxu0 0.0
    %3620 = vmatprep.mubr.f32.mxu0 0.0
    %3621 = vmatmul.mubr.f32.gmra.mrb[0].mxu0 %v3551
    %v3622 = vpop.f32.mrb[0].mxu0
    %v3623 = vadd.f32 %v3549, %v3622
    %v3624 = vpop.f32.mrb[0].mxu0
    %3625 = vmatprep.mubr.f32.mxu0 0.0
    %3626 = vmatmul.mubr.f32.gmra.mrb[0].mxu0 %v3554
    %v3627 = vpop.f32.mrb[0].mxu0
    %v3628 = vadd.f32 %v3549, %v3627
    %v3629 = vpop.f32.mrb[0].mxu0
    %3630 = vdwg.mxu0
    %v3631 = vadd.f32 %v3623, %v3419
    %v3632 = vadd.f32 %v3628, %v3420
    %v3633 = vld [vmem:[%s2 + $0x150] sm:$0x1]
    %v3634 = vld [vmem:[%s2 + $0x151] sm:$0x1]
    %v3635 = vsel %vm50, %v3631, 0.0
    %3636 = vadd.xlane.f32.xlu0 %v3635
    %v3637 = vpop.xlane.xlu0 %3636
    %v3638 = vsel %vm50, %v3632, 0.0
    %3639 = vadd.xlane.f32.xlu0 %v3638
    %v3640 = vpop.xlane.xlu0 %3639
    %v3641 = vmul.f32 %v3637, %v57
    %v3642 = vmul.f32 %v3640, %v57
    %v3643 = vsub.f32 %v3631, %v3641
    %v3644 = vsub.f32 %v3632, %v3642
    %v3645 = vmul.f32 %v3643, %v3643
    %v3646 = vmul.f32 %v3644, %v3644
    %v3647 = vsel %vm50, %v3645, 0.0
    %3648 = vadd.xlane.f32.xlu0 %v3647
    %v3649 = vpop.xlane.xlu0 %3648
    %v3650 = vsel %vm50, %v3646, 0.0
    %3651 = vadd.xlane.f32.xlu0 %v3650
    %v3652 = vpop.xlane.xlu0 %3651
    %v3653 = vmul.f32 %v3649, %v57
    %v3654 = vmul.f32 %v3652, %v57
    %v3655 = vadd.f32 %v3653, 1e-06
    %v3656 = vadd.f32 %v3654, 1e-06
    %v3657 = vrsqrt.pop %v3655
    %v3658 = vrsqrt.pop %v3656
    %v3659 = vmul.f32 %v3643, %v3657
    %v3660 = vmul.f32 %v3644, %v3658
    %v3661 = vlaneseq
    %v3662 = vshrl.u32 %v3661, 7
    %v3663 = vsub.s32 0, %v3662
    %v3664 = vrot.slane %v3633, %v3663
    %v3665 = vmul.f32 %v3659, %v3664
    %v3666 = vmul.f32 %v3660, %v3664
    %v3667 = vlaneseq
    %v3668 = vshrl.u32 %v3667, 7
    %v3669 = vsub.s32 0, %v3668
    %v3670 = vrot.slane %v3634, %v3669
    %v3671 = vadd.f32 %v3665, %v3670
    %v3672 = vadd.f32 %v3666, %v3670
    %3673 = vst.msk [vmem:[#allocation3] sm:$0xff] %vm50, %v3671
    %3674 = vst.msk [vmem:[#allocation3 + $0x8] sm:$0xff] %vm50, %v3672
    // Predicated region
    $region14: #{transformer_encoder_forward.1} parent=1 // pred_check
      _
    $region15: #{transformer_encoder_forward.1} parent=1 // pred_check_branch
      %3676 = sbr.rel (0) target = $region17
    $region16: #{transformer_encoder_forward.1} parent=1 // pred_region
      %s3678 = ssub.s32 256, 256
      %3679 = vsyncadd [#allocation4], %s3678
      %s3680 = sshll.u32 [#allocation3], 4
      %s3681 = int_to_ptr.vmem [resolvable:$true] %s3680
      %3686 = dma.vmem_to_hbm [thread:$0]  %s3681, 256, %s3, [#allocation4], 128, 128, 8
    $region17: #{transformer_encoder_forward.1} parent=1 // pred_fallthru
      _
    // Predicated region
    $region18: #{transformer_encoder_forward.1} parent=1 // pred_check
      _
    $region19: #{transformer_encoder_forward.1} parent=1 // pred_check_branch
      %3688 = sbr.rel (0) target = $region21
    $region20: #{transformer_encoder_forward.1} parent=1 // pred_region
      %3689 = dma.done [#allocation4], 256
    $region21: #{transformer_encoder_forward.1} parent=1 // pred_fallthru
      _
    %3690 = vsyncpa [#allocation4], 1

</llo_original>
